<compile_context>
chip_gen: v6e
topology: v6e:2x2x1
jax: 0.10.0
libtpu: 0.0.40
codegen_flags: <defaults>
</compile_context>

<pallas_src>
import functools

import jax
import jax.numpy as jnp
from jax.experimental import pallas as pl
from jax.experimental.pallas import tpu as pltpu


_LANE_PAD = 128  # zero-pad width for lane shifts; multiple of 128 keeps concat aligned
_CONV_TAPS = tuple((dy, dx) for dy in (-1, 0, 1) for dx in (-1, 0, 1))


# --------------------------------------------------------------------------
# Static tap plans (shared by host-side weight packing and the kernel body)
# --------------------------------------------------------------------------
def _deconv_axis_taps(k=4, stride=2, pad=1):
    """taps[r] = [(ky, oy), ...]: kernel index + input offset for output phase r."""
    taps = []
    for r in range(stride):
        lst = []
        for ky in range(k):
            if (r + pad - ky) % stride == 0:
                lst.append((ky, (r + pad - ky) // stride))
        taps.append(lst)
    return taps


def _deconv1_plan():
    """Per stage-1 phase (ry, rx) row-major: list of (ky, kx, oy, ox)."""
    ax = _deconv_axis_taps()
    plan = []
    for ry in range(2):
        for rx in range(2):
            plan.append([(ky, kx, oy, ox)
                         for (ky, oy) in ax[ry] for (kx, ox) in ax[rx]])
    return plan


def _deconv2_composed_plan():
    """Second deconv composed onto the 4 stage-1 phase planes.

    Final output row  M = 4a + 2*r1y + r2y, column N = 4c + 2*r1x + r2x.
    Per final phase (r1y, r2y, r1x, r2x) row-major: list of taps
    (ky2, kx2, qy, dy, qx, dx) meaning weight w2[:, :, ky2, kx2] applied to
    stage-1 phase plane (qy, qx) shifted by (dy, dx) on the HxW grid.
    """
    ax = _deconv_axis_taps()
    plan = []
    for r1y in range(2):
        for r2y in range(2):
            for r1x in range(2):
                for r2x in range(2):
                    taps = []
                    for (ky2, oy2) in ax[r2y]:
                        ty = r1y + oy2
                        qy, dy = ty % 2, ty // 2
                        for (kx2, ox2) in ax[r2x]:
                            tx = r1x + ox2
                            qx, dx = tx % 2, tx // 2
                            taps.append((ky2, kx2, qy, dy, qx, dx))
                    plan.append(taps)
    return plan


# --------------------------------------------------------------------------
# Fused kernel: conv2d + ResidualStack + deconv1 + composed deconv2
# --------------------------------------------------------------------------
def _decoder_kernel(*refs, H, W, n_res):
    x_ref, w0_ref, b0_ref = refs[0:3]
    res_refs = refs[3:3 + 2 * n_res]
    w1_ref, b1_ref, w2_ref, b2_ref, o_ref = refs[3 + 2 * n_res:]

    L = H * W
    # Hoisted once per kernel: column index + boundary masks (all shifts in this
    # kernel -- convs, deconv1 phases and the composed deconv2 taps -- operate
    # on the same HxW planes with |dx| <= 1).
    lane = jax.lax.broadcasted_iota(jnp.int32, (1, L), 1)
    col = lane & (W - 1)                       # W is a power of two
    col_ok = {-1: col >= 1, 1: col < (W - 1)}

    def make_tap(xb):
        """Returns tap(dy, dx) -> (C, L) bf16 with result[:, y*W+x] = xb[:, (y+dy)*W+(x+dx)]
        (zero where out of bounds).  The zero-padded buffer is built once per input."""
        zp = jnp.zeros((xb.shape[0], _LANE_PAD), xb.dtype)
        padded = jnp.concatenate([zp, xb, zp], axis=1)

        def tap(dy, dx):
            if dy == 0 and dx == 0:
                return xb
            off = dy * W + dx
            s = padded[:, _LANE_PAD + off:_LANE_PAD + off + L]
            if dx != 0:
                s = jnp.where(col_ok[dx], s, jnp.zeros_like(s))
            return s

        return tap

    def conv3x3(x_f32, wcat_ref):
        """'Same' 3x3 conv as ONE GEMM: (C_out, 9*C_in) @ (9*C_in, L), f32 accumulate."""
        tap = make_tap(x_f32.astype(jnp.bfloat16))
        xcat = jnp.concatenate([tap(dy, dx) for (dy, dx) in _CONV_TAPS], axis=0)
        return jnp.dot(wcat_ref[...], xcat, preferred_element_type=jnp.float32)

    # ---- conv2d (C0_pad -> 32, k3 s1 p1) + bias ----
    x = conv3x3(x_ref[0], w0_ref) + b0_ref[...]

    # ---- ResidualStack: x = x + conv1x1(relu(conv3x3(relu(x)))); final ReLU ----
    for j in range(n_res):
        wa_ref, wb_ref = res_refs[2 * j], res_refs[2 * j + 1]
        h = jnp.maximum(conv3x3(jnp.maximum(x, 0.0), wa_ref), 0.0)
        x = x + jnp.dot(wb_ref[...], h.astype(jnp.bfloat16),
                        preferred_element_type=jnp.float32)
    x = jnp.maximum(x, 0.0)

    # ---- ConvTranspose2d #1 (32 -> C1, k4 s2 p1): 4 phase planes, kept in VMEM ----
    tap1 = make_tap(x.astype(jnp.bfloat16))
    b1 = b1_ref[...]
    p1 = []
    for p, taps in enumerate(_deconv1_plan()):
        xcat = jnp.concatenate([tap1(oy, ox) for (_, _, oy, ox) in taps], axis=0)
        ph = jnp.dot(w1_ref[p], xcat, preferred_element_type=jnp.float32) + b1
        p1.append(ph.astype(jnp.bfloat16))

    # ---- ConvTranspose2d #2 (C1 -> C2) composed directly on the phase planes ----
    plane_tap = [make_tap(p1[q]) for q in range(4)]
    memo = {}

    def shifted_plane(qy, dy, qx, dx):
        key = (qy, dy, qx, dx)
        if key not in memo:
            memo[key] = plane_tap[qy * 2 + qx](dy, dx)
        return memo[key]

    b2 = b2_ref[...]
    for fp, taps in enumerate(_deconv2_composed_plan()):
        xcat = jnp.concatenate(
            [shifted_plane(qy, dy, qx, dx) for (_, _, qy, dy, qx, dx) in taps],
            axis=0)
        z = jnp.dot(w2_ref[fp], xcat, preferred_element_type=jnp.float32) + b2
        o_ref[0, fp] = z


# --------------------------------------------------------------------------
# Host-side weight packing (tiny, runs under jit)
# --------------------------------------------------------------------------
def _pack_conv3x3(w, c_in_pad=None):
    """(C_out, C_in, 3, 3) -> (C_out, 9*C_in[_pad]) bf16, tap order == _CONV_TAPS."""
    c_out, c_in, k, _ = w.shape
    assert k == 3
    if c_in_pad is not None and c_in_pad > c_in:
        w = jnp.pad(w, ((0, 0), (0, c_in_pad - c_in), (0, 0), (0, 0)))
    pieces = [w[:, :, dy + 1, dx + 1] for (dy, dx) in _CONV_TAPS]
    return jnp.concatenate(pieces, axis=1).astype(jnp.bfloat16)


def _pack_deconv1(w):
    """(C_in, C_out, 4, 4) -> (4, C_out, 4*C_in) bf16 matching _deconv1_plan order."""
    mats = []
    for taps in _deconv1_plan():
        pieces = [jnp.transpose(w[:, :, ky, kx]) for (ky, kx, _, _) in taps]
        mats.append(jnp.concatenate(pieces, axis=1))
    return jnp.stack(mats, axis=0).astype(jnp.bfloat16)


def _pack_deconv2(w):
    """(C_in, C_out, 4, 4) -> (16, C_out, 4*C_in) bf16 matching _deconv2_composed_plan."""
    mats = []
    for taps in _deconv2_composed_plan():
        pieces = [jnp.transpose(w[:, :, ky, kx]) for (ky, kx, *_rest) in taps]
        mats.append(jnp.concatenate(pieces, axis=1))
    return jnp.stack(mats, axis=0).astype(jnp.bfloat16)


# --------------------------------------------------------------------------
# Decoder definition (mirrors the PyTorch cfg-driven Decoder)
# --------------------------------------------------------------------------
CFG = {
    "model": {"decoder": {"layers": [
        {"name": "conv2d",
         "param": dict(in_channels=4, out_channels=32, kernel_size=3,
                       stride=1, padding=1)},
        {"name": "resnet",
         "param": dict(in_dim=32, h_dim=32, res_h_dim=16, n_res_layers=2)},
        {"name": "conv2d_transpose",
         "param": dict(in_channels=32, out_channels=16, kernel_size=4,
                       stride=2, padding=1)},
        {"name": "conv2d_transpose",
         "param": dict(in_channels=16, out_channels=3, kernel_size=4,
                       stride=2, padding=1)},
    ]}}
}


def init_params(cfg, key):
    params = []
    for layer_cfg in cfg["model"]["decoder"]["layers"]:
        name, p = layer_cfg["name"], layer_cfg["param"]
        if name == "conv2d":
            key, k1, k2 = jax.random.split(key, 3)
            w = jax.random.normal(
                k1, (p["out_channels"], p["in_channels"],
                     p["kernel_size"], p["kernel_size"]), jnp.float32) * 0.05
            b = jax.random.normal(k2, (p["out_channels"],), jnp.float32) * 0.05
            params.append((name, p, (w, b)))
        elif name == "conv2d_transpose":
            key, k1, k2 = jax.random.split(key, 3)
            w = jax.random.normal(
                k1, (p["in_channels"], p["out_channels"],
                     p["kernel_size"], p["kernel_size"]), jnp.float32) * 0.05
            b = jax.random.normal(k2, (p["out_channels"],), jnp.float32) * 0.05
            params.append((name, p, (w, b)))
        elif name == "resnet":
            # ResidualLayer = ReLU -> Conv3x3(no bias) -> ReLU -> Conv1x1(no bias), +x
            layers = []
            for _ in range(p["n_res_layers"]):
                key, k1, k2 = jax.random.split(key, 3)
                w1 = jax.random.normal(
                    k1, (p["res_h_dim"], p["in_dim"], 3, 3), jnp.float32) * 0.05
                w2 = jax.random.normal(
                    k2, (p["h_dim"], p["res_h_dim"], 1, 1), jnp.float32) * 0.05
                layers.append((w1, w2))
            params.append((name, p, layers))
        else:
            raise NotImplementedError(name)
    return params


def decoder_forward(x_nchw, params):
    (n0, p0, (w0, b0)) = params[0]
    (nr, _pr, res_ws) = params[1]
    (n1, p1c, (tw1, tb1)) = params[2]
    (n2, p2c, (tw2, tb2)) = params[3]
    assert n0 == "conv2d" and nr == "resnet"
    assert n1 == "conv2d_transpose" and n2 == "conv2d_transpose"
    assert (p0["kernel_size"], p0["stride"], p0["padding"]) == (3, 1, 1)
    for p in (p1c, p2c):
        assert (p["kernel_size"], p["stride"], p["padding"]) == (4, 2, 1)

    B, C0, H, W = x_nchw.shape
    assert W & (W - 1) == 0, "W must be a power of two"
    assert W + 1 < _LANE_PAD, "lane-shift window too small for this W"
    L = H * W
    c1, c2 = tw1.shape[1], tw2.shape[1]
    n_res = len(res_ws)

    # Pad input channels to the bf16 sublane-tile multiple (16) so the in-kernel
    # sublane concatenation of shifted taps stays tile-aligned (zero weight cols
    # are added to w0, so the result is unchanged).
    c0p = max(16, ((C0 + 15) // 16) * 16)
    x_flat = x_nchw.reshape(B, C0, L).astype(jnp.float32)
    if c0p != C0:
        x_flat = jnp.pad(x_flat, ((0, 0), (0, c0p - C0), (0, 0)))

    # Packed weights: tap-concatenated (C_out, K) bf16; biases (C_out, 1) f32.
    w0cat = _pack_conv3x3(w0, c_in_pad=c0p)
    b0p = b0.reshape(-1, 1).astype(jnp.float32)
    res_packed = []
    for (wa, wb) in res_ws:
        res_packed.append(_pack_conv3x3(wa))                              # (res_h, 9*in_dim)
        res_packed.append(wb.reshape(wb.shape[0], wb.shape[1]).astype(jnp.bfloat16))
    w1p = _pack_deconv1(tw1)                                              # (4, c1, 4*32)
    b1p = tb1.reshape(-1, 1).astype(jnp.float32)
    w2p = _pack_deconv2(tw2)                                              # (16, c2, 4*c1)
    b2p = tb2.reshape(-1, 1).astype(jnp.float32)

    inputs = [x_flat, w0cat, b0p, *res_packed, w1p, b1p, w2p, b2p]

    def full_spec(a):
        return pl.BlockSpec(a.shape, lambda b, _nd=a.ndim: (0,) * _nd)

    in_specs = ([pl.BlockSpec((1, c0p, L), lambda b: (b, 0, 0))]
                + [full_spec(a) for a in inputs[1:]])

    # Advisory cost estimate (per-call).
    macs_per_lane = (w0cat.shape[0] * w0cat.shape[1]
                     + sum(int(w.shape[0]) * int(w.shape[1]) for w in res_packed)
                     + w1p.shape[0] * w1p.shape[1] * w1p.shape[2]
                     + w2p.shape[0] * w2p.shape[1] * w2p.shape[2])
    flops = 2 * L * int(macs_per_lane) * B
    bytes_accessed = (int(x_flat.size) * 4 + B * 16 * c2 * L * 4
                      + sum(int(a.size) * a.dtype.itemsize for a in inputs[1:]))

    phases = pl.pallas_call(
        functools.partial(_decoder_kernel, H=H, W=W, n_res=n_res),
        out_shape=jax.ShapeDtypeStruct((B, 16, c2, L), jnp.float32),
        grid_spec=pltpu.PrefetchScalarGridSpec(
            num_scalar_prefetch=0,
            grid=(B,),
            in_specs=in_specs,
            out_specs=pl.BlockSpec((1, 16, c2, L), lambda b: (b, 0, 0, 0)),
        ),
        compiler_params=pltpu.CompilerParams(
            dimension_semantics=("parallel",)),
        cost_estimate=pl.CostEstimate(flops=int(flops), transcendentals=0,
                                      bytes_accessed=int(bytes_accessed)),
    )(*inputs)

    # Interleave the 16 composed sub-pixel phases -> (B, C2, 4H, 4W).
    # phases dims: (B, r1y, r2y, r1x, r2x, C2, a, cc);
    # final row = 4a + 2*r1y + r2y, final col = 4cc + 2*r1x + r2x.
    out = (phases.reshape(B, 2, 2, 2, 2, c2, H, W)
                 .transpose(0, 5, 6, 1, 2, 7, 3, 4)
                 .reshape(B, c2, 4 * H, 4 * W))
    return out


# --------------------------------------------------------------------------
# Pure-JAX reference (same bf16-operand / f32-accumulate precision policy)
# --------------------------------------------------------------------------
def _ref_conv(x, w, b=None, pad=0):
    out = jax.lax.conv_general_dilated(
        x.astype(jnp.bfloat16), w.astype(jnp.bfloat16),
        window_strides=(1, 1), padding=[(pad, pad), (pad, pad)],
        dimension_numbers=("NCHW", "OIHW", "NCHW"),
        preferred_element_type=jnp.float32)
    if b is not None:
        out = out + b.reshape(1, -1, 1, 1)
    return out


def _ref_deconv(x, w, b, stride, pad):
    c_in, c_out, k, _ = w.shape
    w_eq = jnp.transpose(jnp.flip(w, (2, 3)), (1, 0, 2, 3))   # (C_out, C_in, k, k)
    out = jax.lax.conv_general_dilated(
        x.astype(jnp.bfloat16), w_eq.astype(jnp.bfloat16),
        window_strides=(1, 1),
        padding=[(k - 1 - pad, k - 1 - pad)] * 2,
        lhs_dilation=(stride, stride),
        dimension_numbers=("NCHW", "OIHW", "NCHW"),
        preferred_element_type=jnp.float32)
    return out + b.reshape(1, -1, 1, 1)


def decoder_reference(x, params):
    (_, p0, (w0, b0)) = params[0]
    (_, _pr, res_ws) = params[1]
    (_, p1c, (tw1, tb1)) = params[2]
    (_, p2c, (tw2, tb2)) = params[3]
    x = x.astype(jnp.float32)
    x = _ref_conv(x, w0, b0, pad=p0["padding"])
    for (wa, wb) in res_ws:
        h = jnp.maximum(_ref_conv(jnp.maximum(x, 0.0), wa, pad=1), 0.0)
        x = x + _ref_conv(h, wb, pad=0)
    x = jnp.maximum(x, 0.0)
    x = _ref_deconv(x, tw1, tb1, p1c["stride"], p1c["padding"])
    x = _ref_deconv(x, tw2, tb2, p2c["stride"], p2c["padding"])
    return x


if __name__ == "__main__":
    key = jax.random.PRNGKey(0)
    kx, kp = jax.random.split(key)
    x = jax.random.normal(kx, (2, 4, 16, 16), jnp.float32)   # NCHW
    params = init_params(CFG, kp)

    fwd = jax.jit(lambda inp: decoder_forward(inp, params))
    out = jax.block_until_ready(fwd(x))

    assert out.shape == (2, 3, 64, 64), out.shape
    assert bool(jnp.all(jnp.isfinite(out)))

    ref = decoder_reference(x, params)
    err = float(jnp.max(jnp.abs(out - ref)))
    scale = float(jnp.max(jnp.abs(ref)))
    assert err <= 2e-2 * scale + 1e-3, (err, scale)

    print("KERNEL_OK")
</pallas_src>

<mosaic_0001>
module attributes {stable_mosaic.version = 11 : i64} {
  func.func @_decoder_kernel(%arg0: i32, %arg1: memref<1x16x256xf32, #tpu.memory_space<vmem>>, %arg2: memref<32x144xbf16, #tpu.memory_space<vmem>>, %arg3: memref<32x1xf32, #tpu.memory_space<vmem>>, %arg4: memref<16x288xbf16, #tpu.memory_space<vmem>>, %arg5: memref<32x16xbf16, #tpu.memory_space<vmem>>, %arg6: memref<16x288xbf16, #tpu.memory_space<vmem>>, %arg7: memref<32x16xbf16, #tpu.memory_space<vmem>>, %arg8: memref<4x16x128xbf16, #tpu.memory_space<vmem>>, %arg9: memref<16x1xf32, #tpu.memory_space<vmem>>, %arg10: memref<16x3x64xbf16, #tpu.memory_space<vmem>>, %arg11: memref<3x1xf32, #tpu.memory_space<vmem>>, %arg12: memref<1x16x3x256xf32, #tpu.memory_space<vmem>>) attributes {dimension_semantics = [#tpu.dimension_semantics<parallel>], iteration_bounds = array<i64: 2>, scalar_prefetch = 0 : i64, scratch_operands = 0 : i64, tpu.core_type = #tpu.core_type<tc>, window_params = [{transform_indices = @transform_0, window_bounds = array<i64: 1, 16, 256>}, {pipeline_mode = #tpu.pipeline_mode<synchronous>, transform_indices = @transform_1, window_bounds = array<i64: 32, 144>}, {pipeline_mode = #tpu.pipeline_mode<synchronous>, transform_indices = @transform_2, window_bounds = array<i64: 32, 1>}, {pipeline_mode = #tpu.pipeline_mode<synchronous>, transform_indices = @transform_3, window_bounds = array<i64: 16, 288>}, {pipeline_mode = #tpu.pipeline_mode<synchronous>, transform_indices = @transform_4, window_bounds = array<i64: 32, 16>}, {pipeline_mode = #tpu.pipeline_mode<synchronous>, transform_indices = @transform_5, window_bounds = array<i64: 16, 288>}, {pipeline_mode = #tpu.pipeline_mode<synchronous>, transform_indices = @transform_6, window_bounds = array<i64: 32, 16>}, {pipeline_mode = #tpu.pipeline_mode<synchronous>, transform_indices = @transform_7, window_bounds = array<i64: 4, 16, 128>}, {pipeline_mode = #tpu.pipeline_mode<synchronous>, transform_indices = @transform_8, window_bounds = array<i64: 16, 1>}, {pipeline_mode = #tpu.pipeline_mode<synchronous>, transform_indices = @transform_9, window_bounds = array<i64: 16, 3, 64>}, {pipeline_mode = #tpu.pipeline_mode<synchronous>, transform_indices = @transform_10, window_bounds = array<i64: 3, 1>}, {transform_indices = @transform_11, window_bounds = array<i64: 1, 16, 3, 256>}]} {
    %0 = tpu.iota {dimensions = array<i32: 1>} : vector<1x256xi32>
    %c15_i32 = arith.constant 15 : i32
    %1 = vector.broadcast %c15_i32 : i32 to vector<1x256xi32>
    %2 = arith.andi %0, %1 : vector<1x256xi32>
    %c1_i32 = arith.constant 1 : i32
    %3 = vector.broadcast %c1_i32 : i32 to vector<1x256xi32>
    %4 = arith.cmpi sge, %2, %3 : vector<1x256xi32>
    %c15_i32_0 = arith.constant 15 : i32
    %5 = vector.broadcast %c15_i32_0 : i32 to vector<1x256xi32>
    %6 = arith.cmpi slt, %2, %5 : vector<1x256xi32>
    %c0 = arith.constant 0 : index
    %c0_1 = arith.constant 0 : index
    %c0_2 = arith.constant 0 : index
    %7 = vector.load %arg1[%c0, %c0_1, %c0_2] : memref<1x16x256xf32, #tpu.memory_space<vmem>>, vector<1x16x256xf32>
    %8 = vector.shape_cast %7 : vector<1x16x256xf32> to vector<16x256xf32>
    %9 = arith.truncf %8 : vector<16x256xf32> to vector<16x256xbf16>
    %cst = arith.constant 0.000000e+00 : bf16
    %10 = vector.broadcast %cst : bf16 to vector<16x128xbf16>
    %11 = tpu.concatenate %10, %9, %10 in 1 : vector<16x128xbf16>, vector<16x256xbf16>, vector<16x128xbf16> -> vector<16x512xbf16>
    %12 = vector.extract_strided_slice %11 {offsets = [0, 111], sizes = [16, 256], strides = [1, 1]} : vector<16x512xbf16> to vector<16x256xbf16>
    %cst_3 = arith.constant 0.000000e+00 : bf16
    %13 = vector.broadcast %cst_3 : bf16 to vector<16x256xbf16>
    %14 = vector.shape_cast %4 : vector<1x256xi1> to vector<1x256xi1>
    %15 = vector.broadcast %14 : vector<1x256xi1> to vector<16x256xi1>
    %16 = arith.select %15, %12, %13 : vector<16x256xi1>, vector<16x256xbf16>
    %17 = vector.extract_strided_slice %11 {offsets = [0, 112], sizes = [16, 256], strides = [1, 1]} : vector<16x512xbf16> to vector<16x256xbf16>
    %18 = vector.extract_strided_slice %11 {offsets = [0, 113], sizes = [16, 256], strides = [1, 1]} : vector<16x512xbf16> to vector<16x256xbf16>
    %cst_4 = arith.constant 0.000000e+00 : bf16
    %19 = vector.broadcast %cst_4 : bf16 to vector<16x256xbf16>
    %20 = vector.shape_cast %6 : vector<1x256xi1> to vector<1x256xi1>
    %21 = vector.broadcast %20 : vector<1x256xi1> to vector<16x256xi1>
    %22 = arith.select %21, %18, %19 : vector<16x256xi1>, vector<16x256xbf16>
    %23 = vector.extract_strided_slice %11 {offsets = [0, 127], sizes = [16, 256], strides = [1, 1]} : vector<16x512xbf16> to vector<16x256xbf16>
    %cst_5 = arith.constant 0.000000e+00 : bf16
    %24 = vector.broadcast %cst_5 : bf16 to vector<16x256xbf16>
    %25 = vector.shape_cast %4 : vector<1x256xi1> to vector<1x256xi1>
    %26 = vector.broadcast %25 : vector<1x256xi1> to vector<16x256xi1>
    %27 = arith.select %26, %23, %24 : vector<16x256xi1>, vector<16x256xbf16>
    %28 = vector.extract_strided_slice %11 {offsets = [0, 129], sizes = [16, 256], strides = [1, 1]} : vector<16x512xbf16> to vector<16x256xbf16>
    %cst_6 = arith.constant 0.000000e+00 : bf16
    %29 = vector.broadcast %cst_6 : bf16 to vector<16x256xbf16>
    %30 = vector.shape_cast %6 : vector<1x256xi1> to vector<1x256xi1>
    %31 = vector.broadcast %30 : vector<1x256xi1> to vector<16x256xi1>
    %32 = arith.select %31, %28, %29 : vector<16x256xi1>, vector<16x256xbf16>
    %33 = vector.extract_strided_slice %11 {offsets = [0, 143], sizes = [16, 256], strides = [1, 1]} : vector<16x512xbf16> to vector<16x256xbf16>
    %cst_7 = arith.constant 0.000000e+00 : bf16
    %34 = vector.broadcast %cst_7 : bf16 to vector<16x256xbf16>
    %35 = vector.shape_cast %4 : vector<1x256xi1> to vector<1x256xi1>
    %36 = vector.broadcast %35 : vector<1x256xi1> to vector<16x256xi1>
    %37 = arith.select %36, %33, %34 : vector<16x256xi1>, vector<16x256xbf16>
    %38 = vector.extract_strided_slice %11 {offsets = [0, 144], sizes = [16, 256], strides = [1, 1]} : vector<16x512xbf16> to vector<16x256xbf16>
    %39 = vector.extract_strided_slice %11 {offsets = [0, 145], sizes = [16, 256], strides = [1, 1]} : vector<16x512xbf16> to vector<16x256xbf16>
    %cst_8 = arith.constant 0.000000e+00 : bf16
    %40 = vector.broadcast %cst_8 : bf16 to vector<16x256xbf16>
    %41 = vector.shape_cast %6 : vector<1x256xi1> to vector<1x256xi1>
    %42 = vector.broadcast %41 : vector<1x256xi1> to vector<16x256xi1>
    %43 = arith.select %42, %39, %40 : vector<16x256xi1>, vector<16x256xbf16>
    %44 = tpu.concatenate %16, %17, %22, %27, %9, %32, %37, %38, %43 in 0 : vector<16x256xbf16>, vector<16x256xbf16>, vector<16x256xbf16>, vector<16x256xbf16>, vector<16x256xbf16>, vector<16x256xbf16>, vector<16x256xbf16>, vector<16x256xbf16>, vector<16x256xbf16> -> vector<144x256xbf16>
    %c0_9 = arith.constant 0 : index
    %c0_10 = arith.constant 0 : index
    %45 = vector.load %arg2[%c0_9, %c0_10] : memref<32x144xbf16, #tpu.memory_space<vmem>>, vector<32x144xbf16>
    %cst_11 = arith.constant dense<0.000000e+00> : vector<32x256xf32>
    %46 = tpu.matmul %45, %44, %cst_11 {dimension_numbers = #tpu.dot_dimension_numbers<[1], [0], [0], [1], [0, 0, 1, 1], [], []>} : vector<32x144xbf16>, vector<144x256xbf16>, vector<32x256xf32> -> vector<32x256xf32>
    %c0_12 = arith.constant 0 : index
    %c0_13 = arith.constant 0 : index
    %47 = vector.load %arg3[%c0_12, %c0_13] : memref<32x1xf32, #tpu.memory_space<vmem>>, vector<32x1xf32>
    %48 = vector.broadcast %47 : vector<32x1xf32> to vector<32x256xf32>
    %49 = arith.addf %46, %48 : vector<32x256xf32>
    %cst_14 = arith.constant 0.000000e+00 : f32
    %50 = vector.broadcast %cst_14 : f32 to vector<32x256xf32>
    %51 = arith.maximumf %49, %50 : vector<32x256xf32>
    %52 = arith.truncf %51 : vector<32x256xf32> to vector<32x256xbf16>
    %cst_15 = arith.constant 0.000000e+00 : bf16
    %53 = vector.broadcast %cst_15 : bf16 to vector<32x128xbf16>
    %54 = tpu.concatenate %53, %52, %53 in 1 : vector<32x128xbf16>, vector<32x256xbf16>, vector<32x128xbf16> -> vector<32x512xbf16>
    %55 = vector.extract_strided_slice %54 {offsets = [0, 111], sizes = [32, 256], strides = [1, 1]} : vector<32x512xbf16> to vector<32x256xbf16>
    %cst_16 = arith.constant 0.000000e+00 : bf16
    %56 = vector.broadcast %cst_16 : bf16 to vector<32x256xbf16>
    %57 = vector.shape_cast %4 : vector<1x256xi1> to vector<1x256xi1>
    %58 = vector.broadcast %57 : vector<1x256xi1> to vector<32x256xi1>
    %59 = arith.select %58, %55, %56 : vector<32x256xi1>, vector<32x256xbf16>
    %60 = vector.extract_strided_slice %54 {offsets = [0, 112], sizes = [32, 256], strides = [1, 1]} : vector<32x512xbf16> to vector<32x256xbf16>
    %61 = vector.extract_strided_slice %54 {offsets = [0, 113], sizes = [32, 256], strides = [1, 1]} : vector<32x512xbf16> to vector<32x256xbf16>
    %cst_17 = arith.constant 0.000000e+00 : bf16
    %62 = vector.broadcast %cst_17 : bf16 to vector<32x256xbf16>
    %63 = vector.shape_cast %6 : vector<1x256xi1> to vector<1x256xi1>
    %64 = vector.broadcast %63 : vector<1x256xi1> to vector<32x256xi1>
    %65 = arith.select %64, %61, %62 : vector<32x256xi1>, vector<32x256xbf16>
    %66 = vector.extract_strided_slice %54 {offsets = [0, 127], sizes = [32, 256], strides = [1, 1]} : vector<32x512xbf16> to vector<32x256xbf16>
    %cst_18 = arith.constant 0.000000e+00 : bf16
    %67 = vector.broadcast %cst_18 : bf16 to vector<32x256xbf16>
    %68 = vector.shape_cast %4 : vector<1x256xi1> to vector<1x256xi1>
    %69 = vector.broadcast %68 : vector<1x256xi1> to vector<32x256xi1>
    %70 = arith.select %69, %66, %67 : vector<32x256xi1>, vector<32x256xbf16>
    %71 = vector.extract_strided_slice %54 {offsets = [0, 129], sizes = [32, 256], strides = [1, 1]} : vector<32x512xbf16> to vector<32x256xbf16>
    %cst_19 = arith.constant 0.000000e+00 : bf16
    %72 = vector.broadcast %cst_19 : bf16 to vector<32x256xbf16>
    %73 = vector.shape_cast %6 : vector<1x256xi1> to vector<1x256xi1>
    %74 = vector.broadcast %73 : vector<1x256xi1> to vector<32x256xi1>
    %75 = arith.select %74, %71, %72 : vector<32x256xi1>, vector<32x256xbf16>
    %76 = vector.extract_strided_slice %54 {offsets = [0, 143], sizes = [32, 256], strides = [1, 1]} : vector<32x512xbf16> to vector<32x256xbf16>
    %cst_20 = arith.constant 0.000000e+00 : bf16
    %77 = vector.broadcast %cst_20 : bf16 to vector<32x256xbf16>
    %78 = vector.shape_cast %4 : vector<1x256xi1> to vector<1x256xi1>
    %79 = vector.broadcast %78 : vector<1x256xi1> to vector<32x256xi1>
    %80 = arith.select %79, %76, %77 : vector<32x256xi1>, vector<32x256xbf16>
    %81 = vector.extract_strided_slice %54 {offsets = [0, 144], sizes = [32, 256], strides = [1, 1]} : vector<32x512xbf16> to vector<32x256xbf16>
    %82 = vector.extract_strided_slice %54 {offsets = [0, 145], sizes = [32, 256], strides = [1, 1]} : vector<32x512xbf16> to vector<32x256xbf16>
    %cst_21 = arith.constant 0.000000e+00 : bf16
    %83 = vector.broadcast %cst_21 : bf16 to vector<32x256xbf16>
    %84 = vector.shape_cast %6 : vector<1x256xi1> to vector<1x256xi1>
    %85 = vector.broadcast %84 : vector<1x256xi1> to vector<32x256xi1>
    %86 = arith.select %85, %82, %83 : vector<32x256xi1>, vector<32x256xbf16>
    %87 = tpu.concatenate %59, %60, %65, %70, %52, %75, %80, %81, %86 in 0 : vector<32x256xbf16>, vector<32x256xbf16>, vector<32x256xbf16>, vector<32x256xbf16>, vector<32x256xbf16>, vector<32x256xbf16>, vector<32x256xbf16>, vector<32x256xbf16>, vector<32x256xbf16> -> vector<288x256xbf16>
    %c0_22 = arith.constant 0 : index
    %c0_23 = arith.constant 0 : index
    %88 = vector.load %arg4[%c0_22, %c0_23] : memref<16x288xbf16, #tpu.memory_space<vmem>>, vector<16x288xbf16>
    %cst_24 = arith.constant dense<0.000000e+00> : vector<16x256xf32>
    %89 = tpu.matmul %88, %87, %cst_24 {dimension_numbers = #tpu.dot_dimension_numbers<[1], [0], [0], [1], [0, 0, 1, 1], [], []>} : vector<16x288xbf16>, vector<288x256xbf16>, vector<16x256xf32> -> vector<16x256xf32>
    %cst_25 = arith.constant 0.000000e+00 : f32
    %90 = vector.broadcast %cst_25 : f32 to vector<16x256xf32>
    %91 = arith.maximumf %89, %90 : vector<16x256xf32>
    %c0_26 = arith.constant 0 : index
    %c0_27 = arith.constant 0 : index
    %92 = vector.load %arg5[%c0_26, %c0_27] : memref<32x16xbf16, #tpu.memory_space<vmem>>, vector<32x16xbf16>
    %93 = arith.truncf %91 : vector<16x256xf32> to vector<16x256xbf16>
    %cst_28 = arith.constant dense<0.000000e+00> : vector<32x256xf32>
    %94 = tpu.matmul %92, %93, %cst_28 {dimension_numbers = #tpu.dot_dimension_numbers<[1], [0], [0], [1], [0, 0, 1, 1], [], []>} : vector<32x16xbf16>, vector<16x256xbf16>, vector<32x256xf32> -> vector<32x256xf32>
    %95 = arith.addf %49, %94 : vector<32x256xf32>
    %cst_29 = arith.constant 0.000000e+00 : f32
    %96 = vector.broadcast %cst_29 : f32 to vector<32x256xf32>
    %97 = arith.maximumf %95, %96 : vector<32x256xf32>
    %98 = arith.truncf %97 : vector<32x256xf32> to vector<32x256xbf16>
    %cst_30 = arith.constant 0.000000e+00 : bf16
    %99 = vector.broadcast %cst_30 : bf16 to vector<32x128xbf16>
    %100 = tpu.concatenate %99, %98, %99 in 1 : vector<32x128xbf16>, vector<32x256xbf16>, vector<32x128xbf16> -> vector<32x512xbf16>
    %101 = vector.extract_strided_slice %100 {offsets = [0, 111], sizes = [32, 256], strides = [1, 1]} : vector<32x512xbf16> to vector<32x256xbf16>
    %cst_31 = arith.constant 0.000000e+00 : bf16
    %102 = vector.broadcast %cst_31 : bf16 to vector<32x256xbf16>
    %103 = vector.shape_cast %4 : vector<1x256xi1> to vector<1x256xi1>
    %104 = vector.broadcast %103 : vector<1x256xi1> to vector<32x256xi1>
    %105 = arith.select %104, %101, %102 : vector<32x256xi1>, vector<32x256xbf16>
    %106 = vector.extract_strided_slice %100 {offsets = [0, 112], sizes = [32, 256], strides = [1, 1]} : vector<32x512xbf16> to vector<32x256xbf16>
    %107 = vector.extract_strided_slice %100 {offsets = [0, 113], sizes = [32, 256], strides = [1, 1]} : vector<32x512xbf16> to vector<32x256xbf16>
    %cst_32 = arith.constant 0.000000e+00 : bf16
    %108 = vector.broadcast %cst_32 : bf16 to vector<32x256xbf16>
    %109 = vector.shape_cast %6 : vector<1x256xi1> to vector<1x256xi1>
    %110 = vector.broadcast %109 : vector<1x256xi1> to vector<32x256xi1>
    %111 = arith.select %110, %107, %108 : vector<32x256xi1>, vector<32x256xbf16>
    %112 = vector.extract_strided_slice %100 {offsets = [0, 127], sizes = [32, 256], strides = [1, 1]} : vector<32x512xbf16> to vector<32x256xbf16>
    %cst_33 = arith.constant 0.000000e+00 : bf16
    %113 = vector.broadcast %cst_33 : bf16 to vector<32x256xbf16>
    %114 = vector.shape_cast %4 : vector<1x256xi1> to vector<1x256xi1>
    %115 = vector.broadcast %114 : vector<1x256xi1> to vector<32x256xi1>
    %116 = arith.select %115, %112, %113 : vector<32x256xi1>, vector<32x256xbf16>
    %117 = vector.extract_strided_slice %100 {offsets = [0, 129], sizes = [32, 256], strides = [1, 1]} : vector<32x512xbf16> to vector<32x256xbf16>
    %cst_34 = arith.constant 0.000000e+00 : bf16
    %118 = vector.broadcast %cst_34 : bf16 to vector<32x256xbf16>
    %119 = vector.shape_cast %6 : vector<1x256xi1> to vector<1x256xi1>
    %120 = vector.broadcast %119 : vector<1x256xi1> to vector<32x256xi1>
    %121 = arith.select %120, %117, %118 : vector<32x256xi1>, vector<32x256xbf16>
    %122 = vector.extract_strided_slice %100 {offsets = [0, 143], sizes = [32, 256], strides = [1, 1]} : vector<32x512xbf16> to vector<32x256xbf16>
    %cst_35 = arith.constant 0.000000e+00 : bf16
    %123 = vector.broadcast %cst_35 : bf16 to vector<32x256xbf16>
    %124 = vector.shape_cast %4 : vector<1x256xi1> to vector<1x256xi1>
    %125 = vector.broadcast %124 : vector<1x256xi1> to vector<32x256xi1>
    %126 = arith.select %125, %122, %123 : vector<32x256xi1>, vector<32x256xbf16>
    %127 = vector.extract_strided_slice %100 {offsets = [0, 144], sizes = [32, 256], strides = [1, 1]} : vector<32x512xbf16> to vector<32x256xbf16>
    %128 = vector.extract_strided_slice %100 {offsets = [0, 145], sizes = [32, 256], strides = [1, 1]} : vector<32x512xbf16> to vector<32x256xbf16>
    %cst_36 = arith.constant 0.000000e+00 : bf16
    %129 = vector.broadcast %cst_36 : bf16 to vector<32x256xbf16>
    %130 = vector.shape_cast %6 : vector<1x256xi1> to vector<1x256xi1>
    %131 = vector.broadcast %130 : vector<1x256xi1> to vector<32x256xi1>
    %132 = arith.select %131, %128, %129 : vector<32x256xi1>, vector<32x256xbf16>
    %133 = tpu.concatenate %105, %106, %111, %116, %98, %121, %126, %127, %132 in 0 : vector<32x256xbf16>, vector<32x256xbf16>, vector<32x256xbf16>, vector<32x256xbf16>, vector<32x256xbf16>, vector<32x256xbf16>, vector<32x256xbf16>, vector<32x256xbf16>, vector<32x256xbf16> -> vector<288x256xbf16>
    %c0_37 = arith.constant 0 : index
    %c0_38 = arith.constant 0 : index
    %134 = vector.load %arg6[%c0_37, %c0_38] : memref<16x288xbf16, #tpu.memory_space<vmem>>, vector<16x288xbf16>
    %cst_39 = arith.constant dense<0.000000e+00> : vector<16x256xf32>
    %135 = tpu.matmul %134, %133, %cst_39 {dimension_numbers = #tpu.dot_dimension_numbers<[1], [0], [0], [1], [0, 0, 1, 1], [], []>} : vector<16x288xbf16>, vector<288x256xbf16>, vector<16x256xf32> -> vector<16x256xf32>
    %cst_40 = arith.constant 0.000000e+00 : f32
    %136 = vector.broadcast %cst_40 : f32 to vector<16x256xf32>
    %137 = arith.maximumf %135, %136 : vector<16x256xf32>
    %c0_41 = arith.constant 0 : index
    %c0_42 = arith.constant 0 : index
    %138 = vector.load %arg7[%c0_41, %c0_42] : memref<32x16xbf16, #tpu.memory_space<vmem>>, vector<32x16xbf16>
    %139 = arith.truncf %137 : vector<16x256xf32> to vector<16x256xbf16>
    %cst_43 = arith.constant dense<0.000000e+00> : vector<32x256xf32>
    %140 = tpu.matmul %138, %139, %cst_43 {dimension_numbers = #tpu.dot_dimension_numbers<[1], [0], [0], [1], [0, 0, 1, 1], [], []>} : vector<32x16xbf16>, vector<16x256xbf16>, vector<32x256xf32> -> vector<32x256xf32>
    %141 = arith.addf %95, %140 : vector<32x256xf32>
    %cst_44 = arith.constant 0.000000e+00 : f32
    %142 = vector.broadcast %cst_44 : f32 to vector<32x256xf32>
    %143 = arith.maximumf %141, %142 : vector<32x256xf32>
    %144 = arith.truncf %143 : vector<32x256xf32> to vector<32x256xbf16>
    %cst_45 = arith.constant 0.000000e+00 : bf16
    %145 = vector.broadcast %cst_45 : bf16 to vector<32x128xbf16>
    %146 = tpu.concatenate %145, %144, %145 in 1 : vector<32x128xbf16>, vector<32x256xbf16>, vector<32x128xbf16> -> vector<32x512xbf16>
    %c0_46 = arith.constant 0 : index
    %c0_47 = arith.constant 0 : index
    %147 = vector.load %arg9[%c0_46, %c0_47] : memref<16x1xf32, #tpu.memory_space<vmem>>, vector<16x1xf32>
    %148 = vector.extract_strided_slice %146 {offsets = [0, 127], sizes = [32, 256], strides = [1, 1]} : vector<32x512xbf16> to vector<32x256xbf16>
    %cst_48 = arith.constant 0.000000e+00 : bf16
    %149 = vector.broadcast %cst_48 : bf16 to vector<32x256xbf16>
    %150 = vector.shape_cast %4 : vector<1x256xi1> to vector<1x256xi1>
    %151 = vector.broadcast %150 : vector<1x256xi1> to vector<32x256xi1>
    %152 = arith.select %151, %148, %149 : vector<32x256xi1>, vector<32x256xbf16>
    %153 = vector.extract_strided_slice %146 {offsets = [0, 112], sizes = [32, 256], strides = [1, 1]} : vector<32x512xbf16> to vector<32x256xbf16>
    %154 = vector.extract_strided_slice %146 {offsets = [0, 111], sizes = [32, 256], strides = [1, 1]} : vector<32x512xbf16> to vector<32x256xbf16>
    %cst_49 = arith.constant 0.000000e+00 : bf16
    %155 = vector.broadcast %cst_49 : bf16 to vector<32x256xbf16>
    %156 = vector.shape_cast %4 : vector<1x256xi1> to vector<1x256xi1>
    %157 = vector.broadcast %156 : vector<1x256xi1> to vector<32x256xi1>
    %158 = arith.select %157, %154, %155 : vector<32x256xi1>, vector<32x256xbf16>
    %159 = tpu.concatenate %144, %152, %153, %158 in 0 : vector<32x256xbf16>, vector<32x256xbf16>, vector<32x256xbf16>, vector<32x256xbf16> -> vector<128x256xbf16>
    %c0_50 = arith.constant 0 : index
    %c0_51 = arith.constant 0 : index
    %c0_52 = arith.constant 0 : index
    %160 = vector.load %arg8[%c0_50, %c0_51, %c0_52] : memref<4x16x128xbf16, #tpu.memory_space<vmem>>, vector<1x16x128xbf16>
    %161 = vector.shape_cast %160 : vector<1x16x128xbf16> to vector<16x128xbf16>
    %cst_53 = arith.constant dense<0.000000e+00> : vector<16x256xf32>
    %162 = tpu.matmul %161, %159, %cst_53 {dimension_numbers = #tpu.dot_dimension_numbers<[1], [0], [0], [1], [0, 0, 1, 1], [], []>} : vector<16x128xbf16>, vector<128x256xbf16>, vector<16x256xf32> -> vector<16x256xf32>
    %163 = vector.broadcast %147 : vector<16x1xf32> to vector<16x256xf32>
    %164 = arith.addf %162, %163 : vector<16x256xf32>
    %165 = arith.truncf %164 : vector<16x256xf32> to vector<16x256xbf16>
    %166 = vector.extract_strided_slice %146 {offsets = [0, 129], sizes = [32, 256], strides = [1, 1]} : vector<32x512xbf16> to vector<32x256xbf16>
    %cst_54 = arith.constant 0.000000e+00 : bf16
    %167 = vector.broadcast %cst_54 : bf16 to vector<32x256xbf16>
    %168 = vector.shape_cast %6 : vector<1x256xi1> to vector<1x256xi1>
    %169 = vector.broadcast %168 : vector<1x256xi1> to vector<32x256xi1>
    %170 = arith.select %169, %166, %167 : vector<32x256xi1>, vector<32x256xbf16>
    %171 = vector.extract_strided_slice %146 {offsets = [0, 113], sizes = [32, 256], strides = [1, 1]} : vector<32x512xbf16> to vector<32x256xbf16>
    %cst_55 = arith.constant 0.000000e+00 : bf16
    %172 = vector.broadcast %cst_55 : bf16 to vector<32x256xbf16>
    %173 = vector.shape_cast %6 : vector<1x256xi1> to vector<1x256xi1>
    %174 = vector.broadcast %173 : vector<1x256xi1> to vector<32x256xi1>
    %175 = arith.select %174, %171, %172 : vector<32x256xi1>, vector<32x256xbf16>
    %176 = vector.extract_strided_slice %146 {offsets = [0, 112], sizes = [32, 256], strides = [1, 1]} : vector<32x512xbf16> to vector<32x256xbf16>
    %177 = tpu.concatenate %170, %144, %175, %176 in 0 : vector<32x256xbf16>, vector<32x256xbf16>, vector<32x256xbf16>, vector<32x256xbf16> -> vector<128x256xbf16>
    %c1 = arith.constant 1 : index
    %c0_56 = arith.constant 0 : index
    %c0_57 = arith.constant 0 : index
    %178 = vector.load %arg8[%c1, %c0_56, %c0_57] : memref<4x16x128xbf16, #tpu.memory_space<vmem>>, vector<1x16x128xbf16>
    %179 = vector.shape_cast %178 : vector<1x16x128xbf16> to vector<16x128xbf16>
    %cst_58 = arith.constant dense<0.000000e+00> : vector<16x256xf32>
    %180 = tpu.matmul %179, %177, %cst_58 {dimension_numbers = #tpu.dot_dimension_numbers<[1], [0], [0], [1], [0, 0, 1, 1], [], []>} : vector<16x128xbf16>, vector<128x256xbf16>, vector<16x256xf32> -> vector<16x256xf32>
    %181 = vector.broadcast %147 : vector<16x1xf32> to vector<16x256xf32>
    %182 = arith.addf %180, %181 : vector<16x256xf32>
    %183 = arith.truncf %182 : vector<16x256xf32> to vector<16x256xbf16>
    %184 = vector.extract_strided_slice %146 {offsets = [0, 144], sizes = [32, 256], strides = [1, 1]} : vector<32x512xbf16> to vector<32x256xbf16>
    %185 = vector.extract_strided_slice %146 {offsets = [0, 143], sizes = [32, 256], strides = [1, 1]} : vector<32x512xbf16> to vector<32x256xbf16>
    %cst_59 = arith.constant 0.000000e+00 : bf16
    %186 = vector.broadcast %cst_59 : bf16 to vector<32x256xbf16>
    %187 = vector.shape_cast %4 : vector<1x256xi1> to vector<1x256xi1>
    %188 = vector.broadcast %187 : vector<1x256xi1> to vector<32x256xi1>
    %189 = arith.select %188, %185, %186 : vector<32x256xi1>, vector<32x256xbf16>
    %190 = vector.extract_strided_slice %146 {offsets = [0, 127], sizes = [32, 256], strides = [1, 1]} : vector<32x512xbf16> to vector<32x256xbf16>
    %cst_60 = arith.constant 0.000000e+00 : bf16
    %191 = vector.broadcast %cst_60 : bf16 to vector<32x256xbf16>
    %192 = vector.shape_cast %4 : vector<1x256xi1> to vector<1x256xi1>
    %193 = vector.broadcast %192 : vector<1x256xi1> to vector<32x256xi1>
    %194 = arith.select %193, %190, %191 : vector<32x256xi1>, vector<32x256xbf16>
    %195 = tpu.concatenate %184, %189, %144, %194 in 0 : vector<32x256xbf16>, vector<32x256xbf16>, vector<32x256xbf16>, vector<32x256xbf16> -> vector<128x256xbf16>
    %c2 = arith.constant 2 : index
    %c0_61 = arith.constant 0 : index
    %c0_62 = arith.constant 0 : index
    %196 = vector.load %arg8[%c2, %c0_61, %c0_62] : memref<4x16x128xbf16, #tpu.memory_space<vmem>>, vector<1x16x128xbf16>
    %197 = vector.shape_cast %196 : vector<1x16x128xbf16> to vector<16x128xbf16>
    %cst_63 = arith.constant dense<0.000000e+00> : vector<16x256xf32>
    %198 = tpu.matmul %197, %195, %cst_63 {dimension_numbers = #tpu.dot_dimension_numbers<[1], [0], [0], [1], [0, 0, 1, 1], [], []>} : vector<16x128xbf16>, vector<128x256xbf16>, vector<16x256xf32> -> vector<16x256xf32>
    %199 = vector.broadcast %147 : vector<16x1xf32> to vector<16x256xf32>
    %200 = arith.addf %198, %199 : vector<16x256xf32>
    %201 = arith.truncf %200 : vector<16x256xf32> to vector<16x256xbf16>
    %202 = vector.extract_strided_slice %146 {offsets = [0, 145], sizes = [32, 256], strides = [1, 1]} : vector<32x512xbf16> to vector<32x256xbf16>
    %cst_64 = arith.constant 0.000000e+00 : bf16
    %203 = vector.broadcast %cst_64 : bf16 to vector<32x256xbf16>
    %204 = vector.shape_cast %6 : vector<1x256xi1> to vector<1x256xi1>
    %205 = vector.broadcast %204 : vector<1x256xi1> to vector<32x256xi1>
    %206 = arith.select %205, %202, %203 : vector<32x256xi1>, vector<32x256xbf16>
    %207 = vector.extract_strided_slice %146 {offsets = [0, 144], sizes = [32, 256], strides = [1, 1]} : vector<32x512xbf16> to vector<32x256xbf16>
    %208 = vector.extract_strided_slice %146 {offsets = [0, 129], sizes = [32, 256], strides = [1, 1]} : vector<32x512xbf16> to vector<32x256xbf16>
    %cst_65 = arith.constant 0.000000e+00 : bf16
    %209 = vector.broadcast %cst_65 : bf16 to vector<32x256xbf16>
    %210 = vector.shape_cast %6 : vector<1x256xi1> to vector<1x256xi1>
    %211 = vector.broadcast %210 : vector<1x256xi1> to vector<32x256xi1>
    %212 = arith.select %211, %208, %209 : vector<32x256xi1>, vector<32x256xbf16>
    %213 = tpu.concatenate %206, %207, %212, %144 in 0 : vector<32x256xbf16>, vector<32x256xbf16>, vector<32x256xbf16>, vector<32x256xbf16> -> vector<128x256xbf16>
    %c3 = arith.constant 3 : index
    %c0_66 = arith.constant 0 : index
    %c0_67 = arith.constant 0 : index
    %214 = vector.load %arg8[%c3, %c0_66, %c0_67] : memref<4x16x128xbf16, #tpu.memory_space<vmem>>, vector<1x16x128xbf16>
    %215 = vector.shape_cast %214 : vector<1x16x128xbf16> to vector<16x128xbf16>
    %cst_68 = arith.constant dense<0.000000e+00> : vector<16x256xf32>
    %216 = tpu.matmul %215, %213, %cst_68 {dimension_numbers = #tpu.dot_dimension_numbers<[1], [0], [0], [1], [0, 0, 1, 1], [], []>} : vector<16x128xbf16>, vector<128x256xbf16>, vector<16x256xf32> -> vector<16x256xf32>
    %217 = vector.broadcast %147 : vector<16x1xf32> to vector<16x256xf32>
    %218 = arith.addf %216, %217 : vector<16x256xf32>
    %219 = arith.truncf %218 : vector<16x256xf32> to vector<16x256xbf16>
    %cst_69 = arith.constant 0.000000e+00 : bf16
    %220 = vector.broadcast %cst_69 : bf16 to vector<16x128xbf16>
    %221 = tpu.concatenate %220, %165, %220 in 1 : vector<16x128xbf16>, vector<16x256xbf16>, vector<16x128xbf16> -> vector<16x512xbf16>
    %cst_70 = arith.constant 0.000000e+00 : bf16
    %222 = vector.broadcast %cst_70 : bf16 to vector<16x128xbf16>
    %223 = tpu.concatenate %222, %183, %222 in 1 : vector<16x128xbf16>, vector<16x256xbf16>, vector<16x128xbf16> -> vector<16x512xbf16>
    %cst_71 = arith.constant 0.000000e+00 : bf16
    %224 = vector.broadcast %cst_71 : bf16 to vector<16x128xbf16>
    %225 = tpu.concatenate %224, %201, %224 in 1 : vector<16x128xbf16>, vector<16x256xbf16>, vector<16x128xbf16> -> vector<16x512xbf16>
    %cst_72 = arith.constant 0.000000e+00 : bf16
    %226 = vector.broadcast %cst_72 : bf16 to vector<16x128xbf16>
    %227 = tpu.concatenate %226, %219, %226 in 1 : vector<16x128xbf16>, vector<16x256xbf16>, vector<16x128xbf16> -> vector<16x512xbf16>
    %c0_73 = arith.constant 0 : index
    %c0_74 = arith.constant 0 : index
    %228 = vector.load %arg11[%c0_73, %c0_74] : memref<3x1xf32, #tpu.memory_space<vmem>>, vector<3x1xf32>
    %229 = vector.extract_strided_slice %223 {offsets = [0, 127], sizes = [16, 256], strides = [1, 1]} : vector<16x512xbf16> to vector<16x256xbf16>
    %cst_75 = arith.constant 0.000000e+00 : bf16
    %230 = vector.broadcast %cst_75 : bf16 to vector<16x256xbf16>
    %231 = vector.shape_cast %4 : vector<1x256xi1> to vector<1x256xi1>
    %232 = vector.broadcast %231 : vector<1x256xi1> to vector<16x256xi1>
    %233 = arith.select %232, %229, %230 : vector<16x256xi1>, vector<16x256xbf16>
    %234 = vector.extract_strided_slice %225 {offsets = [0, 112], sizes = [16, 256], strides = [1, 1]} : vector<16x512xbf16> to vector<16x256xbf16>
    %235 = vector.extract_strided_slice %227 {offsets = [0, 111], sizes = [16, 256], strides = [1, 1]} : vector<16x512xbf16> to vector<16x256xbf16>
    %cst_76 = arith.constant 0.000000e+00 : bf16
    %236 = vector.broadcast %cst_76 : bf16 to vector<16x256xbf16>
    %237 = vector.shape_cast %4 : vector<1x256xi1> to vector<1x256xi1>
    %238 = vector.broadcast %237 : vector<1x256xi1> to vector<16x256xi1>
    %239 = arith.select %238, %235, %236 : vector<16x256xi1>, vector<16x256xbf16>
    %240 = tpu.concatenate %165, %233, %234, %239 in 0 : vector<16x256xbf16>, vector<16x256xbf16>, vector<16x256xbf16>, vector<16x256xbf16> -> vector<64x256xbf16>
    %c0_77 = arith.constant 0 : index
    %c0_78 = arith.constant 0 : index
    %c0_79 = arith.constant 0 : index
    %241 = vector.load %arg10[%c0_77, %c0_78, %c0_79] : memref<16x3x64xbf16, #tpu.memory_space<vmem>>, vector<1x3x64xbf16>
    %242 = vector.shape_cast %241 : vector<1x3x64xbf16> to vector<3x64xbf16>
    %cst_80 = arith.constant dense<0.000000e+00> : vector<3x256xf32>
    %243 = tpu.matmul %242, %240, %cst_80 {dimension_numbers = #tpu.dot_dimension_numbers<[1], [0], [0], [1], [0, 0, 1, 1], [], []>} : vector<3x64xbf16>, vector<64x256xbf16>, vector<3x256xf32> -> vector<3x256xf32>
    %244 = vector.broadcast %228 : vector<3x1xf32> to vector<3x256xf32>
    %245 = arith.addf %243, %244 : vector<3x256xf32>
    %c0_81 = arith.constant 0 : index
    %c0_82 = arith.constant 0 : index
    %c0_83 = arith.constant 0 : index
    %c0_84 = arith.constant 0 : index
    %246 = vector.load %arg12[%c0_81, %c0_82, %c0_83, %c0_84] : memref<1x16x3x256xf32, #tpu.memory_space<vmem>>, vector<1x1x3x256xf32>
    %247 = vector.shape_cast %246 : vector<1x1x3x256xf32> to vector<3x256xf32>
    %248 = vector.shape_cast %245 : vector<3x256xf32> to vector<1x1x3x256xf32>
    tpu.vector_store %arg12[%c0_81, %c0_82, %c0_83, %c0_84], %248 {strides = array<i32>} : memref<1x16x3x256xf32, #tpu.memory_space<vmem>>, vector<1x1x3x256xf32>,
    %249 = vector.extract_strided_slice %227 {offsets = [0, 112], sizes = [16, 256], strides = [1, 1]} : vector<16x512xbf16> to vector<16x256xbf16>
    %250 = tpu.concatenate %183, %165, %249, %234 in 0 : vector<16x256xbf16>, vector<16x256xbf16>, vector<16x256xbf16>, vector<16x256xbf16> -> vector<64x256xbf16>
    %c1_85 = arith.constant 1 : index
    %c0_86 = arith.constant 0 : index
    %c0_87 = arith.constant 0 : index
    %251 = vector.load %arg10[%c1_85, %c0_86, %c0_87] : memref<16x3x64xbf16, #tpu.memory_space<vmem>>, vector<1x3x64xbf16>
    %252 = vector.shape_cast %251 : vector<1x3x64xbf16> to vector<3x64xbf16>
    %cst_88 = arith.constant dense<0.000000e+00> : vector<3x256xf32>
    %253 = tpu.matmul %252, %250, %cst_88 {dimension_numbers = #tpu.dot_dimension_numbers<[1], [0], [0], [1], [0, 0, 1, 1], [], []>} : vector<3x64xbf16>, vector<64x256xbf16>, vector<3x256xf32> -> vector<3x256xf32>
    %254 = vector.broadcast %228 : vector<3x1xf32> to vector<3x256xf32>
    %255 = arith.addf %253, %254 : vector<3x256xf32>
    %c0_89 = arith.constant 0 : index
    %c1_90 = arith.constant 1 : index
    %c0_91 = arith.constant 0 : index
    %c0_92 = arith.constant 0 : index
    %256 = vector.load %arg12[%c0_89, %c1_90, %c0_91, %c0_92] : memref<1x16x3x256xf32, #tpu.memory_space<vmem>>, vector<1x1x3x256xf32>
    %257 = vector.shape_cast %256 : vector<1x1x3x256xf32> to vector<3x256xf32>
    %258 = vector.shape_cast %255 : vector<3x256xf32> to vector<1x1x3x256xf32>
    tpu.vector_store %arg12[%c0_89, %c1_90, %c0_91, %c0_92], %258 {strides = array<i32>} : memref<1x16x3x256xf32, #tpu.memory_space<vmem>>, vector<1x1x3x256xf32>,
    %259 = tpu.concatenate %183, %165, %249, %234 in 0 : vector<16x256xbf16>, vector<16x256xbf16>, vector<16x256xbf16>, vector<16x256xbf16> -> vector<64x256xbf16>
    %c2_93 = arith.constant 2 : index
    %c0_94 = arith.constant 0 : index
    %c0_95 = arith.constant 0 : index
    %260 = vector.load %arg10[%c2_93, %c0_94, %c0_95] : memref<16x3x64xbf16, #tpu.memory_space<vmem>>, vector<1x3x64xbf16>
    %261 = vector.shape_cast %260 : vector<1x3x64xbf16> to vector<3x64xbf16>
    %cst_96 = arith.constant dense<0.000000e+00> : vector<3x256xf32>
    %262 = tpu.matmul %261, %259, %cst_96 {dimension_numbers = #tpu.dot_dimension_numbers<[1], [0], [0], [1], [0, 0, 1, 1], [], []>} : vector<3x64xbf16>, vector<64x256xbf16>, vector<3x256xf32> -> vector<3x256xf32>
    %263 = vector.broadcast %228 : vector<3x1xf32> to vector<3x256xf32>
    %264 = arith.addf %262, %263 : vector<3x256xf32>
    %c0_97 = arith.constant 0 : index
    %c2_98 = arith.constant 2 : index
    %c0_99 = arith.constant 0 : index
    %c0_100 = arith.constant 0 : index
    %265 = vector.load %arg12[%c0_97, %c2_98, %c0_99, %c0_100] : memref<1x16x3x256xf32, #tpu.memory_space<vmem>>, vector<1x1x3x256xf32>
    %266 = vector.shape_cast %265 : vector<1x1x3x256xf32> to vector<3x256xf32>
    %267 = vector.shape_cast %264 : vector<3x256xf32> to vector<1x1x3x256xf32>
    tpu.vector_store %arg12[%c0_97, %c2_98, %c0_99, %c0_100], %267 {strides = array<i32>} : memref<1x16x3x256xf32, #tpu.memory_space<vmem>>, vector<1x1x3x256xf32>,
    %268 = vector.extract_strided_slice %221 {offsets = [0, 129], sizes = [16, 256], strides = [1, 1]} : vector<16x512xbf16> to vector<16x256xbf16>
    %cst_101 = arith.constant 0.000000e+00 : bf16
    %269 = vector.broadcast %cst_101 : bf16 to vector<16x256xbf16>
    %270 = vector.shape_cast %6 : vector<1x256xi1> to vector<1x256xi1>
    %271 = vector.broadcast %270 : vector<1x256xi1> to vector<16x256xi1>
    %272 = arith.select %271, %268, %269 : vector<16x256xi1>, vector<16x256xbf16>
    %273 = vector.extract_strided_slice %225 {offsets = [0, 113], sizes = [16, 256], strides = [1, 1]} : vector<16x512xbf16> to vector<16x256xbf16>
    %cst_102 = arith.constant 0.000000e+00 : bf16
    %274 = vector.broadcast %cst_102 : bf16 to vector<16x256xbf16>
    %275 = vector.shape_cast %6 : vector<1x256xi1> to vector<1x256xi1>
    %276 = vector.broadcast %275 : vector<1x256xi1> to vector<16x256xi1>
    %277 = arith.select %276, %273, %274 : vector<16x256xi1>, vector<16x256xbf16>
    %278 = tpu.concatenate %272, %183, %277, %249 in 0 : vector<16x256xbf16>, vector<16x256xbf16>, vector<16x256xbf16>, vector<16x256xbf16> -> vector<64x256xbf16>
    %c3_103 = arith.constant 3 : index
    %c0_104 = arith.constant 0 : index
    %c0_105 = arith.constant 0 : index
    %279 = vector.load %arg10[%c3_103, %c0_104, %c0_105] : memref<16x3x64xbf16, #tpu.memory_space<vmem>>, vector<1x3x64xbf16>
    %280 = vector.shape_cast %279 : vector<1x3x64xbf16> to vector<3x64xbf16>
    %cst_106 = arith.constant dense<0.000000e+00> : vector<3x256xf32>
    %281 = tpu.matmul %280, %278, %cst_106 {dimension_numbers = #tpu.dot_dimension_numbers<[1], [0], [0], [1], [0, 0, 1, 1], [], []>} : vector<3x64xbf16>, vector<64x256xbf16>, vector<3x256xf32> -> vector<3x256xf32>
    %282 = vector.broadcast %228 : vector<3x1xf32> to vector<3x256xf32>
    %283 = arith.addf %281, %282 : vector<3x256xf32>
    %c0_107 = arith.constant 0 : index
    %c3_108 = arith.constant 3 : index
    %c0_109 = arith.constant 0 : index
    %c0_110 = arith.constant 0 : index
    %284 = vector.load %arg12[%c0_107, %c3_108, %c0_109, %c0_110] : memref<1x16x3x256xf32, #tpu.memory_space<vmem>>, vector<1x1x3x256xf32>
    %285 = vector.shape_cast %284 : vector<1x1x3x256xf32> to vector<3x256xf32>
    %286 = vector.shape_cast %283 : vector<3x256xf32> to vector<1x1x3x256xf32>
    tpu.vector_store %arg12[%c0_107, %c3_108, %c0_109, %c0_110], %286 {strides = array<i32>} : memref<1x16x3x256xf32, #tpu.memory_space<vmem>>, vector<1x1x3x256xf32>,
    %287 = vector.extract_strided_slice %227 {offsets = [0, 127], sizes = [16, 256], strides = [1, 1]} : vector<16x512xbf16> to vector<16x256xbf16>
    %cst_111 = arith.constant 0.000000e+00 : bf16
    %288 = vector.broadcast %cst_111 : bf16 to vector<16x256xbf16>
    %289 = vector.shape_cast %4 : vector<1x256xi1> to vector<1x256xi1>
    %290 = vector.broadcast %289 : vector<1x256xi1> to vector<16x256xi1>
    %291 = arith.select %290, %287, %288 : vector<16x256xi1>, vector<16x256xbf16>
    %292 = tpu.concatenate %201, %291, %165, %233 in 0 : vector<16x256xbf16>, vector<16x256xbf16>, vector<16x256xbf16>, vector<16x256xbf16> -> vector<64x256xbf16>
    %c4 = arith.constant 4 : index
    %c0_112 = arith.constant 0 : index
    %c0_113 = arith.constant 0 : index
    %293 = vector.load %arg10[%c4, %c0_112, %c0_113] : memref<16x3x64xbf16, #tpu.memory_space<vmem>>, vector<1x3x64xbf16>
    %294 = vector.shape_cast %293 : vector<1x3x64xbf16> to vector<3x64xbf16>
    %cst_114 = arith.constant dense<0.000000e+00> : vector<3x256xf32>
    %295 = tpu.matmul %294, %292, %cst_114 {dimension_numbers = #tpu.dot_dimension_numbers<[1], [0], [0], [1], [0, 0, 1, 1], [], []>} : vector<3x64xbf16>, vector<64x256xbf16>, vector<3x256xf32> -> vector<3x256xf32>
    %296 = vector.broadcast %228 : vector<3x1xf32> to vector<3x256xf32>
    %297 = arith.addf %295, %296 : vector<3x256xf32>
    %c0_115 = arith.constant 0 : index
    %c4_116 = arith.constant 4 : index
    %c0_117 = arith.constant 0 : index
    %c0_118 = arith.constant 0 : index
    %298 = vector.load %arg12[%c0_115, %c4_116, %c0_117, %c0_118] : memref<1x16x3x256xf32, #tpu.memory_space<vmem>>, vector<1x1x3x256xf32>
    %299 = vector.shape_cast %298 : vector<1x1x3x256xf32> to vector<3x256xf32>
    %300 = vector.shape_cast %297 : vector<3x256xf32> to vector<1x1x3x256xf32>
    tpu.vector_store %arg12[%c0_115, %c4_116, %c0_117, %c0_118], %300 {strides = array<i32>} : memref<1x16x3x256xf32, #tpu.memory_space<vmem>>, vector<1x1x3x256xf32>,
    %301 = tpu.concatenate %219, %201, %183, %165 in 0 : vector<16x256xbf16>, vector<16x256xbf16>, vector<16x256xbf16>, vector<16x256xbf16> -> vector<64x256xbf16>
    %c5 = arith.constant 5 : index
    %c0_119 = arith.constant 0 : index
    %c0_120 = arith.constant 0 : index
    %302 = vector.load %arg10[%c5, %c0_119, %c0_120] : memref<16x3x64xbf16, #tpu.memory_space<vmem>>, vector<1x3x64xbf16>
    %303 = vector.shape_cast %302 : vector<1x3x64xbf16> to vector<3x64xbf16>
    %cst_121 = arith.constant dense<0.000000e+00> : vector<3x256xf32>
    %304 = tpu.matmul %303, %301, %cst_121 {dimension_numbers = #tpu.dot_dimension_numbers<[1], [0], [0], [1], [0, 0, 1, 1], [], []>} : vector<3x64xbf16>, vector<64x256xbf16>, vector<3x256xf32> -> vector<3x256xf32>
    %305 = vector.broadcast %228 : vector<3x1xf32> to vector<3x256xf32>
    %306 = arith.addf %304, %305 : vector<3x256xf32>
    %c0_122 = arith.constant 0 : index
    %c5_123 = arith.constant 5 : index
    %c0_124 = arith.constant 0 : index
    %c0_125 = arith.constant 0 : index
    %307 = vector.load %arg12[%c0_122, %c5_123, %c0_124, %c0_125] : memref<1x16x3x256xf32, #tpu.memory_space<vmem>>, vector<1x1x3x256xf32>
    %308 = vector.shape_cast %307 : vector<1x1x3x256xf32> to vector<3x256xf32>
    %309 = vector.shape_cast %306 : vector<3x256xf32> to vector<1x1x3x256xf32>
    tpu.vector_store %arg12[%c0_122, %c5_123, %c0_124, %c0_125], %309 {strides = array<i32>} : memref<1x16x3x256xf32, #tpu.memory_space<vmem>>, vector<1x1x3x256xf32>,
    %310 = tpu.concatenate %219, %201, %183, %165 in 0 : vector<16x256xbf16>, vector<16x256xbf16>, vector<16x256xbf16>, vector<16x256xbf16> -> vector<64x256xbf16>
    %c6 = arith.constant 6 : index
    %c0_126 = arith.constant 0 : index
    %c0_127 = arith.constant 0 : index
    %311 = vector.load %arg10[%c6, %c0_126, %c0_127] : memref<16x3x64xbf16, #tpu.memory_space<vmem>>, vector<1x3x64xbf16>
    %312 = vector.shape_cast %311 : vector<1x3x64xbf16> to vector<3x64xbf16>
    %cst_128 = arith.constant dense<0.000000e+00> : vector<3x256xf32>
    %313 = tpu.matmul %312, %310, %cst_128 {dimension_numbers = #tpu.dot_dimension_numbers<[1], [0], [0], [1], [0, 0, 1, 1], [], []>} : vector<3x64xbf16>, vector<64x256xbf16>, vector<3x256xf32> -> vector<3x256xf32>
    %314 = vector.broadcast %228 : vector<3x1xf32> to vector<3x256xf32>
    %315 = arith.addf %313, %314 : vector<3x256xf32>
    %c0_129 = arith.constant 0 : index
    %c6_130 = arith.constant 6 : index
    %c0_131 = arith.constant 0 : index
    %c0_132 = arith.constant 0 : index
    %316 = vector.load %arg12[%c0_129, %c6_130, %c0_131, %c0_132] : memref<1x16x3x256xf32, #tpu.memory_space<vmem>>, vector<1x1x3x256xf32>
    %317 = vector.shape_cast %316 : vector<1x1x3x256xf32> to vector<3x256xf32>
    %318 = vector.shape_cast %315 : vector<3x256xf32> to vector<1x1x3x256xf32>
    tpu.vector_store %arg12[%c0_129, %c6_130, %c0_131, %c0_132], %318 {strides = array<i32>} : memref<1x16x3x256xf32, #tpu.memory_space<vmem>>, vector<1x1x3x256xf32>,
    %319 = vector.extract_strided_slice %225 {offsets = [0, 129], sizes = [16, 256], strides = [1, 1]} : vector<16x512xbf16> to vector<16x256xbf16>
    %cst_133 = arith.constant 0.000000e+00 : bf16
    %320 = vector.broadcast %cst_133 : bf16 to vector<16x256xbf16>
    %321 = vector.shape_cast %6 : vector<1x256xi1> to vector<1x256xi1>
    %322 = vector.broadcast %321 : vector<1x256xi1> to vector<16x256xi1>
    %323 = arith.select %322, %319, %320 : vector<16x256xi1>, vector<16x256xbf16>
    %324 = tpu.concatenate %323, %219, %272, %183 in 0 : vector<16x256xbf16>, vector<16x256xbf16>, vector<16x256xbf16>, vector<16x256xbf16> -> vector<64x256xbf16>
    %c7 = arith.constant 7 : index
    %c0_134 = arith.constant 0 : index
    %c0_135 = arith.constant 0 : index
    %325 = vector.load %arg10[%c7, %c0_134, %c0_135] : memref<16x3x64xbf16, #tpu.memory_space<vmem>>, vector<1x3x64xbf16>
    %326 = vector.shape_cast %325 : vector<1x3x64xbf16> to vector<3x64xbf16>
    %cst_136 = arith.constant dense<0.000000e+00> : vector<3x256xf32>
    %327 = tpu.matmul %326, %324, %cst_136 {dimension_numbers = #tpu.dot_dimension_numbers<[1], [0], [0], [1], [0, 0, 1, 1], [], []>} : vector<3x64xbf16>, vector<64x256xbf16>, vector<3x256xf32> -> vector<3x256xf32>
    %328 = vector.broadcast %228 : vector<3x1xf32> to vector<3x256xf32>
    %329 = arith.addf %327, %328 : vector<3x256xf32>
    %c0_137 = arith.constant 0 : index
    %c7_138 = arith.constant 7 : index
    %c0_139 = arith.constant 0 : index
    %c0_140 = arith.constant 0 : index
    %330 = vector.load %arg12[%c0_137, %c7_138, %c0_139, %c0_140] : memref<1x16x3x256xf32, #tpu.memory_space<vmem>>, vector<1x1x3x256xf32>
    %331 = vector.shape_cast %330 : vector<1x1x3x256xf32> to vector<3x256xf32>
    %332 = vector.shape_cast %329 : vector<3x256xf32> to vector<1x1x3x256xf32>
    tpu.vector_store %arg12[%c0_137, %c7_138, %c0_139, %c0_140], %332 {strides = array<i32>} : memref<1x16x3x256xf32, #tpu.memory_space<vmem>>, vector<1x1x3x256xf32>,
    %333 = tpu.concatenate %201, %291, %165, %233 in 0 : vector<16x256xbf16>, vector<16x256xbf16>, vector<16x256xbf16>, vector<16x256xbf16> -> vector<64x256xbf16>
    %c8 = arith.constant 8 : index
    %c0_141 = arith.constant 0 : index
    %c0_142 = arith.constant 0 : index
    %334 = vector.load %arg10[%c8, %c0_141, %c0_142] : memref<16x3x64xbf16, #tpu.memory_space<vmem>>, vector<1x3x64xbf16>
    %335 = vector.shape_cast %334 : vector<1x3x64xbf16> to vector<3x64xbf16>
    %cst_143 = arith.constant dense<0.000000e+00> : vector<3x256xf32>
    %336 = tpu.matmul %335, %333, %cst_143 {dimension_numbers = #tpu.dot_dimension_numbers<[1], [0], [0], [1], [0, 0, 1, 1], [], []>} : vector<3x64xbf16>, vector<64x256xbf16>, vector<3x256xf32> -> vector<3x256xf32>
    %337 = vector.broadcast %228 : vector<3x1xf32> to vector<3x256xf32>
    %338 = arith.addf %336, %337 : vector<3x256xf32>
    %c0_144 = arith.constant 0 : index
    %c8_145 = arith.constant 8 : index
    %c0_146 = arith.constant 0 : index
    %c0_147 = arith.constant 0 : index
    %339 = vector.load %arg12[%c0_144, %c8_145, %c0_146, %c0_147] : memref<1x16x3x256xf32, #tpu.memory_space<vmem>>, vector<1x1x3x256xf32>
    %340 = vector.shape_cast %339 : vector<1x1x3x256xf32> to vector<3x256xf32>
    %341 = vector.shape_cast %338 : vector<3x256xf32> to vector<1x1x3x256xf32>
    tpu.vector_store %arg12[%c0_144, %c8_145, %c0_146, %c0_147], %341 {strides = array<i32>} : memref<1x16x3x256xf32, #tpu.memory_space<vmem>>, vector<1x1x3x256xf32>,
    %342 = tpu.concatenate %219, %201, %183, %165 in 0 : vector<16x256xbf16>, vector<16x256xbf16>, vector<16x256xbf16>, vector<16x256xbf16> -> vector<64x256xbf16>
    %c9 = arith.constant 9 : index
    %c0_148 = arith.constant 0 : index
    %c0_149 = arith.constant 0 : index
    %343 = vector.load %arg10[%c9, %c0_148, %c0_149] : memref<16x3x64xbf16, #tpu.memory_space<vmem>>, vector<1x3x64xbf16>
    %344 = vector.shape_cast %343 : vector<1x3x64xbf16> to vector<3x64xbf16>
    %cst_150 = arith.constant dense<0.000000e+00> : vector<3x256xf32>
    %345 = tpu.matmul %344, %342, %cst_150 {dimension_numbers = #tpu.dot_dimension_numbers<[1], [0], [0], [1], [0, 0, 1, 1], [], []>} : vector<3x64xbf16>, vector<64x256xbf16>, vector<3x256xf32> -> vector<3x256xf32>
    %346 = vector.broadcast %228 : vector<3x1xf32> to vector<3x256xf32>
    %347 = arith.addf %345, %346 : vector<3x256xf32>
    %c0_151 = arith.constant 0 : index
    %c9_152 = arith.constant 9 : index
    %c0_153 = arith.constant 0 : index
    %c0_154 = arith.constant 0 : index
    %348 = vector.load %arg12[%c0_151, %c9_152, %c0_153, %c0_154] : memref<1x16x3x256xf32, #tpu.memory_space<vmem>>, vector<1x1x3x256xf32>
    %349 = vector.shape_cast %348 : vector<1x1x3x256xf32> to vector<3x256xf32>
    %350 = vector.shape_cast %347 : vector<3x256xf32> to vector<1x1x3x256xf32>
    tpu.vector_store %arg12[%c0_151, %c9_152, %c0_153, %c0_154], %350 {strides = array<i32>} : memref<1x16x3x256xf32, #tpu.memory_space<vmem>>, vector<1x1x3x256xf32>,
    %351 = tpu.concatenate %219, %201, %183, %165 in 0 : vector<16x256xbf16>, vector<16x256xbf16>, vector<16x256xbf16>, vector<16x256xbf16> -> vector<64x256xbf16>
    %c10 = arith.constant 10 : index
    %c0_155 = arith.constant 0 : index
    %c0_156 = arith.constant 0 : index
    %352 = vector.load %arg10[%c10, %c0_155, %c0_156] : memref<16x3x64xbf16, #tpu.memory_space<vmem>>, vector<1x3x64xbf16>
    %353 = vector.shape_cast %352 : vector<1x3x64xbf16> to vector<3x64xbf16>
    %cst_157 = arith.constant dense<0.000000e+00> : vector<3x256xf32>
    %354 = tpu.matmul %353, %351, %cst_157 {dimension_numbers = #tpu.dot_dimension_numbers<[1], [0], [0], [1], [0, 0, 1, 1], [], []>} : vector<3x64xbf16>, vector<64x256xbf16>, vector<3x256xf32> -> vector<3x256xf32>
    %355 = vector.broadcast %228 : vector<3x1xf32> to vector<3x256xf32>
    %356 = arith.addf %354, %355 : vector<3x256xf32>
    %c0_158 = arith.constant 0 : index
    %c10_159 = arith.constant 10 : index
    %c0_160 = arith.constant 0 : index
    %c0_161 = arith.constant 0 : index
    %357 = vector.load %arg12[%c0_158, %c10_159, %c0_160, %c0_161] : memref<1x16x3x256xf32, #tpu.memory_space<vmem>>, vector<1x1x3x256xf32>
    %358 = vector.shape_cast %357 : vector<1x1x3x256xf32> to vector<3x256xf32>
    %359 = vector.shape_cast %356 : vector<3x256xf32> to vector<1x1x3x256xf32>
    tpu.vector_store %arg12[%c0_158, %c10_159, %c0_160, %c0_161], %359 {strides = array<i32>} : memref<1x16x3x256xf32, #tpu.memory_space<vmem>>, vector<1x1x3x256xf32>,
    %360 = tpu.concatenate %323, %219, %272, %183 in 0 : vector<16x256xbf16>, vector<16x256xbf16>, vector<16x256xbf16>, vector<16x256xbf16> -> vector<64x256xbf16>
    %c11 = arith.constant 11 : index
    %c0_162 = arith.constant 0 : index
    %c0_163 = arith.constant 0 : index
    %361 = vector.load %arg10[%c11, %c0_162, %c0_163] : memref<16x3x64xbf16, #tpu.memory_space<vmem>>, vector<1x3x64xbf16>
    %362 = vector.shape_cast %361 : vector<1x3x64xbf16> to vector<3x64xbf16>
    %cst_164 = arith.constant dense<0.000000e+00> : vector<3x256xf32>
    %363 = tpu.matmul %362, %360, %cst_164 {dimension_numbers = #tpu.dot_dimension_numbers<[1], [0], [0], [1], [0, 0, 1, 1], [], []>} : vector<3x64xbf16>, vector<64x256xbf16>, vector<3x256xf32> -> vector<3x256xf32>
    %364 = vector.broadcast %228 : vector<3x1xf32> to vector<3x256xf32>
    %365 = arith.addf %363, %364 : vector<3x256xf32>
    %c0_165 = arith.constant 0 : index
    %c11_166 = arith.constant 11 : index
    %c0_167 = arith.constant 0 : index
    %c0_168 = arith.constant 0 : index
    %366 = vector.load %arg12[%c0_165, %c11_166, %c0_167, %c0_168] : memref<1x16x3x256xf32, #tpu.memory_space<vmem>>, vector<1x1x3x256xf32>
    %367 = vector.shape_cast %366 : vector<1x1x3x256xf32> to vector<3x256xf32>
    %368 = vector.shape_cast %365 : vector<3x256xf32> to vector<1x1x3x256xf32>
    tpu.vector_store %arg12[%c0_165, %c11_166, %c0_167, %c0_168], %368 {strides = array<i32>} : memref<1x16x3x256xf32, #tpu.memory_space<vmem>>, vector<1x1x3x256xf32>,
    %369 = vector.extract_strided_slice %221 {offsets = [0, 144], sizes = [16, 256], strides = [1, 1]} : vector<16x512xbf16> to vector<16x256xbf16>
    %370 = vector.extract_strided_slice %223 {offsets = [0, 143], sizes = [16, 256], strides = [1, 1]} : vector<16x512xbf16> to vector<16x256xbf16>
    %cst_169 = arith.constant 0.000000e+00 : bf16
    %371 = vector.broadcast %cst_169 : bf16 to vector<16x256xbf16>
    %372 = vector.shape_cast %4 : vector<1x256xi1> to vector<1x256xi1>
    %373 = vector.broadcast %372 : vector<1x256xi1> to vector<16x256xi1>
    %374 = arith.select %373, %370, %371 : vector<16x256xi1>, vector<16x256xbf16>
    %375 = tpu.concatenate %369, %374, %201, %291 in 0 : vector<16x256xbf16>, vector<16x256xbf16>, vector<16x256xbf16>, vector<16x256xbf16> -> vector<64x256xbf16>
    %c12 = arith.constant 12 : index
    %c0_170 = arith.constant 0 : index
    %c0_171 = arith.constant 0 : index
    %376 = vector.load %arg10[%c12, %c0_170, %c0_171] : memref<16x3x64xbf16, #tpu.memory_space<vmem>>, vector<1x3x64xbf16>
    %377 = vector.shape_cast %376 : vector<1x3x64xbf16> to vector<3x64xbf16>
    %cst_172 = arith.constant dense<0.000000e+00> : vector<3x256xf32>
    %378 = tpu.matmul %377, %375, %cst_172 {dimension_numbers = #tpu.dot_dimension_numbers<[1], [0], [0], [1], [0, 0, 1, 1], [], []>} : vector<3x64xbf16>, vector<64x256xbf16>, vector<3x256xf32> -> vector<3x256xf32>
    %379 = vector.broadcast %228 : vector<3x1xf32> to vector<3x256xf32>
    %380 = arith.addf %378, %379 : vector<3x256xf32>
    %c0_173 = arith.constant 0 : index
    %c12_174 = arith.constant 12 : index
    %c0_175 = arith.constant 0 : index
    %c0_176 = arith.constant 0 : index
    %381 = vector.load %arg12[%c0_173, %c12_174, %c0_175, %c0_176] : memref<1x16x3x256xf32, #tpu.memory_space<vmem>>, vector<1x1x3x256xf32>
    %382 = vector.shape_cast %381 : vector<1x1x3x256xf32> to vector<3x256xf32>
    %383 = vector.shape_cast %380 : vector<3x256xf32> to vector<1x1x3x256xf32>
    tpu.vector_store %arg12[%c0_173, %c12_174, %c0_175, %c0_176], %383 {strides = array<i32>} : memref<1x16x3x256xf32, #tpu.memory_space<vmem>>, vector<1x1x3x256xf32>,
    %384 = vector.extract_strided_slice %223 {offsets = [0, 144], sizes = [16, 256], strides = [1, 1]} : vector<16x512xbf16> to vector<16x256xbf16>
    %385 = tpu.concatenate %384, %369, %219, %201 in 0 : vector<16x256xbf16>, vector<16x256xbf16>, vector<16x256xbf16>, vector<16x256xbf16> -> vector<64x256xbf16>
    %c13 = arith.constant 13 : index
    %c0_177 = arith.constant 0 : index
    %c0_178 = arith.constant 0 : index
    %386 = vector.load %arg10[%c13, %c0_177, %c0_178] : memref<16x3x64xbf16, #tpu.memory_space<vmem>>, vector<1x3x64xbf16>
    %387 = vector.shape_cast %386 : vector<1x3x64xbf16> to vector<3x64xbf16>
    %cst_179 = arith.constant dense<0.000000e+00> : vector<3x256xf32>
    %388 = tpu.matmul %387, %385, %cst_179 {dimension_numbers = #tpu.dot_dimension_numbers<[1], [0], [0], [1], [0, 0, 1, 1], [], []>} : vector<3x64xbf16>, vector<64x256xbf16>, vector<3x256xf32> -> vector<3x256xf32>
    %389 = vector.broadcast %228 : vector<3x1xf32> to vector<3x256xf32>
    %390 = arith.addf %388, %389 : vector<3x256xf32>
    %c0_180 = arith.constant 0 : index
    %c13_181 = arith.constant 13 : index
    %c0_182 = arith.constant 0 : index
    %c0_183 = arith.constant 0 : index
    %391 = vector.load %arg12[%c0_180, %c13_181, %c0_182, %c0_183] : memref<1x16x3x256xf32, #tpu.memory_space<vmem>>, vector<1x1x3x256xf32>
    %392 = vector.shape_cast %391 : vector<1x1x3x256xf32> to vector<3x256xf32>
    %393 = vector.shape_cast %390 : vector<3x256xf32> to vector<1x1x3x256xf32>
    tpu.vector_store %arg12[%c0_180, %c13_181, %c0_182, %c0_183], %393 {strides = array<i32>} : memref<1x16x3x256xf32, #tpu.memory_space<vmem>>, vector<1x1x3x256xf32>,
    %394 = tpu.concatenate %384, %369, %219, %201 in 0 : vector<16x256xbf16>, vector<16x256xbf16>, vector<16x256xbf16>, vector<16x256xbf16> -> vector<64x256xbf16>
    %c14 = arith.constant 14 : index
    %c0_184 = arith.constant 0 : index
    %c0_185 = arith.constant 0 : index
    %395 = vector.load %arg10[%c14, %c0_184, %c0_185] : memref<16x3x64xbf16, #tpu.memory_space<vmem>>, vector<1x3x64xbf16>
    %396 = vector.shape_cast %395 : vector<1x3x64xbf16> to vector<3x64xbf16>
    %cst_186 = arith.constant dense<0.000000e+00> : vector<3x256xf32>
    %397 = tpu.matmul %396, %394, %cst_186 {dimension_numbers = #tpu.dot_dimension_numbers<[1], [0], [0], [1], [0, 0, 1, 1], [], []>} : vector<3x64xbf16>, vector<64x256xbf16>, vector<3x256xf32> -> vector<3x256xf32>
    %398 = vector.broadcast %228 : vector<3x1xf32> to vector<3x256xf32>
    %399 = arith.addf %397, %398 : vector<3x256xf32>
    %c0_187 = arith.constant 0 : index
    %c14_188 = arith.constant 14 : index
    %c0_189 = arith.constant 0 : index
    %c0_190 = arith.constant 0 : index
    %400 = vector.load %arg12[%c0_187, %c14_188, %c0_189, %c0_190] : memref<1x16x3x256xf32, #tpu.memory_space<vmem>>, vector<1x1x3x256xf32>
    %401 = vector.shape_cast %400 : vector<1x1x3x256xf32> to vector<3x256xf32>
    %402 = vector.shape_cast %399 : vector<3x256xf32> to vector<1x1x3x256xf32>
    tpu.vector_store %arg12[%c0_187, %c14_188, %c0_189, %c0_190], %402 {strides = array<i32>} : memref<1x16x3x256xf32, #tpu.memory_space<vmem>>, vector<1x1x3x256xf32>,
    %403 = vector.extract_strided_slice %221 {offsets = [0, 145], sizes = [16, 256], strides = [1, 1]} : vector<16x512xbf16> to vector<16x256xbf16>
    %cst_191 = arith.constant 0.000000e+00 : bf16
    %404 = vector.broadcast %cst_191 : bf16 to vector<16x256xbf16>
    %405 = vector.shape_cast %6 : vector<1x256xi1> to vector<1x256xi1>
    %406 = vector.broadcast %405 : vector<1x256xi1> to vector<16x256xi1>
    %407 = arith.select %406, %403, %404 : vector<16x256xi1>, vector<16x256xbf16>
    %408 = tpu.concatenate %407, %384, %323, %219 in 0 : vector<16x256xbf16>, vector<16x256xbf16>, vector<16x256xbf16>, vector<16x256xbf16> -> vector<64x256xbf16>
    %c15 = arith.constant 15 : index
    %c0_192 = arith.constant 0 : index
    %c0_193 = arith.constant 0 : index
    %409 = vector.load %arg10[%c15, %c0_192, %c0_193] : memref<16x3x64xbf16, #tpu.memory_space<vmem>>, vector<1x3x64xbf16>
    %410 = vector.shape_cast %409 : vector<1x3x64xbf16> to vector<3x64xbf16>
    %cst_194 = arith.constant dense<0.000000e+00> : vector<3x256xf32>
    %411 = tpu.matmul %410, %408, %cst_194 {dimension_numbers = #tpu.dot_dimension_numbers<[1], [0], [0], [1], [0, 0, 1, 1], [], []>} : vector<3x64xbf16>, vector<64x256xbf16>, vector<3x256xf32> -> vector<3x256xf32>
    %412 = vector.broadcast %228 : vector<3x1xf32> to vector<3x256xf32>
    %413 = arith.addf %411, %412 : vector<3x256xf32>
    %c0_195 = arith.constant 0 : index
    %c15_196 = arith.constant 15 : index
    %c0_197 = arith.constant 0 : index
    %c0_198 = arith.constant 0 : index
    %414 = vector.load %arg12[%c0_195, %c15_196, %c0_197, %c0_198] : memref<1x16x3x256xf32, #tpu.memory_space<vmem>>, vector<1x1x3x256xf32>
    %415 = vector.shape_cast %414 : vector<1x1x3x256xf32> to vector<3x256xf32>
    %416 = vector.shape_cast %413 : vector<3x256xf32> to vector<1x1x3x256xf32>
    tpu.vector_store %arg12[%c0_195, %c15_196, %c0_197, %c0_198], %416 {strides = array<i32>} : memref<1x16x3x256xf32, #tpu.memory_space<vmem>>, vector<1x1x3x256xf32>,
    return
  }
  func.func @transform_0(%arg0: i32) -> (i32, i32, i32) {
    %c0_i32 = arith.constant 0 : i32
    %c0_i32_0 = arith.constant 0 : i32
    %c0_i32_1 = arith.constant 0 : i32
    return %arg0, %c0_i32, %c0_i32_0 : i32, i32, i32
  }
  func.func @transform_1(%arg0: i32) -> (i32, i32) {
    %c0_i32 = arith.constant 0 : i32
    %c0_i32_0 = arith.constant 0 : i32
    %c0_i32_1 = arith.constant 0 : i32
    return %c0_i32, %c0_i32_0 : i32, i32
  }
  func.func @transform_2(%arg0: i32) -> (i32, i32) {
    %c0_i32 = arith.constant 0 : i32
    %c0_i32_0 = arith.constant 0 : i32
    %c0_i32_1 = arith.constant 0 : i32
    return %c0_i32, %c0_i32_0 : i32, i32
  }
  func.func @transform_3(%arg0: i32) -> (i32, i32) {
    %c0_i32 = arith.constant 0 : i32
    %c0_i32_0 = arith.constant 0 : i32
    %c0_i32_1 = arith.constant 0 : i32
    return %c0_i32, %c0_i32_0 : i32, i32
  }
  func.func @transform_4(%arg0: i32) -> (i32, i32) {
    %c0_i32 = arith.constant 0 : i32
    %c0_i32_0 = arith.constant 0 : i32
    %c0_i32_1 = arith.constant 0 : i32
    return %c0_i32, %c0_i32_0 : i32, i32
  }
  func.func @transform_5(%arg0: i32) -> (i32, i32) {
    %c0_i32 = arith.constant 0 : i32
    %c0_i32_0 = arith.constant 0 : i32
    %c0_i32_1 = arith.constant 0 : i32
    return %c0_i32, %c0_i32_0 : i32, i32
  }
  func.func @transform_6(%arg0: i32) -> (i32, i32) {
    %c0_i32 = arith.constant 0 : i32
    %c0_i32_0 = arith.constant 0 : i32
    %c0_i32_1 = arith.constant 0 : i32
    return %c0_i32, %c0_i32_0 : i32, i32
  }
  func.func @transform_7(%arg0: i32) -> (i32, i32, i32) {
    %c0_i32 = arith.constant 0 : i32
    %c0_i32_0 = arith.constant 0 : i32
    %c0_i32_1 = arith.constant 0 : i32
    %c0_i32_2 = arith.constant 0 : i32
    return %c0_i32, %c0_i32_0, %c0_i32_1 : i32, i32, i32
  }
  func.func @transform_8(%arg0: i32) -> (i32, i32) {
    %c0_i32 = arith.constant 0 : i32
    %c0_i32_0 = arith.constant 0 : i32
    %c0_i32_1 = arith.constant 0 : i32
    return %c0_i32, %c0_i32_0 : i32, i32
  }
  func.func @transform_9(%arg0: i32) -> (i32, i32, i32) {
    %c0_i32 = arith.constant 0 : i32
    %c0_i32_0 = arith.constant 0 : i32
    %c0_i32_1 = arith.constant 0 : i32
    %c0_i32_2 = arith.constant 0 : i32
    return %c0_i32, %c0_i32_0, %c0_i32_1 : i32, i32, i32
  }
  func.func @transform_10(%arg0: i32) -> (i32, i32) {
    %c0_i32 = arith.constant 0 : i32
    %c0_i32_0 = arith.constant 0 : i32
    %c0_i32_1 = arith.constant 0 : i32
    return %c0_i32, %c0_i32_0 : i32, i32
  }
  func.func @transform_11(%arg0: i32) -> (i32, i32, i32, i32) {
    %c0_i32 = arith.constant 0 : i32
    %c0_i32_0 = arith.constant 0 : i32
    %c0_i32_1 = arith.constant 0 : i32
    %c0_i32_2 = arith.constant 0 : i32
    return %arg0, %c0_i32, %c0_i32_0, %c0_i32_1 : i32, i32, i32, i32
  }
}

</mosaic_0001>

<llo_original>
// kernel: _lambda_.1
$region0: #{_lambda_.1}
  #allocation0 [shape = 'u32[]', space=smem, size = 0x4, offset = 0x4, fixed_abs, tag = 'smem constant byte address 0x4 - core index']
  #allocation1 [shape = 'u32[144,128]{1,0:T(1,128)}', space=vmem, size = 0x12000, scoped, tag = 'internal scratch']
  %s0 = inlined_call_operand.vmem [shape: f32[2,16,256], index: 0, kind: input, shape index: {}]
  %s1 = inlined_call_operand.hbm [shape: bf16[32,144], index: 1, kind: input, shape index: {}]
  %s2 = inlined_call_operand.hbm [shape: f32[32,1], index: 2, kind: input, shape index: {}]
  %s3 = inlined_call_operand.hbm [shape: bf16[16,288], index: 3, kind: input, shape index: {}]
  %s4 = inlined_call_operand.hbm [shape: bf16[32,16], index: 4, kind: input, shape index: {}]
  %s5 = inlined_call_operand.hbm [shape: bf16[16,288], index: 5, kind: input, shape index: {}]
  %s6 = inlined_call_operand.hbm [shape: bf16[32,16], index: 6, kind: input, shape index: {}]
  %s7 = inlined_call_operand.hbm [shape: bf16[4,16,128], index: 7, kind: input, shape index: {}]
  %s8 = inlined_call_operand.hbm [shape: f32[16,1], index: 8, kind: input, shape index: {}]
  %s9 = inlined_call_operand.hbm [shape: bf16[16,3,64], index: 9, kind: input, shape index: {}]
  %s10 = inlined_call_operand.hbm [shape: f32[3,1], index: 10, kind: input, shape index: {}]
  %s11 = inlined_call_operand.vmem [shape: f32[2,16,3,256], index: 11, kind: output, shape index: {}]
  %s12 = sld [smem:[#allocation0]]
  $region117: #{_lambda_.1} parent=0
    _
  %s14 = ssub.s32 1, %s12
  %s15 = scalar_select 0, %s14, %s12
  $region1: #{_lambda_.1} parent=0
    #allocation2 [shape = 'u8[16384]{0}', space=vmem, size = 0x4000, scoped, tag = 'input window, operand 1, single buffered']
    #allocation3 [shape = 's32[2]{0}', space=sflag, size = 0x8, scoped, tag = 'scoped memory for _lambda_.1']
    #allocation4 [shape = 'u8[16384]{0}', space=vmem, size = 0x4000, scoped, tag = 'input window, operand 2, single buffered']
    #allocation5 [shape = 's32[1]{0}', space=sflag, size = 0x4, scoped, tag = 'scoped memory for _lambda_.1']
    #allocation6 [shape = 'u8[12288]{0}', space=vmem, size = 0x3000, scoped, tag = 'input window, operand 3, single buffered']
    #allocation7 [shape = 'u8[8192]{0}', space=vmem, size = 0x2000, scoped, tag = 'input window, operand 4, single buffered']
    #allocation8 [shape = 's32[1]{0}', space=sflag, size = 0x4, scoped, tag = 'scoped memory for _lambda_.1']
    #allocation9 [shape = 'u8[12288]{0}', space=vmem, size = 0x3000, scoped, tag = 'input window, operand 5, single buffered']
    #allocation10 [shape = 'u8[8192]{0}', space=vmem, size = 0x2000, scoped, tag = 'input window, operand 6, single buffered']
    #allocation11 [shape = 's32[1]{0}', space=sflag, size = 0x4, scoped, tag = 'scoped memory for _lambda_.1']
    #allocation12 [shape = 'u8[16384]{0}', space=vmem, size = 0x4000, scoped, tag = 'input window, operand 7, single buffered']
    #allocation13 [shape = 'u8[8192]{0}', space=vmem, size = 0x2000, scoped, tag = 'input window, operand 8, single buffered']
    #allocation14 [shape = 's32[1]{0}', space=sflag, size = 0x4, scoped, tag = 'scoped memory for _lambda_.1']
    #allocation15 [shape = 'u8[16384]{0}', space=vmem, size = 0x4000, scoped, tag = 'input window, operand 9, single buffered']
    #allocation16 [shape = 'u8[2048]{0}', space=vmem, size = 0x800, scoped, tag = 'input window, operand 10, single buffered']
    #allocation17 [shape = 's32[1]{0}', space=sflag, size = 0x4, scoped, tag = 'scoped memory for _lambda_.1']
    %16 = vsyncpa [#allocation3], 0
    %17 = vsyncpa [#allocation5], 0
    %18 = vsyncpa [#allocation8], 0
    %19 = vsyncpa [#allocation11], 0
    %20 = vsyncpa [#allocation14], 0
    %21 = vsyncpa [#allocation17], 0
    loop: start=0, step=1, limit=4
    $region2: #{_lambda_.1} parent=1 // loop_pre_header
      _
    $region3: #{_lambda_.1} parent=1 // loop_header
      %s23 = sphi 0, %s27
      %p24 = scmp.ge.s32.totalorder %s23, 4
      %s33 = sphi 0, %s35
      %s36 = sphi 0, %s33
      %s37 = sphi 0, %s36
      %s53 = sphi 0, %s37
      %s57 = sphi 0, %s57
      %s59 = sphi 0, %s57
      %s60 = sphi 0, %s59
      %s74 = sphi 0, %s60
      %s78 = sphi 0, %s78
      %s80 = sphi 0, %s78
      %s81 = sphi 0, %s80
      %s95 = sphi 0, %s81
      %s99 = sphi 0, %s99
      %s101 = sphi 0, %s99
      %s102 = sphi 0, %s101
      %s116 = sphi 0, %s102
      %s120 = sphi 0, %s120
      %s122 = sphi 0, %s120
      %s123 = sphi 0, %s122
      %s137 = sphi 0, %s123
      %s141 = sphi 0, %s141
      %s143 = sphi 0, %s141
      %s144 = sphi 0, %s143
      %s158 = sphi 0, %s144
      %s162 = sphi 0, %s162
      %s164 = sphi 0, %s162
      %s165 = sphi 0, %s164
      %s179 = sphi 0, %s165
      %s183 = sphi 0, %s183
      %s185 = sphi 0, %s183
      %s186 = sphi 0, %s185
      %s200 = sphi 0, %s186
      %s204 = sphi 0, %s204
      %s206 = sphi 0, %s204
      %s207 = sphi 0, %s206
      %s221 = sphi 0, %s207
      %s225 = sphi 0, %s225
      %s227 = sphi 0, %s225
      %s228 = sphi 0, %s227
      %s242 = sphi 0, %s228
      %s246 = sphi 0, %s246
      %s248 = sphi 0, %s246
      %s249 = sphi 0, %s248
      %s263 = sphi 0, %s249
      %s269 = sphi 0, %s271
      %s272 = sphi 0, %s269
      %s273 = sphi 0, %s272
      %s289 = sphi 0, %s273
    $region4: #{_lambda_.1} parent=1 // loop_header_branch
      %26 = sbr.rel (%p24) target = $region8
    $region5: #{_lambda_.1} parent=1 // loop_body
      %s28 = ssub.s32 %s23, 1
      %s29 = ssub.s32 %s23, 2
      %s30 = sadd.s32 %s23, 1
      %s31 = ssub.s32 %s23, %s30
      %p32 = scmp.eq.s32.totalorder %s31, 0
      %s34 = sadd.s32 %s33, 1
      %s35 = scalar_select %p32, %s33, %s34
      %p38 = pneg %p32
      %p39 = scmp.eq.s32.totalorder %s23, 1
      %p40 = por %p38, %p39
      %p41 = scmp.ne.s32.totalorder %s33, %s36
      %p42 = scmp.eq.s32.totalorder %s23, 0
      %p43 = por %p41, %p42
      %p44 = scmp.ne.s32.totalorder %s33, %s36
      %p45 = scmp.eq.s32.totalorder %s28, 1
      %p46 = por %p44, %p45
      %p47 = scmp.ne.s32.totalorder %s36, %s37
      %p48 = scmp.eq.s32.totalorder %s28, 0
      %p49 = por %p47, %p48
      %p50 = scmp.ne.s32.totalorder %s36, %s37
      %p51 = scmp.eq.s32.totalorder %s29, 1
      %p52 = por %p50, %p51
      %p54 = scmp.ne.s32.totalorder %s37, %s53
      %p55 = scmp.eq.s32.totalorder %s29, 0
      %p56 = por %p54, %p55
      %s58 = sadd.s32 %s57, 1
      %p61 = scmp.eq.s32.totalorder %s23, 1
      %p62 = scmp.ne.s32.totalorder %s57, %s59
      %p63 = scmp.eq.s32.totalorder %s23, 0
      %p64 = por %p62, %p63
      %p65 = scmp.ne.s32.totalorder %s57, %s59
      %p66 = scmp.eq.s32.totalorder %s28, 1
      %p67 = por %p65, %p66
      %p68 = scmp.ne.s32.totalorder %s59, %s60
      %p69 = scmp.eq.s32.totalorder %s28, 0
      %p70 = por %p68, %p69
      %p71 = scmp.ne.s32.totalorder %s59, %s60
      %p72 = scmp.eq.s32.totalorder %s29, 1
      %p73 = por %p71, %p72
      %p75 = scmp.ne.s32.totalorder %s60, %s74
      %p76 = scmp.eq.s32.totalorder %s29, 0
      %p77 = por %p75, %p76
      %s79 = sadd.s32 %s78, 1
      %p82 = scmp.eq.s32.totalorder %s23, 1
      %p83 = scmp.ne.s32.totalorder %s78, %s80
      %p84 = scmp.eq.s32.totalorder %s23, 0
      %p85 = por %p83, %p84
      %p86 = scmp.ne.s32.totalorder %s78, %s80
      %p87 = scmp.eq.s32.totalorder %s28, 1
      %p88 = por %p86, %p87
      %p89 = scmp.ne.s32.totalorder %s80, %s81
      %p90 = scmp.eq.s32.totalorder %s28, 0
      %p91 = por %p89, %p90
      %p92 = scmp.ne.s32.totalorder %s80, %s81
      %p93 = scmp.eq.s32.totalorder %s29, 1
      %p94 = por %p92, %p93
      %p96 = scmp.ne.s32.totalorder %s81, %s95
      %p97 = scmp.eq.s32.totalorder %s29, 0
      %p98 = por %p96, %p97
      %s100 = sadd.s32 %s99, 1
      %p103 = scmp.eq.s32.totalorder %s23, 1
      %p104 = scmp.ne.s32.totalorder %s99, %s101
      %p105 = scmp.eq.s32.totalorder %s23, 0
      %p106 = por %p104, %p105
      %p107 = scmp.ne.s32.totalorder %s99, %s101
      %p108 = scmp.eq.s32.totalorder %s28, 1
      %p109 = por %p107, %p108
      %p110 = scmp.ne.s32.totalorder %s101, %s102
      %p111 = scmp.eq.s32.totalorder %s28, 0
      %p112 = por %p110, %p111
      %p113 = scmp.ne.s32.totalorder %s101, %s102
      %p114 = scmp.eq.s32.totalorder %s29, 1
      %p115 = por %p113, %p114
      %p117 = scmp.ne.s32.totalorder %s102, %s116
      %p118 = scmp.eq.s32.totalorder %s29, 0
      %p119 = por %p117, %p118
      %s121 = sadd.s32 %s120, 1
      %p124 = scmp.eq.s32.totalorder %s23, 1
      %p125 = scmp.ne.s32.totalorder %s120, %s122
      %p126 = scmp.eq.s32.totalorder %s23, 0
      %p127 = por %p125, %p126
      %p128 = scmp.ne.s32.totalorder %s120, %s122
      %p129 = scmp.eq.s32.totalorder %s28, 1
      %p130 = por %p128, %p129
      %p131 = scmp.ne.s32.totalorder %s122, %s123
      %p132 = scmp.eq.s32.totalorder %s28, 0
      %p133 = por %p131, %p132
      %p134 = scmp.ne.s32.totalorder %s122, %s123
      %p135 = scmp.eq.s32.totalorder %s29, 1
      %p136 = por %p134, %p135
      %p138 = scmp.ne.s32.totalorder %s123, %s137
      %p139 = scmp.eq.s32.totalorder %s29, 0
      %p140 = por %p138, %p139
      %s142 = sadd.s32 %s141, 1
      %p145 = scmp.eq.s32.totalorder %s23, 1
      %p146 = scmp.ne.s32.totalorder %s141, %s143
      %p147 = scmp.eq.s32.totalorder %s23, 0
      %p148 = por %p146, %p147
      %p149 = scmp.ne.s32.totalorder %s141, %s143
      %p150 = scmp.eq.s32.totalorder %s28, 1
      %p151 = por %p149, %p150
      %p152 = scmp.ne.s32.totalorder %s143, %s144
      %p153 = scmp.eq.s32.totalorder %s28, 0
      %p154 = por %p152, %p153
      %p155 = scmp.ne.s32.totalorder %s143, %s144
      %p156 = scmp.eq.s32.totalorder %s29, 1
      %p157 = por %p155, %p156
      %p159 = scmp.ne.s32.totalorder %s144, %s158
      %p160 = scmp.eq.s32.totalorder %s29, 0
      %p161 = por %p159, %p160
      %s163 = sadd.s32 %s162, 1
      %p166 = scmp.eq.s32.totalorder %s23, 1
      %p167 = scmp.ne.s32.totalorder %s162, %s164
      %p168 = scmp.eq.s32.totalorder %s23, 0
      %p169 = por %p167, %p168
      %p170 = scmp.ne.s32.totalorder %s162, %s164
      %p171 = scmp.eq.s32.totalorder %s28, 1
      %p172 = por %p170, %p171
      %p173 = scmp.ne.s32.totalorder %s164, %s165
      %p174 = scmp.eq.s32.totalorder %s28, 0
      %p175 = por %p173, %p174
      %p176 = scmp.ne.s32.totalorder %s164, %s165
      %p177 = scmp.eq.s32.totalorder %s29, 1
      %p178 = por %p176, %p177
      %p180 = scmp.ne.s32.totalorder %s165, %s179
      %p181 = scmp.eq.s32.totalorder %s29, 0
      %p182 = por %p180, %p181
      %s184 = sadd.s32 %s183, 1
      %p187 = scmp.eq.s32.totalorder %s23, 1
      %p188 = scmp.ne.s32.totalorder %s183, %s185
      %p189 = scmp.eq.s32.totalorder %s23, 0
      %p190 = por %p188, %p189
      %p191 = scmp.ne.s32.totalorder %s183, %s185
      %p192 = scmp.eq.s32.totalorder %s28, 1
      %p193 = por %p191, %p192
      %p194 = scmp.ne.s32.totalorder %s185, %s186
      %p195 = scmp.eq.s32.totalorder %s28, 0
      %p196 = por %p194, %p195
      %p197 = scmp.ne.s32.totalorder %s185, %s186
      %p198 = scmp.eq.s32.totalorder %s29, 1
      %p199 = por %p197, %p198
      %p201 = scmp.ne.s32.totalorder %s186, %s200
      %p202 = scmp.eq.s32.totalorder %s29, 0
      %p203 = por %p201, %p202
      %s205 = sadd.s32 %s204, 1
      %p208 = scmp.eq.s32.totalorder %s23, 1
      %p209 = scmp.ne.s32.totalorder %s204, %s206
      %p210 = scmp.eq.s32.totalorder %s23, 0
      %p211 = por %p209, %p210
      %p212 = scmp.ne.s32.totalorder %s204, %s206
      %p213 = scmp.eq.s32.totalorder %s28, 1
      %p214 = por %p212, %p213
      %p215 = scmp.ne.s32.totalorder %s206, %s207
      %p216 = scmp.eq.s32.totalorder %s28, 0
      %p217 = por %p215, %p216
      %p218 = scmp.ne.s32.totalorder %s206, %s207
      %p219 = scmp.eq.s32.totalorder %s29, 1
      %p220 = por %p218, %p219
      %p222 = scmp.ne.s32.totalorder %s207, %s221
      %p223 = scmp.eq.s32.totalorder %s29, 0
      %p224 = por %p222, %p223
      %s226 = sadd.s32 %s225, 1
      %p229 = scmp.eq.s32.totalorder %s23, 1
      %p230 = scmp.ne.s32.totalorder %s225, %s227
      %p231 = scmp.eq.s32.totalorder %s23, 0
      %p232 = por %p230, %p231
      %p233 = scmp.ne.s32.totalorder %s225, %s227
      %p234 = scmp.eq.s32.totalorder %s28, 1
      %p235 = por %p233, %p234
      %p236 = scmp.ne.s32.totalorder %s227, %s228
      %p237 = scmp.eq.s32.totalorder %s28, 0
      %p238 = por %p236, %p237
      %p239 = scmp.ne.s32.totalorder %s227, %s228
      %p240 = scmp.eq.s32.totalorder %s29, 1
      %p241 = por %p239, %p240
      %p243 = scmp.ne.s32.totalorder %s228, %s242
      %p244 = scmp.eq.s32.totalorder %s29, 0
      %p245 = por %p243, %p244
      %s247 = sadd.s32 %s246, 1
      %p250 = scmp.eq.s32.totalorder %s23, 1
      %p251 = scmp.ne.s32.totalorder %s246, %s248
      %p252 = scmp.eq.s32.totalorder %s23, 0
      %p253 = por %p251, %p252
      %p254 = scmp.ne.s32.totalorder %s246, %s248
      %p255 = scmp.eq.s32.totalorder %s28, 1
      %p256 = por %p254, %p255
      %p257 = scmp.ne.s32.totalorder %s248, %s249
      %p258 = scmp.eq.s32.totalorder %s28, 0
      %p259 = por %p257, %p258
      %p260 = scmp.ne.s32.totalorder %s248, %s249
      %p261 = scmp.eq.s32.totalorder %s29, 1
      %p262 = por %p260, %p261
      %p264 = scmp.ne.s32.totalorder %s249, %s263
      %p265 = scmp.eq.s32.totalorder %s29, 0
      %p266 = por %p264, %p265
      %s267 = ssub.s32 %s23, %s30
      %p268 = scmp.eq.s32.totalorder %s267, 0
      %s270 = sadd.s32 %s269, 1
      %s271 = scalar_select %p268, %s269, %s270
      %p274 = pneg %p268
      %p275 = scmp.eq.s32.totalorder %s23, 1
      %p276 = por %p274, %p275
      %p277 = scmp.ne.s32.totalorder %s269, %s272
      %p278 = scmp.eq.s32.totalorder %s23, 0
      %p279 = por %p277, %p278
      %p280 = scmp.ne.s32.totalorder %s269, %s272
      %p281 = scmp.eq.s32.totalorder %s28, 1
      %p282 = por %p280, %p281
      %p283 = scmp.ne.s32.totalorder %s272, %s273
      %p284 = scmp.eq.s32.totalorder %s28, 0
      %p285 = por %p283, %p284
      %p286 = scmp.ne.s32.totalorder %s272, %s273
      %p287 = scmp.eq.s32.totalorder %s29, 1
      %p288 = por %p286, %p287
      %p290 = scmp.ne.s32.totalorder %s273, %s289
      %p291 = scmp.eq.s32.totalorder %s29, 0
      %p292 = por %p290, %p291
      %p293 = scmp.le.s32.totalorder 1, %s23
      %p294 = scmp.lt.s32.totalorder %s23, 3
      %p295 = pnand %p293, %p294
      %p296 = pneg %p295
      // Predicated region
      $region9: #{_lambda_.1} parent=5 // pred_check
        _
      $region10: #{_lambda_.1} parent=5 // pred_check_branch
        %298 = sbr.rel (%p295) target = $region12
      $region11: #{_lambda_.1} parent=5 // pred_region
        %s299 = ssub.s32 %s23, 1
        // Predicated region
        $region13: #{_lambda_.1} parent=11 // pred_check
          %p300 = pneg %p70
        $region14: #{_lambda_.1} parent=11 // pred_check_branch
          %302 = sbr.rel (%p300) target = $region16
        $region15: #{_lambda_.1} parent=11 // pred_region
          %s304 = ssub.s32 512, 512
          %305 = vsyncadd [#allocation3], %s304
          %s306 = sshll.u32 [#allocation2], 4
          %s307 = int_to_ptr.vmem [resolvable:$true] %s306
          %312 = dma.hbm_to_vmem [thread:$0]  %s1, 512, %s307, [#allocation3], 128, 128, 8
        $region16: #{_lambda_.1} parent=11 // pred_fallthru
          _
        // Predicated region
        $region17: #{_lambda_.1} parent=11 // pred_check
          %p313 = pneg %p91
        $region18: #{_lambda_.1} parent=11 // pred_check_branch
          %315 = sbr.rel (%p313) target = $region20
        $region19: #{_lambda_.1} parent=11 // pred_region
          %s317 = ssub.s32 512, 512
          %318 = vsyncadd [#allocation5], %s317
          %s319 = sshll.u32 [#allocation4], 4
          %s320 = int_to_ptr.vmem [resolvable:$true] %s319
          %325 = dma.hbm_to_vmem [thread:$0]  %s2, 512, %s320, [#allocation5], 128, 128, 8
        $region20: #{_lambda_.1} parent=11 // pred_fallthru
          _
        // Predicated region
        $region21: #{_lambda_.1} parent=11 // pred_check
          %p326 = pneg %p112
        $region22: #{_lambda_.1} parent=11 // pred_check_branch
          %328 = sbr.rel (%p326) target = $region24
        $region23: #{_lambda_.1} parent=11 // pred_region
          %s330 = ssub.s32 384, 384
          %331 = vsyncadd [#allocation5], %s330
          %s332 = sshll.u32 [#allocation6], 4
          %s333 = int_to_ptr.vmem [resolvable:$true] %s332
          %338 = dma.hbm_to_vmem [thread:$0]  %s3, 384, %s333, [#allocation5], 192, 192, 12
        $region24: #{_lambda_.1} parent=11 // pred_fallthru
          _
        // Predicated region
        $region25: #{_lambda_.1} parent=11 // pred_check
          %p339 = pneg %p133
        $region26: #{_lambda_.1} parent=11 // pred_check_branch
          %341 = sbr.rel (%p339) target = $region28
        $region27: #{_lambda_.1} parent=11 // pred_region
          %s343 = ssub.s32 256, 256
          %344 = vsyncadd [#allocation8], %s343
          %s345 = sshll.u32 [#allocation7], 4
          %s346 = int_to_ptr.vmem [resolvable:$true] %s345
          %351 = dma.hbm_to_vmem [thread:$0]  %s4, 256, %s346, [#allocation8], 64, 64, 4
        $region28: #{_lambda_.1} parent=11 // pred_fallthru
          _
        // Predicated region
        $region29: #{_lambda_.1} parent=11 // pred_check
          %p352 = pneg %p154
        $region30: #{_lambda_.1} parent=11 // pred_check_branch
          %354 = sbr.rel (%p352) target = $region32
        $region31: #{_lambda_.1} parent=11 // pred_region
          %s356 = ssub.s32 384, 384
          %357 = vsyncadd [#allocation8], %s356
          %s358 = sshll.u32 [#allocation9], 4
          %s359 = int_to_ptr.vmem [resolvable:$true] %s358
          %364 = dma.hbm_to_vmem [thread:$0]  %s5, 384, %s359, [#allocation8], 192, 192, 12
        $region32: #{_lambda_.1} parent=11 // pred_fallthru
          _
        // Predicated region
        $region33: #{_lambda_.1} parent=11 // pred_check
          %p365 = pneg %p175
        $region34: #{_lambda_.1} parent=11 // pred_check_branch
          %367 = sbr.rel (%p365) target = $region36
        $region35: #{_lambda_.1} parent=11 // pred_region
          %s369 = ssub.s32 256, 256
          %370 = vsyncadd [#allocation11], %s369
          %s371 = sshll.u32 [#allocation10], 4
          %s372 = int_to_ptr.vmem [resolvable:$true] %s371
          %377 = dma.hbm_to_vmem [thread:$0]  %s6, 256, %s372, [#allocation11], 64, 64, 4
        $region36: #{_lambda_.1} parent=11 // pred_fallthru
          _
        // Predicated region
        $region37: #{_lambda_.1} parent=11 // pred_check
          %p378 = pneg %p196
        $region38: #{_lambda_.1} parent=11 // pred_check_branch
          %380 = sbr.rel (%p378) target = $region40
        $region39: #{_lambda_.1} parent=11 // pred_region
          %s382 = ssub.s32 512, 512
          %383 = vsyncadd [#allocation11], %s382
          %s384 = sshll.u32 [#allocation12], 4
          %s385 = int_to_ptr.vmem [resolvable:$true] %s384
          %390 = dma.hbm_to_vmem [thread:$0]  %s7, 512, %s385, [#allocation11], 64, 64, 4
        $region40: #{_lambda_.1} parent=11 // pred_fallthru
          _
        // Predicated region
        $region41: #{_lambda_.1} parent=11 // pred_check
          %p391 = pneg %p217
        $region42: #{_lambda_.1} parent=11 // pred_check_branch
          %393 = sbr.rel (%p391) target = $region44
        $region43: #{_lambda_.1} parent=11 // pred_region
          %s395 = ssub.s32 256, 256
          %396 = vsyncadd [#allocation14], %s395
          %s397 = sshll.u32 [#allocation13], 4
          %s398 = int_to_ptr.vmem [resolvable:$true] %s397
          %403 = dma.hbm_to_vmem [thread:$0]  %s8, 256, %s398, [#allocation14], 128, 128, 8
        $region44: #{_lambda_.1} parent=11 // pred_fallthru
          _
        // Predicated region
        $region45: #{_lambda_.1} parent=11 // pred_check
          %p404 = pneg %p238
        $region46: #{_lambda_.1} parent=11 // pred_check_branch
          %406 = sbr.rel (%p404) target = $region48
        $region47: #{_lambda_.1} parent=11 // pred_region
          %s408 = ssub.s32 512, 512
          %409 = vsyncadd [#allocation14], %s408
          %s410 = sshll.u32 [#allocation15], 4
          %s411 = int_to_ptr.vmem [resolvable:$true] %s410
          %416 = dma.hbm_to_vmem [thread:$0]  %s9, 512, %s411, [#allocation14], 32, 32, 2
        $region48: #{_lambda_.1} parent=11 // pred_fallthru
          _
        // Predicated region
        $region49: #{_lambda_.1} parent=11 // pred_check
          %p417 = pneg %p259
        $region50: #{_lambda_.1} parent=11 // pred_check_branch
          %419 = sbr.rel (%p417) target = $region52
        $region51: #{_lambda_.1} parent=11 // pred_region
          %s421 = ssub.s32 64, 64
          %422 = vsyncadd [#allocation17], %s421
          %s424 = sshll.u32 [#allocation16], 4
          %s425 = int_to_ptr.vmem [resolvable:$true] %s424
          %427 = dma.hbm_to_vmem [thread:$0]  %s10, 64, %s425, [#allocation17]
        $region52: #{_lambda_.1} parent=11 // pred_fallthru
          _
      $region12: #{_lambda_.1} parent=5 // pred_fallthru
        _
      %p428 = scmp.lt.s32.totalorder %s23, 2
      // Predicated region
      $region53: #{_lambda_.1} parent=5 // pred_check
        %p429 = pneg %p428
      $region54: #{_lambda_.1} parent=5 // pred_check_branch
        %431 = sbr.rel (%p429) target = $region56
      $region55: #{_lambda_.1} parent=5 // pred_region
        // Predicated region
        $region57: #{_lambda_.1} parent=55 // pred_check
          %p432 = pneg %p43
        $region58: #{_lambda_.1} parent=55 // pred_check_branch
          %434 = sbr.rel (%p432) target = $region60
        $region59: #{_lambda_.1} parent=55 // pred_region
          %p435 = scmp.lt.s32.totalorder %s23, 1
          %s436 = scalar_select %p435, %s23, 1
          %s437 = smul.addr %s436, 4
          %s438 = smul.addr %s437, 8
          %s439 = scalar_lea.vmem %s0, %s438
        $region60: #{_lambda_.1} parent=55 // pred_fallthru
          _
      $region56: #{_lambda_.1} parent=5 // pred_fallthru
        _
      %p440 = scmp.le.s32.totalorder 1, %s23
      %p441 = scmp.lt.s32.totalorder %s23, 3
      %p442 = pnand %p440, %p441
      %p443 = pneg %p442
      // Predicated region
      $region61: #{_lambda_.1} parent=5 // pred_check
        _
      $region62: #{_lambda_.1} parent=5 // pred_check_branch
        %445 = sbr.rel (%p442) target = $region64
      $region63: #{_lambda_.1} parent=5 // pred_region
        %s446 = ssub.s32 %s23, 1
        // Predicated region
        $region65: #{_lambda_.1} parent=63 // pred_check
          %p447 = pneg %p70
        $region66: #{_lambda_.1} parent=63 // pred_check_branch
          %449 = sbr.rel (%p447) target = $region68
        $region67: #{_lambda_.1} parent=63 // pred_region
          %450 = dma.done [#allocation3], 512
        $region68: #{_lambda_.1} parent=63 // pred_fallthru
          _
        // Predicated region
        $region69: #{_lambda_.1} parent=63 // pred_check
          %p451 = pneg %p91
        $region70: #{_lambda_.1} parent=63 // pred_check_branch
          %453 = sbr.rel (%p451) target = $region72
        $region71: #{_lambda_.1} parent=63 // pred_region
          %454 = dma.done [#allocation5], 512
        $region72: #{_lambda_.1} parent=63 // pred_fallthru
          _
        // Predicated region
        $region73: #{_lambda_.1} parent=63 // pred_check
          %p455 = pneg %p112
        $region74: #{_lambda_.1} parent=63 // pred_check_branch
          %457 = sbr.rel (%p455) target = $region76
        $region75: #{_lambda_.1} parent=63 // pred_region
          %458 = dma.done [#allocation5], 384
        $region76: #{_lambda_.1} parent=63 // pred_fallthru
          _
        // Predicated region
        $region77: #{_lambda_.1} parent=63 // pred_check
          %p459 = pneg %p133
        $region78: #{_lambda_.1} parent=63 // pred_check_branch
          %461 = sbr.rel (%p459) target = $region80
        $region79: #{_lambda_.1} parent=63 // pred_region
          %462 = dma.done [#allocation8], 256
        $region80: #{_lambda_.1} parent=63 // pred_fallthru
          _
        // Predicated region
        $region81: #{_lambda_.1} parent=63 // pred_check
          %p463 = pneg %p154
        $region82: #{_lambda_.1} parent=63 // pred_check_branch
          %465 = sbr.rel (%p463) target = $region84
        $region83: #{_lambda_.1} parent=63 // pred_region
          %466 = dma.done [#allocation8], 384
        $region84: #{_lambda_.1} parent=63 // pred_fallthru
          _
        // Predicated region
        $region85: #{_lambda_.1} parent=63 // pred_check
          %p467 = pneg %p175
        $region86: #{_lambda_.1} parent=63 // pred_check_branch
          %469 = sbr.rel (%p467) target = $region88
        $region87: #{_lambda_.1} parent=63 // pred_region
          %470 = dma.done [#allocation11], 256
        $region88: #{_lambda_.1} parent=63 // pred_fallthru
          _
        // Predicated region
        $region89: #{_lambda_.1} parent=63 // pred_check
          %p471 = pneg %p196
        $region90: #{_lambda_.1} parent=63 // pred_check_branch
          %473 = sbr.rel (%p471) target = $region92
        $region91: #{_lambda_.1} parent=63 // pred_region
          %474 = dma.done [#allocation11], 512
        $region92: #{_lambda_.1} parent=63 // pred_fallthru
          _
        // Predicated region
        $region93: #{_lambda_.1} parent=63 // pred_check
          %p475 = pneg %p217
        $region94: #{_lambda_.1} parent=63 // pred_check_branch
          %477 = sbr.rel (%p475) target = $region96
        $region95: #{_lambda_.1} parent=63 // pred_region
          %478 = dma.done [#allocation14], 256
        $region96: #{_lambda_.1} parent=63 // pred_fallthru
          _
        // Predicated region
        $region97: #{_lambda_.1} parent=63 // pred_check
          %p479 = pneg %p238
        $region98: #{_lambda_.1} parent=63 // pred_check_branch
          %481 = sbr.rel (%p479) target = $region100
        $region99: #{_lambda_.1} parent=63 // pred_region
          %482 = dma.done [#allocation14], 512
        $region100: #{_lambda_.1} parent=63 // pred_fallthru
          _
        // Predicated region
        $region101: #{_lambda_.1} parent=63 // pred_check
          %p483 = pneg %p259
        $region102: #{_lambda_.1} parent=63 // pred_check_branch
          %485 = sbr.rel (%p483) target = $region104
        $region103: #{_lambda_.1} parent=63 // pred_region
          %486 = dma.done [#allocation17], 64
        $region104: #{_lambda_.1} parent=63 // pred_fallthru
          _
        %p487 = scmp.lt.s32.totalorder %s28, 1
        %s488 = scalar_select %p487, %s28, 1
        %s489 = smul.addr %s488, 4
        %s490 = smul.addr %s489, 8
        %s491 = scalar_lea.vmem %s0, %s490
        %p492 = pneg %p49
        %p493 = pneg %p46
        %p494 = pneg %p70
        %p495 = pneg %p67
        %p496 = pneg %p91
        %p497 = pneg %p88
        %p498 = pneg %p112
        %p499 = pneg %p109
        %p500 = pneg %p133
        %p501 = pneg %p130
        %p502 = pneg %p154
        %p503 = pneg %p151
        %p504 = pneg %p175
        %p505 = pneg %p172
        %p506 = pneg %p196
        %p507 = pneg %p193
        %p508 = pneg %p217
        %p509 = pneg %p214
        %p510 = pneg %p238
        %p511 = pneg %p235
        %p512 = pneg %p259
        %p513 = pneg %p256
        %p514 = pneg %p285
        %p515 = pneg %p282
        %p516 = scmp.lt.s32.totalorder %s28, 1
        %s517 = scalar_select %p516, %s28, 1
        %s518 = smul.addr %s517, 32
        %s519 = smul.addr %s518, 4
        %s520 = scalar_lea.vmem %s11, %s519
        %p521 = scmp.lt.s32.totalorder %s28, 1
        %s522 = scalar_select %p521, %s28, 1
        %s523 = smul.addr %s522, 4
        %s524 = smul.addr %s523, 8
        %s525 = scalar_lea.vmem %s0, %s524
        %p526 = scmp.lt.s32.totalorder %s28, 1
        %s527 = scalar_select %p526, %s28, 1
        %s528 = smul.addr %s527, 32
        %s529 = smul.addr %s528, 4
        %s530 = scalar_lea.vmem %s11, %s529
        %v534 = vlaneseq
        %v535 = vand.u32 %v534, 127
        %v536 = vadd.s32 %v535, 128
        %v537 = vand.u32 %v535, 15
        %v538 = vand.u32 %v536, 15
        %vm539 = vcmp.ge.s32.totalorder %v537, 1
        %vm540 = vcmp.ge.s32.totalorder %v538, 1
        %vm541 = vcmp.lt.s32.totalorder %v537, 15
        %vm542 = vcmp.lt.s32.totalorder %v538, 15
        %v543 = vld [vmem:[%s525] sm:$0xff]
        %v544 = vld [vmem:[%s525 + $0x8] sm:$0xff]
        %v545 = vld [vmem:[%s525 + $0x10] sm:$0xff]
        %v546 = vld [vmem:[%s525 + $0x18] sm:$0xff]
        %v547 = vpack.c.bf16 %v545, %v543
        %v548 = vpack.c.bf16 %v546, %v544
        %v549 = vsel %vm539, 1, 0
        %v550 = vsel %vm540, 1, 0
        %vm551 = vcmp.eq.s32.totalorder %v549, 1
        %vm552 = vcmp.eq.s32.totalorder %v550, 1
        %vm553 = vmpackc.low %vm552, %vm551
        %v554 = vsel %vm553, 65537, 0
        %v555 = vlaneseq
        %v556 = vshrl.u32 %v555, 7
        %v557 = vsub.s32 0, %v556
        %v558 = vrot.slane %v554, %v557
        %v559 = vlaneseq
        %v560 = vshrl.u32 %v559, 7
        %v561 = vsub.s32 4, %v560
        %v562 = vrot.slane %v554, %v561
        %563 = vrot.lane.b32.xlu0 %v558, 111
        %v564 = vpop.permute.xlu0 %563
        %565 = vrot.lane.b32.xlu0 %v562, 111
        %v566 = vpop.permute.xlu0 %565
        %vm567 = vcmask 908288
        %v568 = vsel %vm567, %v564, %v566
        %vm569 = vcmp.ne.s16.totalorder %v568, 0
        %vm570 = vcmp.ne.s16.totalorder %v566, 0
        %v571 = vsel %vm569, %v547, 0
        %v572 = vsel %vm570, %v548, 0
        %v573 = vsel %vm541, 1, 0
        %v574 = vsel %vm542, 1, 0
        %vm575 = vcmp.eq.s32.totalorder %v573, 1
        %vm576 = vcmp.eq.s32.totalorder %v574, 1
        %vm577 = vmpackc.low %vm576, %vm575
        %v578 = vsel %vm577, 65537, 0
        %v579 = vlaneseq
        %v580 = vshrl.u32 %v579, 7
        %v581 = vsub.s32 0, %v580
        %v582 = vrot.slane %v578, %v581
        %v583 = vlaneseq
        %v584 = vshrl.u32 %v583, 7
        %v585 = vsub.s32 4, %v584
        %v586 = vrot.slane %v578, %v585
        %587 = vrot.lane.b32.xlu0 %v582, 113
        %v588 = vpop.permute.xlu0 %587
        %589 = vrot.lane.b32.xlu0 %v586, 113
        %v590 = vpop.permute.xlu0 %589
        %vm591 = vcmask 924672
        %v592 = vsel %vm591, %v588, %v590
        %vm593 = vcmp.ne.s16.totalorder %v592, 0
        %vm594 = vcmp.ne.s16.totalorder %v590, 0
        %v595 = vsel %vm593, %v547, 0
        %v596 = vsel %vm594, %v548, 0
        %597 = vrot.lane.b32.xlu0 %v558, 127
        %v598 = vpop.permute.xlu0 %597
        %599 = vrot.lane.b32.xlu0 %v562, 127
        %v600 = vpop.permute.xlu0 %599
        %vm601 = vcmask 1039360
        %v602 = vsel %vm601, %v598, %v600
        %vm603 = vcmp.ne.s16.totalorder %v602, 0
        %vm604 = vcmp.ne.s16.totalorder %v600, 0
        %v605 = vsel %vm603, %v547, 0
        %v606 = vsel %vm604, %v548, 0
        %607 = vrot.lane.b32.xlu0 %v582, 1
        %v608 = vpop.permute.xlu0 %607
        %609 = vrot.lane.b32.xlu0 %v586, 1
        %v610 = vpop.permute.xlu0 %609
        %vm611 = vcmask 7168
        %v612 = vsel %vm611, %v608, %v610
        %vm613 = vcmp.ne.s16.totalorder %v608, 0
        %vm614 = vcmp.ne.s16.totalorder %v612, 0
        %v615 = vsel %vm613, %v547, 0
        %v616 = vsel %vm614, %v548, 0
        %617 = vrot.lane.b32.xlu0 %v558, 15
        %v618 = vpop.permute.xlu0 %617
        %619 = vrot.lane.b32.xlu0 %v562, 15
        %v620 = vpop.permute.xlu0 %619
        %vm621 = vcmask 121856
        %v622 = vsel %vm621, %v618, %v620
        %vm623 = vcmp.ne.s16.totalorder %v618, 0
        %vm624 = vcmp.ne.s16.totalorder %v622, 0
        %v625 = vsel %vm623, %v547, 0
        %v626 = vsel %vm624, %v548, 0
        %627 = vrot.lane.b32.xlu0 %v582, 17
        %v628 = vpop.permute.xlu0 %627
        %629 = vrot.lane.b32.xlu0 %v586, 17
        %v630 = vpop.permute.xlu0 %629
        %vm631 = vcmask 138240
        %v632 = vsel %vm631, %v628, %v630
        %vm633 = vcmp.ne.s16.totalorder %v628, 0
        %vm634 = vcmp.ne.s16.totalorder %v632, 0
        %v635 = vsel %vm633, %v547, 0
        %v636 = vsel %vm634, %v548, 0
        %640 = vrot.lane.b32.xlu0 0, 127
        %v641 = vpop.permute.xlu0 %640
        %642 = vrot.lane.b32.xlu0 %v547, 127
        %v643 = vpop.permute.xlu0 %642
        %644 = vrot.lane.b32.xlu0 %v548, 127
        %v645 = vpop.permute.xlu0 %644
        %v646 = vsel %vm601, %v641, %v643
        %v647 = vsel %vm601, %v643, %v645
        %650 = vrot.lane.b32.xlu0 0, 126
        %v651 = vpop.permute.xlu0 %650
        %652 = vrot.lane.b32.xlu0 %v595, 126
        %v653 = vpop.permute.xlu0 %652
        %654 = vrot.lane.b32.xlu0 %v596, 126
        %v655 = vpop.permute.xlu0 %654
        %vm656 = vcmask 1031168
        %v657 = vsel %vm656, %v651, %v653
        %v658 = vsel %vm656, %v653, %v655
        %661 = vrot.lane.b32.xlu0 0, 112
        %v662 = vpop.permute.xlu0 %661
        %663 = vrot.lane.b32.xlu0 %v605, 112
        %v664 = vpop.permute.xlu0 %663
        %665 = vrot.lane.b32.xlu0 %v606, 112
        %v666 = vpop.permute.xlu0 %665
        %vm667 = vcmask 916480
        %v668 = vsel %vm667, %v662, %v664
        %v669 = vsel %vm667, %v664, %v666
        %670 = vrot.lane.b32.xlu0 %v547, 111
        %v671 = vpop.permute.xlu0 %670
        %672 = vrot.lane.b32.xlu0 %v548, 111
        %v673 = vpop.permute.xlu0 %672
        %v674 = vsel %vm567, %v671, %v673
        %677 = vrot.lane.b32.xlu0 %v615, 110
        %v678 = vpop.permute.xlu0 %677
        %679 = vrot.lane.b32.xlu0 %v616, 110
        %v680 = vpop.permute.xlu0 %679
        %681 = vrot.lane.b32.xlu0 0, 110
        %v682 = vpop.permute.xlu0 %681
        %vm683 = vcmask 900096
        %v684 = vsel %vm683, %v678, %v680
        %v685 = vsel %vm683, %v680, %v682
        %688 = vrot.lane.b32.xlu0 %v625, 96
        %v689 = vpop.permute.xlu0 %688
        %690 = vrot.lane.b32.xlu0 %v626, 96
        %v691 = vpop.permute.xlu0 %690
        %692 = vrot.lane.b32.xlu0 0, 96
        %v693 = vpop.permute.xlu0 %692
        %vm694 = vcmask 785408
        %v695 = vsel %vm694, %v689, %v691
        %v696 = vsel %vm694, %v691, %v693
        %697 = vrot.lane.b32.xlu0 %v547, 95
        %v698 = vpop.permute.xlu0 %697
        %699 = vrot.lane.b32.xlu0 %v548, 95
        %v700 = vpop.permute.xlu0 %699
        %701 = vrot.lane.b32.xlu0 0, 95
        %v702 = vpop.permute.xlu0 %701
        %vm703 = vcmask 777216
        %v704 = vsel %vm703, %v698, %v700
        %v705 = vsel %vm703, %v700, %v702
        %708 = vrot.lane.b32.xlu0 %v635, 94
        %v709 = vpop.permute.xlu0 %708
        %710 = vrot.lane.b32.xlu0 %v636, 94
        %v711 = vpop.permute.xlu0 %710
        %712 = vrot.lane.b32.xlu0 0, 94
        %v713 = vpop.permute.xlu0 %712
        %vm714 = vcmask 769024
        %v715 = vsel %vm714, %v709, %v711
        %v716 = vsel %vm714, %v711, %v713
        %v717 = vld [vmem:[#allocation2] sm:$0xff]
        %v718 = vld [vmem:[#allocation2 + $0x8] sm:$0xff]
        %v719 = vld [vmem:[#allocation2 + $0x10] sm:$0xff]
        %v720 = vld [vmem:[#allocation2 + $0x18] sm:$0xff]
        %v721 = vld [vmem:[#allocation4] sm:$0xff]
        %v722 = vld [vmem:[#allocation4 + $0x8] sm:$0xff]
        %v723 = vld [vmem:[#allocation4 + $0x10] sm:$0xff]
        %v724 = vld [vmem:[#allocation4 + $0x18] sm:$0xff]
        %726 = vset.pattern.permute.xlu0 0
        %727 = vperm.xlu0 %726, %v721
        %v728 = vpop.permute.xlu0 %727
        %731 = vset.pattern.permute.xlu0 0
        %732 = vperm.xlu0 %731, %v722
        %v733 = vpop.permute.xlu0 %732
        %736 = vset.pattern.permute.xlu0 0
        %737 = vperm.xlu0 %736, %v723
        %v738 = vpop.permute.xlu0 %737
        %741 = vset.pattern.permute.xlu0 0
        %742 = vperm.xlu0 %741, %v724
        %v743 = vpop.permute.xlu0 %742
        %v749 = vunpack.c.l.b16 %v717
        %v750 = vunpack.c.h.b16 %v717
        %v751 = vunpack.c.l.b16 %v718
        %v752 = vunpack.c.h.b16 %v718
        %v753 = vunpack.c.l.b16 %v719
        %v754 = vunpack.c.h.b16 %v719
        %v755 = vunpack.c.l.b16 %v720
        %v756 = vunpack.c.h.b16 %v720
        %v757 = vpack.c.b16 %v751, %v749
        %v758 = vpack.c.b16 %v752, %v750
        %v759 = vpack.c.b16 %v755, %v753
        %v760 = vpack.c.b16 %v756, %v754
        %765 = vrot.lane.b32.xlu0 0, 17
        %v766 = vpop.permute.xlu0 %765
        %767 = vrot.lane.b32.xlu0 %v571, 17
        %v768 = vpop.permute.xlu0 %767
        %769 = vrot.lane.b32.xlu0 %v572, 17
        %v770 = vpop.permute.xlu0 %769
        %771 = vrot.lane.b32.xlu0 %v646, 17
        %v772 = vpop.permute.xlu0 %771
        %773 = vrot.lane.b32.xlu0 %v647, 17
        %v774 = vpop.permute.xlu0 %773
        %775 = vrot.lane.b32.xlu0 %v645, 17
        %v776 = vpop.permute.xlu0 %775
        %777 = vrot.lane.b32.xlu0 %v657, 17
        %v778 = vpop.permute.xlu0 %777
        %779 = vrot.lane.b32.xlu0 %v658, 17
        %v780 = vpop.permute.xlu0 %779
        %781 = vrot.lane.b32.xlu0 %v655, 17
        %v782 = vpop.permute.xlu0 %781
        %783 = vrot.lane.b32.xlu0 %v668, 17
        %v784 = vpop.permute.xlu0 %783
        %785 = vrot.lane.b32.xlu0 %v669, 17
        %v786 = vpop.permute.xlu0 %785
        %787 = vrot.lane.b32.xlu0 %v666, 17
        %v788 = vpop.permute.xlu0 %787
        %789 = vrot.lane.b32.xlu0 %v671, 17
        %v790 = vpop.permute.xlu0 %789
        %791 = vrot.lane.b32.xlu0 %v674, 17
        %v792 = vpop.permute.xlu0 %791
        %793 = vrot.lane.b32.xlu0 %v673, 17
        %v794 = vpop.permute.xlu0 %793
        %795 = vrot.lane.b32.xlu0 %v678, 17
        %v796 = vpop.permute.xlu0 %795
        %797 = vrot.lane.b32.xlu0 %v684, 17
        %v798 = vpop.permute.xlu0 %797
        %799 = vrot.lane.b32.xlu0 %v685, 17
        %v800 = vpop.permute.xlu0 %799
        %801 = vrot.lane.b32.xlu0 %v689, 17
        %v802 = vpop.permute.xlu0 %801
        %803 = vrot.lane.b32.xlu0 %v695, 17
        %v804 = vpop.permute.xlu0 %803
        %805 = vrot.lane.b32.xlu0 %v696, 17
        %v806 = vpop.permute.xlu0 %805
        %807 = vrot.lane.b32.xlu0 %v698, 17
        %v808 = vpop.permute.xlu0 %807
        %809 = vrot.lane.b32.xlu0 %v704, 17
        %v810 = vpop.permute.xlu0 %809
        %811 = vrot.lane.b32.xlu0 %v705, 17
        %v812 = vpop.permute.xlu0 %811
        %813 = vrot.lane.b32.xlu0 %v709, 17
        %v814 = vpop.permute.xlu0 %813
        %815 = vrot.lane.b32.xlu0 %v715, 17
        %v816 = vpop.permute.xlu0 %815
        %817 = vrot.lane.b32.xlu0 %v716, 17
        %v818 = vpop.permute.xlu0 %817
        %v819 = vsel %vm631, %v766, %v768
        %v820 = vsel %vm631, %v768, %v770
        %v821 = vsel %vm631, %v772, %v774
        %v822 = vsel %vm631, %v774, %v776
        %v823 = vsel %vm631, %v778, %v780
        %v824 = vsel %vm631, %v780, %v782
        %v825 = vsel %vm631, %v784, %v786
        %v826 = vsel %vm631, %v786, %v788
        %v827 = vsel %vm631, %v790, %v792
        %v828 = vsel %vm631, %v792, %v794
        %v829 = vsel %vm631, %v796, %v798
        %v830 = vsel %vm631, %v798, %v800
        %v831 = vsel %vm631, %v802, %v804
        %v832 = vsel %vm631, %v804, %v806
        %v833 = vsel %vm631, %v808, %v810
        %v834 = vsel %vm631, %v810, %v812
        %v835 = vsel %vm631, %v814, %v816
        %v836 = vsel %vm631, %v816, %v818
        %vm855 = vcmask 130048
        %v857 = vsel %vm855, %v758, 0
        %v860 = vsel %vm855, %v760, 0
        %862 = vmatprep.subr.bf16.mxu0 %v834
        %863 = vmatpush1.bf16.msra.mxu0 %v833
        %864 = vmatprep.subr.bf16.mxu0 %v832
        %865 = vmatpush1.bf16.msra.mxu0 %v831
        %866 = vmatprep.subr.bf16.mxu0 %v830
        %867 = vmatpush1.bf16.msra.mxu0 %v829
        %868 = vmatprep.subr.bf16.mxu0 %v828
        %869 = vmatpush1.bf16.msra.mxu0 %v827
        %870 = vmatprep.subr.bf16.mxu0 %v826
        %871 = vmatpush1.bf16.msra.mxu0 %v825
        %872 = vmatprep.subr.bf16.mxu0 %v824
        %873 = vmatpush1.bf16.msra.mxu0 %v823
        %874 = vmatprep.subr.bf16.mxu0 %v822
        %875 = vmatpush1.bf16.msra.mxu0 %v821
        %876 = vmatprep.subr.bf16.mxu0 %v820
        %877 = vmatpush1.bf16.msra.mxu0 %v819
        %878 = vmatprep.subr.bf16.mxu0 0
        %879 = vmatpush2.bf16.msra.mxu0 0
        %880 = vmatprep.subr.bf16.mxu0 0
        %881 = vmatpush2.bf16.msra.mxu0 0
        %882 = vmatprep.subr.bf16.mxu0 0
        %883 = vmatpush2.bf16.msra.mxu0 0
        %884 = vmatprep.subr.bf16.mxu0 0
        %885 = vmatpush2.bf16.msra.mxu0 0
        %886 = vmatprep.subr.bf16.mxu0 0
        %887 = vmatpush2.bf16.msra.mxu0 0
        %888 = vmatprep.subr.bf16.mxu0 0
        %889 = vmatpush2.bf16.msra.mxu0 0
        %890 = vmatprep.subr.bf16.mxu0 0
        %891 = vmatpush2.bf16.msra.mxu0 0
        %892 = vmatprep.subr.bf16.mxu0 %v836
        %893 = vmatpush2.bf16.msra.mxu0 %v835
        %894 = vmatprep.mubr.bf16.mxu0 %v857
        %895 = vmatmul.mubr.bf16.gmra.mxu0 %v757
        %v896 = vpop.f32.mrf.mxu0
        %v897 = vadd.f32 %v728, %v896
        %v898 = vpop.f32.mrf.mxu0
        %v899 = vadd.f32 %v728, %v898
        %v900 = vpop.f32.mrf.mxu0
        %v901 = vadd.f32 %v733, %v900
        %v902 = vpop.f32.mrf.mxu0
        %v903 = vadd.f32 %v733, %v902
        %904 = vmatprep.mubr.bf16.mxu0 %v860
        %905 = vmatmul.mubr.bf16.gmra.mxu0 %v759
        %v906 = vpop.f32.mrf.mxu0
        %v907 = vadd.f32 %v738, %v906
        %v908 = vpop.f32.mrf.mxu0
        %v909 = vadd.f32 %v738, %v908
        %v910 = vpop.f32.mrf.mxu0
        %v911 = vadd.f32 %v743, %v910
        %v912 = vpop.f32.mrf.mxu0
        %v913 = vadd.f32 %v743, %v912
        %914 = vdwg.mxu0
        %v915 = vmax.f32 %v897, 0.0
        %v916 = vmax.f32 %v899, 0.0
        %v917 = vmax.f32 %v901, 0.0
        %v918 = vmax.f32 %v903, 0.0
        %v919 = vmax.f32 %v907, 0.0
        %v920 = vmax.f32 %v909, 0.0
        %v921 = vmax.f32 %v911, 0.0
        %v922 = vmax.f32 %v913, 0.0
        %v923 = vpack.c.bf16 %v917, %v915
        %v924 = vpack.c.bf16 %v918, %v916
        %v925 = vpack.c.bf16 %v921, %v919
        %v926 = vpack.c.bf16 %v922, %v920
        %v927 = vsel %vm569, %v923, 0
        %v928 = vsel %vm570, %v924, 0
        %v929 = vsel %vm569, %v925, 0
        %v930 = vsel %vm570, %v926, 0
        %v931 = vsel %vm593, %v923, 0
        %v932 = vsel %vm594, %v924, 0
        %v933 = vsel %vm593, %v925, 0
        %v934 = vsel %vm594, %v926, 0
        %v935 = vsel %vm603, %v923, 0
        %v936 = vsel %vm604, %v924, 0
        %v937 = vsel %vm603, %v925, 0
        %v938 = vsel %vm604, %v926, 0
        %v939 = vsel %vm613, %v923, 0
        %v940 = vsel %vm614, %v924, 0
        %v941 = vsel %vm613, %v925, 0
        %v942 = vsel %vm614, %v926, 0
        %v943 = vsel %vm623, %v923, 0
        %v944 = vsel %vm624, %v924, 0
        %v945 = vsel %vm623, %v925, 0
        %v946 = vsel %vm624, %v926, 0
        %v947 = vsel %vm633, %v923, 0
        %v948 = vsel %vm634, %v924, 0
        %v949 = vsel %vm633, %v925, 0
        %v950 = vsel %vm634, %v926, 0
        %955 = vrot.lane.b32.xlu0 %v923, 127
        %v956 = vpop.permute.xlu0 %955
        %957 = vrot.lane.b32.xlu0 %v924, 127
        %v958 = vpop.permute.xlu0 %957
        %959 = vrot.lane.b32.xlu0 %v925, 127
        %v960 = vpop.permute.xlu0 %959
        %961 = vrot.lane.b32.xlu0 %v926, 127
        %v962 = vpop.permute.xlu0 %961
        %v963 = vsel %vm601, %v641, %v956
        %v964 = vsel %vm601, %v956, %v958
        %v965 = vsel %vm601, %v641, %v960
        %v966 = vsel %vm601, %v960, %v962
        %971 = vrot.lane.b32.xlu0 %v931, 126
        %v972 = vpop.permute.xlu0 %971
        %973 = vrot.lane.b32.xlu0 %v932, 126
        %v974 = vpop.permute.xlu0 %973
        %975 = vrot.lane.b32.xlu0 %v933, 126
        %v976 = vpop.permute.xlu0 %975
        %977 = vrot.lane.b32.xlu0 %v934, 126
        %v978 = vpop.permute.xlu0 %977
        %v979 = vsel %vm656, %v651, %v972
        %v980 = vsel %vm656, %v972, %v974
        %v981 = vsel %vm656, %v651, %v976
        %v982 = vsel %vm656, %v976, %v978
        %987 = vrot.lane.b32.xlu0 %v935, 112
        %v988 = vpop.permute.xlu0 %987
        %989 = vrot.lane.b32.xlu0 %v936, 112
        %v990 = vpop.permute.xlu0 %989
        %991 = vrot.lane.b32.xlu0 %v937, 112
        %v992 = vpop.permute.xlu0 %991
        %993 = vrot.lane.b32.xlu0 %v938, 112
        %v994 = vpop.permute.xlu0 %993
        %v995 = vsel %vm667, %v662, %v988
        %v996 = vsel %vm667, %v988, %v990
        %v997 = vsel %vm667, %v662, %v992
        %v998 = vsel %vm667, %v992, %v994
        %999 = vrot.lane.b32.xlu0 %v923, 111
        %v1000 = vpop.permute.xlu0 %999
        %1001 = vrot.lane.b32.xlu0 %v924, 111
        %v1002 = vpop.permute.xlu0 %1001
        %1003 = vrot.lane.b32.xlu0 %v925, 111
        %v1004 = vpop.permute.xlu0 %1003
        %1005 = vrot.lane.b32.xlu0 %v926, 111
        %v1006 = vpop.permute.xlu0 %1005
        %v1007 = vsel %vm567, %v1000, %v1002
        %v1008 = vsel %vm567, %v1004, %v1006
        %1013 = vrot.lane.b32.xlu0 %v939, 110
        %v1014 = vpop.permute.xlu0 %1013
        %1015 = vrot.lane.b32.xlu0 %v940, 110
        %v1016 = vpop.permute.xlu0 %1015
        %1017 = vrot.lane.b32.xlu0 %v941, 110
        %v1018 = vpop.permute.xlu0 %1017
        %1019 = vrot.lane.b32.xlu0 %v942, 110
        %v1020 = vpop.permute.xlu0 %1019
        %v1021 = vsel %vm683, %v1014, %v1016
        %v1022 = vsel %vm683, %v1016, %v682
        %v1023 = vsel %vm683, %v1018, %v1020
        %v1024 = vsel %vm683, %v1020, %v682
        %1029 = vrot.lane.b32.xlu0 %v943, 96
        %v1030 = vpop.permute.xlu0 %1029
        %1031 = vrot.lane.b32.xlu0 %v944, 96
        %v1032 = vpop.permute.xlu0 %1031
        %1033 = vrot.lane.b32.xlu0 %v945, 96
        %v1034 = vpop.permute.xlu0 %1033
        %1035 = vrot.lane.b32.xlu0 %v946, 96
        %v1036 = vpop.permute.xlu0 %1035
        %v1037 = vsel %vm694, %v1030, %v1032
        %v1038 = vsel %vm694, %v1032, %v693
        %v1039 = vsel %vm694, %v1034, %v1036
        %v1040 = vsel %vm694, %v1036, %v693
        %1041 = vrot.lane.b32.xlu0 %v923, 95
        %v1042 = vpop.permute.xlu0 %1041
        %1043 = vrot.lane.b32.xlu0 %v924, 95
        %v1044 = vpop.permute.xlu0 %1043
        %1045 = vrot.lane.b32.xlu0 %v925, 95
        %v1046 = vpop.permute.xlu0 %1045
        %1047 = vrot.lane.b32.xlu0 %v926, 95
        %v1048 = vpop.permute.xlu0 %1047
        %v1049 = vsel %vm703, %v1042, %v1044
        %v1050 = vsel %vm703, %v1044, %v702
        %v1051 = vsel %vm703, %v1046, %v1048
        %v1052 = vsel %vm703, %v1048, %v702
        %1057 = vrot.lane.b32.xlu0 %v947, 94
        %v1058 = vpop.permute.xlu0 %1057
        %1059 = vrot.lane.b32.xlu0 %v948, 94
        %v1060 = vpop.permute.xlu0 %1059
        %1061 = vrot.lane.b32.xlu0 %v949, 94
        %v1062 = vpop.permute.xlu0 %1061
        %1063 = vrot.lane.b32.xlu0 %v950, 94
        %v1064 = vpop.permute.xlu0 %1063
        %v1065 = vsel %vm714, %v1058, %v1060
        %v1066 = vsel %vm714, %v1060, %v713
        %v1067 = vsel %vm714, %v1062, %v1064
        %v1068 = vsel %vm714, %v1064, %v713
        %v1069 = vld [vmem:[#allocation6] sm:$0xff]
        %v1070 = vld [vmem:[#allocation6 + $0x8] sm:$0xf]
        %v1071 = vld [vmem:[#allocation6 + $0xc] sm:$0xff]
        %v1072 = vld [vmem:[#allocation6 + $0x14] sm:$0xf]
        %v1077 = vunpack.c.l.b16 %v1069
        %v1078 = vunpack.c.h.b16 %v1069
        %v1079 = vunpack.c.l.b16 %v1070
        %v1080 = vunpack.c.l.b16 %v1071
        %v1081 = vunpack.c.h.b16 %v1071
        %v1082 = vunpack.c.l.b16 %v1072
        %v1083 = vpack.c.b16 %v1080, %v1077
        %v1084 = vpack.c.b16 %v1081, %v1078
        %v1085 = vpack.c.b16 %v1082, %v1079
        %1092 = vrot.lane.b32.xlu0 %v927, 17
        %v1093 = vpop.permute.xlu0 %1092
        %1094 = vrot.lane.b32.xlu0 %v928, 17
        %v1095 = vpop.permute.xlu0 %1094
        %1096 = vrot.lane.b32.xlu0 %v929, 17
        %v1097 = vpop.permute.xlu0 %1096
        %1098 = vrot.lane.b32.xlu0 %v930, 17
        %v1099 = vpop.permute.xlu0 %1098
        %1100 = vrot.lane.b32.xlu0 %v963, 17
        %v1101 = vpop.permute.xlu0 %1100
        %1102 = vrot.lane.b32.xlu0 %v964, 17
        %v1103 = vpop.permute.xlu0 %1102
        %1104 = vrot.lane.b32.xlu0 %v958, 17
        %v1105 = vpop.permute.xlu0 %1104
        %1106 = vrot.lane.b32.xlu0 %v965, 17
        %v1107 = vpop.permute.xlu0 %1106
        %1108 = vrot.lane.b32.xlu0 %v966, 17
        %v1109 = vpop.permute.xlu0 %1108
        %1110 = vrot.lane.b32.xlu0 %v962, 17
        %v1111 = vpop.permute.xlu0 %1110
        %1112 = vrot.lane.b32.xlu0 %v979, 17
        %v1113 = vpop.permute.xlu0 %1112
        %1114 = vrot.lane.b32.xlu0 %v980, 17
        %v1115 = vpop.permute.xlu0 %1114
        %1116 = vrot.lane.b32.xlu0 %v974, 17
        %v1117 = vpop.permute.xlu0 %1116
        %1118 = vrot.lane.b32.xlu0 %v981, 17
        %v1119 = vpop.permute.xlu0 %1118
        %1120 = vrot.lane.b32.xlu0 %v982, 17
        %v1121 = vpop.permute.xlu0 %1120
        %1122 = vrot.lane.b32.xlu0 %v978, 17
        %v1123 = vpop.permute.xlu0 %1122
        %1124 = vrot.lane.b32.xlu0 %v995, 17
        %v1125 = vpop.permute.xlu0 %1124
        %1126 = vrot.lane.b32.xlu0 %v996, 17
        %v1127 = vpop.permute.xlu0 %1126
        %1128 = vrot.lane.b32.xlu0 %v990, 17
        %v1129 = vpop.permute.xlu0 %1128
        %1130 = vrot.lane.b32.xlu0 %v997, 17
        %v1131 = vpop.permute.xlu0 %1130
        %1132 = vrot.lane.b32.xlu0 %v998, 17
        %v1133 = vpop.permute.xlu0 %1132
        %1134 = vrot.lane.b32.xlu0 %v994, 17
        %v1135 = vpop.permute.xlu0 %1134
        %1136 = vrot.lane.b32.xlu0 %v1000, 17
        %v1137 = vpop.permute.xlu0 %1136
        %1138 = vrot.lane.b32.xlu0 %v1007, 17
        %v1139 = vpop.permute.xlu0 %1138
        %1140 = vrot.lane.b32.xlu0 %v1002, 17
        %v1141 = vpop.permute.xlu0 %1140
        %1142 = vrot.lane.b32.xlu0 %v1004, 17
        %v1143 = vpop.permute.xlu0 %1142
        %1144 = vrot.lane.b32.xlu0 %v1008, 17
        %v1145 = vpop.permute.xlu0 %1144
        %1146 = vrot.lane.b32.xlu0 %v1006, 17
        %v1147 = vpop.permute.xlu0 %1146
        %1148 = vrot.lane.b32.xlu0 %v1014, 17
        %v1149 = vpop.permute.xlu0 %1148
        %1150 = vrot.lane.b32.xlu0 %v1021, 17
        %v1151 = vpop.permute.xlu0 %1150
        %1152 = vrot.lane.b32.xlu0 %v1022, 17
        %v1153 = vpop.permute.xlu0 %1152
        %1154 = vrot.lane.b32.xlu0 %v1018, 17
        %v1155 = vpop.permute.xlu0 %1154
        %1156 = vrot.lane.b32.xlu0 %v1023, 17
        %v1157 = vpop.permute.xlu0 %1156
        %1158 = vrot.lane.b32.xlu0 %v1024, 17
        %v1159 = vpop.permute.xlu0 %1158
        %1160 = vrot.lane.b32.xlu0 %v1030, 17
        %v1161 = vpop.permute.xlu0 %1160
        %1162 = vrot.lane.b32.xlu0 %v1037, 17
        %v1163 = vpop.permute.xlu0 %1162
        %1164 = vrot.lane.b32.xlu0 %v1038, 17
        %v1165 = vpop.permute.xlu0 %1164
        %1166 = vrot.lane.b32.xlu0 %v1034, 17
        %v1167 = vpop.permute.xlu0 %1166
        %1168 = vrot.lane.b32.xlu0 %v1039, 17
        %v1169 = vpop.permute.xlu0 %1168
        %1170 = vrot.lane.b32.xlu0 %v1040, 17
        %v1171 = vpop.permute.xlu0 %1170
        %1172 = vrot.lane.b32.xlu0 %v1042, 17
        %v1173 = vpop.permute.xlu0 %1172
        %1174 = vrot.lane.b32.xlu0 %v1049, 17
        %v1175 = vpop.permute.xlu0 %1174
        %1176 = vrot.lane.b32.xlu0 %v1050, 17
        %v1177 = vpop.permute.xlu0 %1176
        %1178 = vrot.lane.b32.xlu0 %v1046, 17
        %v1179 = vpop.permute.xlu0 %1178
        %1180 = vrot.lane.b32.xlu0 %v1051, 17
        %v1181 = vpop.permute.xlu0 %1180
        %1182 = vrot.lane.b32.xlu0 %v1052, 17
        %v1183 = vpop.permute.xlu0 %1182
        %1184 = vrot.lane.b32.xlu0 %v1058, 17
        %v1185 = vpop.permute.xlu0 %1184
        %1186 = vrot.lane.b32.xlu0 %v1065, 17
        %v1187 = vpop.permute.xlu0 %1186
        %1188 = vrot.lane.b32.xlu0 %v1066, 17
        %v1189 = vpop.permute.xlu0 %1188
        %1190 = vrot.lane.b32.xlu0 %v1062, 17
        %v1191 = vpop.permute.xlu0 %1190
        %1192 = vrot.lane.b32.xlu0 %v1067, 17
        %v1193 = vpop.permute.xlu0 %1192
        %1194 = vrot.lane.b32.xlu0 %v1068, 17
        %v1195 = vpop.permute.xlu0 %1194
        %v1196 = vsel %vm631, %v766, %v1093
        %v1197 = vsel %vm631, %v1093, %v1095
        %v1198 = vsel %vm631, %v766, %v1097
        %v1199 = vsel %vm631, %v1097, %v1099
        %v1200 = vsel %vm631, %v1101, %v1103
        %v1201 = vsel %vm631, %v1103, %v1105
        %v1202 = vsel %vm631, %v1107, %v1109
        %v1203 = vsel %vm631, %v1109, %v1111
        %v1204 = vsel %vm631, %v1113, %v1115
        %v1205 = vsel %vm631, %v1115, %v1117
        %v1206 = vsel %vm631, %v1119, %v1121
        %v1207 = vsel %vm631, %v1121, %v1123
        %v1208 = vsel %vm631, %v1125, %v1127
        %v1209 = vsel %vm631, %v1127, %v1129
        %v1210 = vsel %vm631, %v1131, %v1133
        %v1211 = vsel %vm631, %v1133, %v1135
        %v1212 = vsel %vm631, %v1137, %v1139
        %v1213 = vsel %vm631, %v1139, %v1141
        %v1214 = vsel %vm631, %v1143, %v1145
        %v1215 = vsel %vm631, %v1145, %v1147
        %v1216 = vsel %vm631, %v1149, %v1151
        %v1217 = vsel %vm631, %v1151, %v1153
        %v1218 = vsel %vm631, %v1155, %v1157
        %v1219 = vsel %vm631, %v1157, %v1159
        %v1220 = vsel %vm631, %v1161, %v1163
        %v1221 = vsel %vm631, %v1163, %v1165
        %v1222 = vsel %vm631, %v1167, %v1169
        %v1223 = vsel %vm631, %v1169, %v1171
        %v1224 = vsel %vm631, %v1173, %v1175
        %v1225 = vsel %vm631, %v1175, %v1177
        %v1226 = vsel %vm631, %v1179, %v1181
        %v1227 = vsel %vm631, %v1181, %v1183
        %v1228 = vsel %vm631, %v1185, %v1187
        %v1229 = vsel %vm631, %v1187, %v1189
        %v1230 = vsel %vm631, %v1191, %v1193
        %v1231 = vsel %vm631, %v1193, %v1195
        %vm1268 = vcmask 261120
        %v1270 = vsel %vm1268, %v1085, 0
        %1272 = vmatprep.subr.bf16.mxu0 %v1211
        %1273 = vmatpush1.bf16.msra.mxu0 %v1210
        %1274 = vmatprep.subr.bf16.mxu0 %v1209
        %1275 = vmatpush1.bf16.msra.mxu0 %v1208
        %1276 = vmatprep.subr.bf16.mxu0 %v1207
        %1277 = vmatpush1.bf16.msra.mxu0 %v1206
        %1278 = vmatprep.subr.bf16.mxu0 %v1205
        %1279 = vmatpush1.bf16.msra.mxu0 %v1204
        %1280 = vmatprep.subr.bf16.mxu0 %v1203
        %1281 = vmatpush1.bf16.msra.mxu0 %v1202
        %1282 = vmatprep.subr.bf16.mxu0 %v1201
        %1283 = vmatpush1.bf16.msra.mxu0 %v1200
        %1284 = vmatprep.subr.bf16.mxu0 %v1199
        %1285 = vmatpush1.bf16.msra.mxu0 %v1198
        %1286 = vmatprep.subr.bf16.mxu0 %v1197
        %1287 = vmatpush1.bf16.msra.mxu0 %v1196
        %1288 = vmatprep.subr.bf16.mxu0 %v1227
        %1289 = vmatpush2.bf16.msra.mxu0 %v1226
        %1290 = vmatprep.subr.bf16.mxu0 %v1225
        %1291 = vmatpush2.bf16.msra.mxu0 %v1224
        %1292 = vmatprep.subr.bf16.mxu0 %v1223
        %1293 = vmatpush2.bf16.msra.mxu0 %v1222
        %1294 = vmatprep.subr.bf16.mxu0 %v1221
        %1295 = vmatpush2.bf16.msra.mxu0 %v1220
        %1296 = vmatprep.subr.bf16.mxu0 %v1219
        %1297 = vmatpush2.bf16.msra.mxu0 %v1218
        %1298 = vmatprep.subr.bf16.mxu0 %v1217
        %1299 = vmatpush2.bf16.msra.mxu0 %v1216
        %1300 = vmatprep.subr.bf16.mxu0 %v1215
        %1301 = vmatpush2.bf16.msra.mxu0 %v1214
        %1302 = vmatprep.subr.bf16.mxu0 %v1213
        %1303 = vmatpush2.bf16.msra.mxu0 %v1212
        %1304 = vmatprep.mubr.bf16.mxu0 %v1084
        %1305 = vmatmul.mubr.bf16.gmra.mxu0 %v1083
        %v1306 = vpop.f32.mrf.mxu0
        %v1307 = vadd.f32 0.0, %v1306
        %v1308 = vpop.f32.mrf.mxu0
        %v1309 = vadd.f32 0.0, %v1308
        %v1310 = vpop.f32.mrf.mxu0
        %v1311 = vadd.f32 0.0, %v1310
        %v1312 = vpop.f32.mrf.mxu0
        %v1313 = vadd.f32 0.0, %v1312
        %1314 = vdwg.mxu0
        %1315 = vmatprep.subr.bf16.mxu0 0
        %1316 = vmatpush1.bf16.msra.mxu0 0
        %1317 = vmatprep.subr.bf16.mxu0 0
        %1318 = vmatpush1.bf16.msra.mxu0 0
        %1319 = vmatprep.subr.bf16.mxu0 0
        %1320 = vmatpush1.bf16.msra.mxu0 0
        %1321 = vmatprep.subr.bf16.mxu0 0
        %1322 = vmatpush1.bf16.msra.mxu0 0
        %1323 = vmatprep.subr.bf16.mxu0 0
        %1324 = vmatpush1.bf16.msra.mxu0 0
        %1325 = vmatprep.subr.bf16.mxu0 0
        %1326 = vmatpush1.bf16.msra.mxu0 0
        %1327 = vmatprep.subr.bf16.mxu0 %v1231
        %1328 = vmatpush1.bf16.msra.mxu0 %v1230
        %1329 = vmatprep.subr.bf16.mxu0 %v1229
        %1330 = vmatpush1.bf16.msra.mxu0 %v1228
        %1331 = vmatprep.subr.bf16.mxu0 0
        %1332 = vmatpush2.bf16.msra.mxu0 0
        %1333 = vmatprep.subr.bf16.mxu0 0
        %1334 = vmatpush2.bf16.msra.mxu0 0
        %1335 = vmatprep.subr.bf16.mxu0 0
        %1336 = vmatpush2.bf16.msra.mxu0 0
        %1337 = vmatprep.subr.bf16.mxu0 0
        %1338 = vmatpush2.bf16.msra.mxu0 0
        %1339 = vmatprep.subr.bf16.mxu0 0
        %1340 = vmatpush2.bf16.msra.mxu0 0
        %1341 = vmatprep.subr.bf16.mxu0 0
        %1342 = vmatpush2.bf16.msra.mxu0 0
        %1343 = vmatprep.subr.bf16.mxu0 0
        %1344 = vmatpush2.bf16.msra.mxu0 0
        %1345 = vmatprep.subr.bf16.mxu0 0
        %1346 = vmatpush2.bf16.msra.mxu0 0
        %1347 = vmatprep.mubr.bf16.mxu0 0
        %1348 = vmatmul.mubr.bf16.gmra.mxu0 %v1270
        %v1349 = vpop.f32.mrf.mxu0
        %v1350 = vadd.f32 %v1307, %v1349
        %v1351 = vpop.f32.mrf.mxu0
        %v1352 = vadd.f32 %v1309, %v1351
        %v1353 = vpop.f32.mrf.mxu0
        %v1354 = vadd.f32 %v1311, %v1353
        %v1355 = vpop.f32.mrf.mxu0
        %v1356 = vadd.f32 %v1313, %v1355
        %1357 = vdwg.mxu0
        %v1358 = vmax.f32 %v1350, 0.0
        %v1359 = vmax.f32 %v1352, 0.0
        %v1360 = vmax.f32 %v1354, 0.0
        %v1361 = vmax.f32 %v1356, 0.0
        %v1362 = vld [vmem:[#allocation7] sm:$0xf]
        %v1363 = vld [vmem:[#allocation7 + $0x4] sm:$0xf]
        %v1364 = vld [vmem:[#allocation7 + $0x8] sm:$0xf]
        %v1365 = vld [vmem:[#allocation7 + $0xc] sm:$0xf]
        %v1366 = vpack.c.bf16 %v1360, %v1358
        %v1367 = vpack.c.bf16 %v1361, %v1359
        %v1372 = vunpack.c.l.b16 %v1362
        %v1373 = vunpack.c.l.b16 %v1363
        %v1374 = vunpack.c.l.b16 %v1364
        %v1375 = vunpack.c.l.b16 %v1365
        %v1376 = vpack.c.b16 %v1373, %v1372
        %v1377 = vpack.c.b16 %v1375, %v1374
        %v1379 = vsel %vm855, %v1376, 0
        %v1382 = vsel %vm855, %v1377, 0
        %1384 = vmatprep.subr.bf16.mxu0 0
        %1385 = vmatpush1.bf16.msra.mxu0 0
        %1386 = vmatprep.subr.bf16.mxu0 0
        %1387 = vmatpush1.bf16.msra.mxu0 0
        %1388 = vmatprep.subr.bf16.mxu0 0
        %1389 = vmatpush1.bf16.msra.mxu0 0
        %1390 = vmatprep.subr.bf16.mxu0 0
        %1391 = vmatpush1.bf16.msra.mxu0 0
        %1392 = vmatprep.subr.bf16.mxu0 0
        %1393 = vmatpush1.bf16.msra.mxu0 0
        %1394 = vmatprep.subr.bf16.mxu0 0
        %1395 = vmatpush1.bf16.msra.mxu0 0
        %1396 = vmatprep.subr.bf16.mxu0 0
        %1397 = vmatpush1.bf16.msra.mxu0 0
        %1398 = vmatprep.subr.bf16.mxu0 %v1367
        %1399 = vmatpush1.bf16.msra.mxu0 %v1366
        %1400 = vmatprep.subr.bf16.mxu0 0
        %1401 = vmatpush2.bf16.msra.mxu0 0
        %1402 = vmatprep.subr.bf16.mxu0 0
        %1403 = vmatpush2.bf16.msra.mxu0 0
        %1404 = vmatprep.subr.bf16.mxu0 0
        %1405 = vmatpush2.bf16.msra.mxu0 0
        %1406 = vmatprep.subr.bf16.mxu0 0
        %1407 = vmatpush2.bf16.msra.mxu0 0
        %1408 = vmatprep.subr.bf16.mxu0 0
        %1409 = vmatpush2.bf16.msra.mxu0 0
        %1410 = vmatprep.subr.bf16.mxu0 0
        %1411 = vmatpush2.bf16.msra.mxu0 0
        %1412 = vmatprep.subr.bf16.mxu0 0
        %1413 = vmatpush2.bf16.msra.mxu0 0
        %1414 = vmatprep.subr.bf16.mxu0 0
        %1415 = vmatpush2.bf16.msra.mxu0 0
        %1416 = vmatprep.mubr.bf16.mxu0 0
        %1417 = vmatmul.mubr.bf16.gmra.mxu0 %v1379
        %v1418 = vpop.f32.mrf.mxu0
        %v1419 = vadd.f32 0.0, %v1418
        %v1420 = vpop.f32.mrf.mxu0
        %v1421 = vadd.f32 0.0, %v1420
        %v1422 = vpop.f32.mrf.mxu0
        %v1423 = vadd.f32 0.0, %v1422
        %v1424 = vpop.f32.mrf.mxu0
        %v1425 = vadd.f32 0.0, %v1424
        %1426 = vmatprep.mubr.bf16.mxu0 0
        %1427 = vmatmul.mubr.bf16.gmra.mxu0 %v1382
        %v1428 = vpop.f32.mrf.mxu0
        %v1429 = vadd.f32 0.0, %v1428
        %v1430 = vpop.f32.mrf.mxu0
        %v1431 = vadd.f32 0.0, %v1430
        %v1432 = vpop.f32.mrf.mxu0
        %v1433 = vadd.f32 0.0, %v1432
        %v1434 = vpop.f32.mrf.mxu0
        %v1435 = vadd.f32 0.0, %v1434
        %1436 = vdwg.mxu0
        %v1437 = vadd.f32 %v897, %v1419
        %v1438 = vadd.f32 %v899, %v1421
        %v1439 = vadd.f32 %v901, %v1423
        %v1440 = vadd.f32 %v903, %v1425
        %v1441 = vadd.f32 %v907, %v1429
        %v1442 = vadd.f32 %v909, %v1431
        %v1443 = vadd.f32 %v911, %v1433
        %v1444 = vadd.f32 %v913, %v1435
        %v1445 = vmax.f32 %v1437, 0.0
        %v1446 = vmax.f32 %v1438, 0.0
        %v1447 = vmax.f32 %v1439, 0.0
        %v1448 = vmax.f32 %v1440, 0.0
        %v1449 = vmax.f32 %v1441, 0.0
        %v1450 = vmax.f32 %v1442, 0.0
        %v1451 = vmax.f32 %v1443, 0.0
        %v1452 = vmax.f32 %v1444, 0.0
        %v1453 = vpack.c.bf16 %v1447, %v1445
        %v1454 = vpack.c.bf16 %v1448, %v1446
        %v1455 = vpack.c.bf16 %v1451, %v1449
        %v1456 = vpack.c.bf16 %v1452, %v1450
        %v1457 = vsel %vm569, %v1453, 0
        %v1458 = vsel %vm570, %v1454, 0
        %v1459 = vsel %vm569, %v1455, 0
        %v1460 = vsel %vm570, %v1456, 0
        %v1461 = vsel %vm593, %v1453, 0
        %v1462 = vsel %vm594, %v1454, 0
        %v1463 = vsel %vm593, %v1455, 0
        %v1464 = vsel %vm594, %v1456, 0
        %v1465 = vsel %vm603, %v1453, 0
        %v1466 = vsel %vm604, %v1454, 0
        %v1467 = vsel %vm603, %v1455, 0
        %v1468 = vsel %vm604, %v1456, 0
        %v1469 = vsel %vm613, %v1453, 0
        %v1470 = vsel %vm614, %v1454, 0
        %v1471 = vsel %vm613, %v1455, 0
        %v1472 = vsel %vm614, %v1456, 0
        %v1473 = vsel %vm623, %v1453, 0
        %v1474 = vsel %vm624, %v1454, 0
        %v1475 = vsel %vm623, %v1455, 0
        %v1476 = vsel %vm624, %v1456, 0
        %v1477 = vsel %vm633, %v1453, 0
        %v1478 = vsel %vm634, %v1454, 0
        %v1479 = vsel %vm633, %v1455, 0
        %v1480 = vsel %vm634, %v1456, 0
        %1485 = vrot.lane.b32.xlu0 %v1453, 127
        %v1486 = vpop.permute.xlu0 %1485
        %1487 = vrot.lane.b32.xlu0 %v1454, 127
        %v1488 = vpop.permute.xlu0 %1487
        %1489 = vrot.lane.b32.xlu0 %v1455, 127
        %v1490 = vpop.permute.xlu0 %1489
        %1491 = vrot.lane.b32.xlu0 %v1456, 127
        %v1492 = vpop.permute.xlu0 %1491
        %v1493 = vsel %vm601, %v641, %v1486
        %v1494 = vsel %vm601, %v1486, %v1488
        %v1495 = vsel %vm601, %v641, %v1490
        %v1496 = vsel %vm601, %v1490, %v1492
        %1501 = vrot.lane.b32.xlu0 %v1461, 126
        %v1502 = vpop.permute.xlu0 %1501
        %1503 = vrot.lane.b32.xlu0 %v1462, 126
        %v1504 = vpop.permute.xlu0 %1503
        %1505 = vrot.lane.b32.xlu0 %v1463, 126
        %v1506 = vpop.permute.xlu0 %1505
        %1507 = vrot.lane.b32.xlu0 %v1464, 126
        %v1508 = vpop.permute.xlu0 %1507
        %v1509 = vsel %vm656, %v651, %v1502
        %v1510 = vsel %vm656, %v1502, %v1504
        %v1511 = vsel %vm656, %v651, %v1506
        %v1512 = vsel %vm656, %v1506, %v1508
        %1517 = vrot.lane.b32.xlu0 %v1465, 112
        %v1518 = vpop.permute.xlu0 %1517
        %1519 = vrot.lane.b32.xlu0 %v1466, 112
        %v1520 = vpop.permute.xlu0 %1519
        %1521 = vrot.lane.b32.xlu0 %v1467, 112
        %v1522 = vpop.permute.xlu0 %1521
        %1523 = vrot.lane.b32.xlu0 %v1468, 112
        %v1524 = vpop.permute.xlu0 %1523
        %v1525 = vsel %vm667, %v662, %v1518
        %v1526 = vsel %vm667, %v1518, %v1520
        %v1527 = vsel %vm667, %v662, %v1522
        %v1528 = vsel %vm667, %v1522, %v1524
        %1529 = vrot.lane.b32.xlu0 %v1453, 111
        %v1530 = vpop.permute.xlu0 %1529
        %1531 = vrot.lane.b32.xlu0 %v1454, 111
        %v1532 = vpop.permute.xlu0 %1531
        %1533 = vrot.lane.b32.xlu0 %v1455, 111
        %v1534 = vpop.permute.xlu0 %1533
        %1535 = vrot.lane.b32.xlu0 %v1456, 111
        %v1536 = vpop.permute.xlu0 %1535
        %v1537 = vsel %vm567, %v1530, %v1532
        %v1538 = vsel %vm567, %v1534, %v1536
        %1543 = vrot.lane.b32.xlu0 %v1469, 110
        %v1544 = vpop.permute.xlu0 %1543
        %1545 = vrot.lane.b32.xlu0 %v1470, 110
        %v1546 = vpop.permute.xlu0 %1545
        %1547 = vrot.lane.b32.xlu0 %v1471, 110
        %v1548 = vpop.permute.xlu0 %1547
        %1549 = vrot.lane.b32.xlu0 %v1472, 110
        %v1550 = vpop.permute.xlu0 %1549
        %v1551 = vsel %vm683, %v1544, %v1546
        %v1552 = vsel %vm683, %v1546, %v682
        %v1553 = vsel %vm683, %v1548, %v1550
        %v1554 = vsel %vm683, %v1550, %v682
        %1559 = vrot.lane.b32.xlu0 %v1473, 96
        %v1560 = vpop.permute.xlu0 %1559
        %1561 = vrot.lane.b32.xlu0 %v1474, 96
        %v1562 = vpop.permute.xlu0 %1561
        %1563 = vrot.lane.b32.xlu0 %v1475, 96
        %v1564 = vpop.permute.xlu0 %1563
        %1565 = vrot.lane.b32.xlu0 %v1476, 96
        %v1566 = vpop.permute.xlu0 %1565
        %v1567 = vsel %vm694, %v1560, %v1562
        %v1568 = vsel %vm694, %v1562, %v693
        %v1569 = vsel %vm694, %v1564, %v1566
        %v1570 = vsel %vm694, %v1566, %v693
        %1571 = vrot.lane.b32.xlu0 %v1453, 95
        %v1572 = vpop.permute.xlu0 %1571
        %1573 = vrot.lane.b32.xlu0 %v1454, 95
        %v1574 = vpop.permute.xlu0 %1573
        %1575 = vrot.lane.b32.xlu0 %v1455, 95
        %v1576 = vpop.permute.xlu0 %1575
        %1577 = vrot.lane.b32.xlu0 %v1456, 95
        %v1578 = vpop.permute.xlu0 %1577
        %v1579 = vsel %vm703, %v1572, %v1574
        %v1580 = vsel %vm703, %v1574, %v702
        %v1581 = vsel %vm703, %v1576, %v1578
        %v1582 = vsel %vm703, %v1578, %v702
        %1587 = vrot.lane.b32.xlu0 %v1477, 94
        %v1588 = vpop.permute.xlu0 %1587
        %1589 = vrot.lane.b32.xlu0 %v1478, 94
        %v1590 = vpop.permute.xlu0 %1589
        %1591 = vrot.lane.b32.xlu0 %v1479, 94
        %v1592 = vpop.permute.xlu0 %1591
        %1593 = vrot.lane.b32.xlu0 %v1480, 94
        %v1594 = vpop.permute.xlu0 %1593
        %v1595 = vsel %vm714, %v1588, %v1590
        %v1596 = vsel %vm714, %v1590, %v713
        %v1597 = vsel %vm714, %v1592, %v1594
        %v1598 = vsel %vm714, %v1594, %v713
        %v1599 = vld [vmem:[#allocation9] sm:$0xff]
        %v1600 = vld [vmem:[#allocation9 + $0x8] sm:$0xf]
        %v1601 = vld [vmem:[#allocation9 + $0xc] sm:$0xff]
        %v1602 = vld [vmem:[#allocation9 + $0x14] sm:$0xf]
        %v1607 = vunpack.c.l.b16 %v1599
        %v1608 = vunpack.c.h.b16 %v1599
        %v1609 = vunpack.c.l.b16 %v1600
        %v1610 = vunpack.c.l.b16 %v1601
        %v1611 = vunpack.c.h.b16 %v1601
        %v1612 = vunpack.c.l.b16 %v1602
        %v1613 = vpack.c.b16 %v1610, %v1607
        %v1614 = vpack.c.b16 %v1611, %v1608
        %v1615 = vpack.c.b16 %v1612, %v1609
        %1622 = vrot.lane.b32.xlu0 %v1457, 17
        %v1623 = vpop.permute.xlu0 %1622
        %1624 = vrot.lane.b32.xlu0 %v1458, 17
        %v1625 = vpop.permute.xlu0 %1624
        %1626 = vrot.lane.b32.xlu0 %v1459, 17
        %v1627 = vpop.permute.xlu0 %1626
        %1628 = vrot.lane.b32.xlu0 %v1460, 17
        %v1629 = vpop.permute.xlu0 %1628
        %1630 = vrot.lane.b32.xlu0 %v1493, 17
        %v1631 = vpop.permute.xlu0 %1630
        %1632 = vrot.lane.b32.xlu0 %v1494, 17
        %v1633 = vpop.permute.xlu0 %1632
        %1634 = vrot.lane.b32.xlu0 %v1488, 17
        %v1635 = vpop.permute.xlu0 %1634
        %1636 = vrot.lane.b32.xlu0 %v1495, 17
        %v1637 = vpop.permute.xlu0 %1636
        %1638 = vrot.lane.b32.xlu0 %v1496, 17
        %v1639 = vpop.permute.xlu0 %1638
        %1640 = vrot.lane.b32.xlu0 %v1492, 17
        %v1641 = vpop.permute.xlu0 %1640
        %1642 = vrot.lane.b32.xlu0 %v1509, 17
        %v1643 = vpop.permute.xlu0 %1642
        %1644 = vrot.lane.b32.xlu0 %v1510, 17
        %v1645 = vpop.permute.xlu0 %1644
        %1646 = vrot.lane.b32.xlu0 %v1504, 17
        %v1647 = vpop.permute.xlu0 %1646
        %1648 = vrot.lane.b32.xlu0 %v1511, 17
        %v1649 = vpop.permute.xlu0 %1648
        %1650 = vrot.lane.b32.xlu0 %v1512, 17
        %v1651 = vpop.permute.xlu0 %1650
        %1652 = vrot.lane.b32.xlu0 %v1508, 17
        %v1653 = vpop.permute.xlu0 %1652
        %1654 = vrot.lane.b32.xlu0 %v1525, 17
        %v1655 = vpop.permute.xlu0 %1654
        %1656 = vrot.lane.b32.xlu0 %v1526, 17
        %v1657 = vpop.permute.xlu0 %1656
        %1658 = vrot.lane.b32.xlu0 %v1520, 17
        %v1659 = vpop.permute.xlu0 %1658
        %1660 = vrot.lane.b32.xlu0 %v1527, 17
        %v1661 = vpop.permute.xlu0 %1660
        %1662 = vrot.lane.b32.xlu0 %v1528, 17
        %v1663 = vpop.permute.xlu0 %1662
        %1664 = vrot.lane.b32.xlu0 %v1524, 17
        %v1665 = vpop.permute.xlu0 %1664
        %1666 = vrot.lane.b32.xlu0 %v1530, 17
        %v1667 = vpop.permute.xlu0 %1666
        %1668 = vrot.lane.b32.xlu0 %v1537, 17
        %v1669 = vpop.permute.xlu0 %1668
        %1670 = vrot.lane.b32.xlu0 %v1532, 17
        %v1671 = vpop.permute.xlu0 %1670
        %1672 = vrot.lane.b32.xlu0 %v1534, 17
        %v1673 = vpop.permute.xlu0 %1672
        %1674 = vrot.lane.b32.xlu0 %v1538, 17
        %v1675 = vpop.permute.xlu0 %1674
        %1676 = vrot.lane.b32.xlu0 %v1536, 17
        %v1677 = vpop.permute.xlu0 %1676
        %1678 = vrot.lane.b32.xlu0 %v1544, 17
        %v1679 = vpop.permute.xlu0 %1678
        %1680 = vrot.lane.b32.xlu0 %v1551, 17
        %v1681 = vpop.permute.xlu0 %1680
        %1682 = vrot.lane.b32.xlu0 %v1552, 17
        %v1683 = vpop.permute.xlu0 %1682
        %1684 = vrot.lane.b32.xlu0 %v1548, 17
        %v1685 = vpop.permute.xlu0 %1684
        %1686 = vrot.lane.b32.xlu0 %v1553, 17
        %v1687 = vpop.permute.xlu0 %1686
        %1688 = vrot.lane.b32.xlu0 %v1554, 17
        %v1689 = vpop.permute.xlu0 %1688
        %1690 = vrot.lane.b32.xlu0 %v1560, 17
        %v1691 = vpop.permute.xlu0 %1690
        %1692 = vrot.lane.b32.xlu0 %v1567, 17
        %v1693 = vpop.permute.xlu0 %1692
        %1694 = vrot.lane.b32.xlu0 %v1568, 17
        %v1695 = vpop.permute.xlu0 %1694
        %1696 = vrot.lane.b32.xlu0 %v1564, 17
        %v1697 = vpop.permute.xlu0 %1696
        %1698 = vrot.lane.b32.xlu0 %v1569, 17
        %v1699 = vpop.permute.xlu0 %1698
        %1700 = vrot.lane.b32.xlu0 %v1570, 17
        %v1701 = vpop.permute.xlu0 %1700
        %1702 = vrot.lane.b32.xlu0 %v1572, 17
        %v1703 = vpop.permute.xlu0 %1702
        %1704 = vrot.lane.b32.xlu0 %v1579, 17
        %v1705 = vpop.permute.xlu0 %1704
        %1706 = vrot.lane.b32.xlu0 %v1580, 17
        %v1707 = vpop.permute.xlu0 %1706
        %1708 = vrot.lane.b32.xlu0 %v1576, 17
        %v1709 = vpop.permute.xlu0 %1708
        %1710 = vrot.lane.b32.xlu0 %v1581, 17
        %v1711 = vpop.permute.xlu0 %1710
        %1712 = vrot.lane.b32.xlu0 %v1582, 17
        %v1713 = vpop.permute.xlu0 %1712
        %1714 = vrot.lane.b32.xlu0 %v1588, 17
        %v1715 = vpop.permute.xlu0 %1714
        %1716 = vrot.lane.b32.xlu0 %v1595, 17
        %v1717 = vpop.permute.xlu0 %1716
        %1718 = vrot.lane.b32.xlu0 %v1596, 17
        %v1719 = vpop.permute.xlu0 %1718
        %1720 = vrot.lane.b32.xlu0 %v1592, 17
        %v1721 = vpop.permute.xlu0 %1720
        %1722 = vrot.lane.b32.xlu0 %v1597, 17
        %v1723 = vpop.permute.xlu0 %1722
        %1724 = vrot.lane.b32.xlu0 %v1598, 17
        %v1725 = vpop.permute.xlu0 %1724
        %v1726 = vsel %vm631, %v766, %v1623
        %v1727 = vsel %vm631, %v1623, %v1625
        %v1728 = vsel %vm631, %v766, %v1627
        %v1729 = vsel %vm631, %v1627, %v1629
        %v1730 = vsel %vm631, %v1631, %v1633
        %v1731 = vsel %vm631, %v1633, %v1635
        %v1732 = vsel %vm631, %v1637, %v1639
        %v1733 = vsel %vm631, %v1639, %v1641
        %v1734 = vsel %vm631, %v1643, %v1645
        %v1735 = vsel %vm631, %v1645, %v1647
        %v1736 = vsel %vm631, %v1649, %v1651
        %v1737 = vsel %vm631, %v1651, %v1653
        %v1738 = vsel %vm631, %v1655, %v1657
        %v1739 = vsel %vm631, %v1657, %v1659
        %v1740 = vsel %vm631, %v1661, %v1663
        %v1741 = vsel %vm631, %v1663, %v1665
        %v1742 = vsel %vm631, %v1667, %v1669
        %v1743 = vsel %vm631, %v1669, %v1671
        %v1744 = vsel %vm631, %v1673, %v1675
        %v1745 = vsel %vm631, %v1675, %v1677
        %v1746 = vsel %vm631, %v1679, %v1681
        %v1747 = vsel %vm631, %v1681, %v1683
        %v1748 = vsel %vm631, %v1685, %v1687
        %v1749 = vsel %vm631, %v1687, %v1689
        %v1750 = vsel %vm631, %v1691, %v1693
        %v1751 = vsel %vm631, %v1693, %v1695
        %v1752 = vsel %vm631, %v1697, %v1699
        %v1753 = vsel %vm631, %v1699, %v1701
        %v1754 = vsel %vm631, %v1703, %v1705
        %v1755 = vsel %vm631, %v1705, %v1707
        %v1756 = vsel %vm631, %v1709, %v1711
        %v1757 = vsel %vm631, %v1711, %v1713
        %v1758 = vsel %vm631, %v1715, %v1717
        %v1759 = vsel %vm631, %v1717, %v1719
        %v1760 = vsel %vm631, %v1721, %v1723
        %v1761 = vsel %vm631, %v1723, %v1725
        %v1799 = vsel %vm1268, %v1615, 0
        %1801 = vmatprep.subr.bf16.mxu0 %v1741
        %1802 = vmatpush1.bf16.msra.mxu0 %v1740
        %1803 = vmatprep.subr.bf16.mxu0 %v1739
        %1804 = vmatpush1.bf16.msra.mxu0 %v1738
        %1805 = vmatprep.subr.bf16.mxu0 %v1737
        %1806 = vmatpush1.bf16.msra.mxu0 %v1736
        %1807 = vmatprep.subr.bf16.mxu0 %v1735
        %1808 = vmatpush1.bf16.msra.mxu0 %v1734
        %1809 = vmatprep.subr.bf16.mxu0 %v1733
        %1810 = vmatpush1.bf16.msra.mxu0 %v1732
        %1811 = vmatprep.subr.bf16.mxu0 %v1731
        %1812 = vmatpush1.bf16.msra.mxu0 %v1730
        %1813 = vmatprep.subr.bf16.mxu0 %v1729
        %1814 = vmatpush1.bf16.msra.mxu0 %v1728
        %1815 = vmatprep.subr.bf16.mxu0 %v1727
        %1816 = vmatpush1.bf16.msra.mxu0 %v1726
        %1817 = vmatprep.subr.bf16.mxu0 %v1757
        %1818 = vmatpush2.bf16.msra.mxu0 %v1756
        %1819 = vmatprep.subr.bf16.mxu0 %v1755
        %1820 = vmatpush2.bf16.msra.mxu0 %v1754
        %1821 = vmatprep.subr.bf16.mxu0 %v1753
        %1822 = vmatpush2.bf16.msra.mxu0 %v1752
        %1823 = vmatprep.subr.bf16.mxu0 %v1751
        %1824 = vmatpush2.bf16.msra.mxu0 %v1750
        %1825 = vmatprep.subr.bf16.mxu0 %v1749
        %1826 = vmatpush2.bf16.msra.mxu0 %v1748
        %1827 = vmatprep.subr.bf16.mxu0 %v1747
        %1828 = vmatpush2.bf16.msra.mxu0 %v1746
        %1829 = vmatprep.subr.bf16.mxu0 %v1745
        %1830 = vmatpush2.bf16.msra.mxu0 %v1744
        %1831 = vmatprep.subr.bf16.mxu0 %v1743
        %1832 = vmatpush2.bf16.msra.mxu0 %v1742
        %1833 = vmatprep.mubr.bf16.mxu0 %v1614
        %1834 = vmatmul.mubr.bf16.gmra.mxu0 %v1613
        %v1835 = vpop.f32.mrf.mxu0
        %v1836 = vadd.f32 0.0, %v1835
        %v1837 = vpop.f32.mrf.mxu0
        %v1838 = vadd.f32 0.0, %v1837
        %v1839 = vpop.f32.mrf.mxu0
        %v1840 = vadd.f32 0.0, %v1839
        %v1841 = vpop.f32.mrf.mxu0
        %v1842 = vadd.f32 0.0, %v1841
        %1843 = vdwg.mxu0
        %1844 = vmatprep.subr.bf16.mxu0 0
        %1845 = vmatpush1.bf16.msra.mxu0 0
        %1846 = vmatprep.subr.bf16.mxu0 0
        %1847 = vmatpush1.bf16.msra.mxu0 0
        %1848 = vmatprep.subr.bf16.mxu0 0
        %1849 = vmatpush1.bf16.msra.mxu0 0
        %1850 = vmatprep.subr.bf16.mxu0 0
        %1851 = vmatpush1.bf16.msra.mxu0 0
        %1852 = vmatprep.subr.bf16.mxu0 0
        %1853 = vmatpush1.bf16.msra.mxu0 0
        %1854 = vmatprep.subr.bf16.mxu0 0
        %1855 = vmatpush1.bf16.msra.mxu0 0
        %1856 = vmatprep.subr.bf16.mxu0 %v1761
        %1857 = vmatpush1.bf16.msra.mxu0 %v1760
        %1858 = vmatprep.subr.bf16.mxu0 %v1759
        %1859 = vmatpush1.bf16.msra.mxu0 %v1758
        %1860 = vmatprep.subr.bf16.mxu0 0
        %1861 = vmatpush2.bf16.msra.mxu0 0
        %1862 = vmatprep.subr.bf16.mxu0 0
        %1863 = vmatpush2.bf16.msra.mxu0 0
        %1864 = vmatprep.subr.bf16.mxu0 0
        %1865 = vmatpush2.bf16.msra.mxu0 0
        %1866 = vmatprep.subr.bf16.mxu0 0
        %1867 = vmatpush2.bf16.msra.mxu0 0
        %1868 = vmatprep.subr.bf16.mxu0 0
        %1869 = vmatpush2.bf16.msra.mxu0 0
        %1870 = vmatprep.subr.bf16.mxu0 0
        %1871 = vmatpush2.bf16.msra.mxu0 0
        %1872 = vmatprep.subr.bf16.mxu0 0
        %1873 = vmatpush2.bf16.msra.mxu0 0
        %1874 = vmatprep.subr.bf16.mxu0 0
        %1875 = vmatpush2.bf16.msra.mxu0 0
        %1876 = vmatprep.mubr.bf16.mxu0 0
        %1877 = vmatmul.mubr.bf16.gmra.mxu0 %v1799
        %v1878 = vpop.f32.mrf.mxu0
        %v1879 = vadd.f32 %v1836, %v1878
        %v1880 = vpop.f32.mrf.mxu0
        %v1881 = vadd.f32 %v1838, %v1880
        %v1882 = vpop.f32.mrf.mxu0
        %v1883 = vadd.f32 %v1840, %v1882
        %v1884 = vpop.f32.mrf.mxu0
        %v1885 = vadd.f32 %v1842, %v1884
        %1886 = vdwg.mxu0
        %v1887 = vmax.f32 %v1879, 0.0
        %v1888 = vmax.f32 %v1881, 0.0
        %v1889 = vmax.f32 %v1883, 0.0
        %v1890 = vmax.f32 %v1885, 0.0
        %v1891 = vld [vmem:[#allocation10] sm:$0xf]
        %v1892 = vld [vmem:[#allocation10 + $0x4] sm:$0xf]
        %v1893 = vld [vmem:[#allocation10 + $0x8] sm:$0xf]
        %v1894 = vld [vmem:[#allocation10 + $0xc] sm:$0xf]
        %v1895 = vpack.c.bf16 %v1889, %v1887
        %v1896 = vpack.c.bf16 %v1890, %v1888
        %v1901 = vunpack.c.l.b16 %v1891
        %v1902 = vunpack.c.l.b16 %v1892
        %v1903 = vunpack.c.l.b16 %v1893
        %v1904 = vunpack.c.l.b16 %v1894
        %v1905 = vpack.c.b16 %v1902, %v1901
        %v1906 = vpack.c.b16 %v1904, %v1903
        %v1908 = vsel %vm855, %v1905, 0
        %v1911 = vsel %vm855, %v1906, 0
        %1913 = vmatprep.subr.bf16.mxu0 0
        %1914 = vmatpush1.bf16.msra.mxu0 0
        %1915 = vmatprep.subr.bf16.mxu0 0
        %1916 = vmatpush1.bf16.msra.mxu0 0
        %1917 = vmatprep.subr.bf16.mxu0 0
        %1918 = vmatpush1.bf16.msra.mxu0 0
        %1919 = vmatprep.subr.bf16.mxu0 0
        %1920 = vmatpush1.bf16.msra.mxu0 0
        %1921 = vmatprep.subr.bf16.mxu0 0
        %1922 = vmatpush1.bf16.msra.mxu0 0
        %1923 = vmatprep.subr.bf16.mxu0 0
        %1924 = vmatpush1.bf16.msra.mxu0 0
        %1925 = vmatprep.subr.bf16.mxu0 0
        %1926 = vmatpush1.bf16.msra.mxu0 0
        %1927 = vmatprep.subr.bf16.mxu0 %v1896
        %1928 = vmatpush1.bf16.msra.mxu0 %v1895
        %1929 = vmatprep.subr.bf16.mxu0 0
        %1930 = vmatpush2.bf16.msra.mxu0 0
        %1931 = vmatprep.subr.bf16.mxu0 0
        %1932 = vmatpush2.bf16.msra.mxu0 0
        %1933 = vmatprep.subr.bf16.mxu0 0
        %1934 = vmatpush2.bf16.msra.mxu0 0
        %1935 = vmatprep.subr.bf16.mxu0 0
        %1936 = vmatpush2.bf16.msra.mxu0 0
        %1937 = vmatprep.subr.bf16.mxu0 0
        %1938 = vmatpush2.bf16.msra.mxu0 0
        %1939 = vmatprep.subr.bf16.mxu0 0
        %1940 = vmatpush2.bf16.msra.mxu0 0
        %1941 = vmatprep.subr.bf16.mxu0 0
        %1942 = vmatpush2.bf16.msra.mxu0 0
        %1943 = vmatprep.subr.bf16.mxu0 0
        %1944 = vmatpush2.bf16.msra.mxu0 0
        %1945 = vmatprep.mubr.bf16.mxu0 0
        %1946 = vmatmul.mubr.bf16.gmra.mxu0 %v1908
        %v1947 = vpop.f32.mrf.mxu0
        %v1948 = vadd.f32 0.0, %v1947
        %v1949 = vpop.f32.mrf.mxu0
        %v1950 = vadd.f32 0.0, %v1949
        %v1951 = vpop.f32.mrf.mxu0
        %v1952 = vadd.f32 0.0, %v1951
        %v1953 = vpop.f32.mrf.mxu0
        %v1954 = vadd.f32 0.0, %v1953
        %1955 = vmatprep.mubr.bf16.mxu0 0
        %1956 = vmatmul.mubr.bf16.gmra.mxu0 %v1911
        %v1957 = vpop.f32.mrf.mxu0
        %v1958 = vadd.f32 0.0, %v1957
        %v1959 = vpop.f32.mrf.mxu0
        %v1960 = vadd.f32 0.0, %v1959
        %v1961 = vpop.f32.mrf.mxu0
        %v1962 = vadd.f32 0.0, %v1961
        %v1963 = vpop.f32.mrf.mxu0
        %v1964 = vadd.f32 0.0, %v1963
        %1965 = vdwg.mxu0
        %v1966 = vadd.f32 %v1437, %v1948
        %v1967 = vadd.f32 %v1438, %v1950
        %v1968 = vadd.f32 %v1439, %v1952
        %v1969 = vadd.f32 %v1440, %v1954
        %v1970 = vadd.f32 %v1441, %v1958
        %v1971 = vadd.f32 %v1442, %v1960
        %v1972 = vadd.f32 %v1443, %v1962
        %v1973 = vadd.f32 %v1444, %v1964
        %v1974 = vmax.f32 %v1966, 0.0
        %v1975 = vmax.f32 %v1967, 0.0
        %v1976 = vmax.f32 %v1968, 0.0
        %v1977 = vmax.f32 %v1969, 0.0
        %v1978 = vmax.f32 %v1970, 0.0
        %v1979 = vmax.f32 %v1971, 0.0
        %v1980 = vmax.f32 %v1972, 0.0
        %v1981 = vmax.f32 %v1973, 0.0
        %v1982 = vpack.c.bf16 %v1976, %v1974
        %v1983 = vpack.c.bf16 %v1977, %v1975
        %v1984 = vpack.c.bf16 %v1980, %v1978
        %v1985 = vpack.c.bf16 %v1981, %v1979
        %v1986 = vld [vmem:[#allocation13] sm:$0xff]
        %v1987 = vld [vmem:[#allocation13 + $0x8] sm:$0xff]
        %v1988 = vsel %vm603, %v1982, 0
        %v1989 = vsel %vm604, %v1983, 0
        %v1990 = vsel %vm603, %v1984, 0
        %v1991 = vsel %vm604, %v1985, 0
        %v1992 = vsel %vm569, %v1982, 0
        %v1993 = vsel %vm570, %v1983, 0
        %v1994 = vsel %vm569, %v1984, 0
        %v1995 = vsel %vm570, %v1985, 0
        %2000 = vrot.lane.b32.xlu0 0, 1
        %v2001 = vpop.permute.xlu0 %2000
        %2002 = vrot.lane.b32.xlu0 %v1988, 1
        %v2003 = vpop.permute.xlu0 %2002
        %2004 = vrot.lane.b32.xlu0 %v1989, 1
        %v2005 = vpop.permute.xlu0 %2004
        %2006 = vrot.lane.b32.xlu0 %v1990, 1
        %v2007 = vpop.permute.xlu0 %2006
        %2008 = vrot.lane.b32.xlu0 %v1991, 1
        %v2009 = vpop.permute.xlu0 %2008
        %v2010 = vsel %vm611, %v2001, %v2003
        %v2011 = vsel %vm611, %v2003, %v2005
        %v2012 = vsel %vm611, %v2001, %v2007
        %v2013 = vsel %vm611, %v2007, %v2009
        %2022 = vrot.lane.b32.xlu0 0, 16
        %v2023 = vpop.permute.xlu0 %2022
        %2024 = vrot.lane.b32.xlu0 %v1982, 16
        %v2025 = vpop.permute.xlu0 %2024
        %2026 = vrot.lane.b32.xlu0 %v1983, 16
        %v2027 = vpop.permute.xlu0 %2026
        %2028 = vrot.lane.b32.xlu0 %v1984, 16
        %v2029 = vpop.permute.xlu0 %2028
        %2030 = vrot.lane.b32.xlu0 %v1985, 16
        %v2031 = vpop.permute.xlu0 %2030
        %vm2032 = vcmask 130048
        %v2033 = vsel %vm2032, %v2023, %v2025
        %v2034 = vsel %vm2032, %v2025, %v2027
        %v2035 = vsel %vm2032, %v2023, %v2029
        %v2036 = vsel %vm2032, %v2029, %v2031
        %2045 = vrot.lane.b32.xlu0 %v1992, 17
        %v2046 = vpop.permute.xlu0 %2045
        %2047 = vrot.lane.b32.xlu0 %v1993, 17
        %v2048 = vpop.permute.xlu0 %2047
        %2049 = vrot.lane.b32.xlu0 %v1994, 17
        %v2050 = vpop.permute.xlu0 %2049
        %2051 = vrot.lane.b32.xlu0 %v1995, 17
        %v2052 = vpop.permute.xlu0 %2051
        %v2053 = vsel %vm631, %v766, %v2046
        %v2054 = vsel %vm631, %v2046, %v2048
        %v2055 = vsel %vm631, %v766, %v2050
        %v2056 = vsel %vm631, %v2050, %v2052
        %v2061 = vld [vmem:[#allocation12] sm:$0xf]
        %v2062 = vld [vmem:[#allocation12 + $0x4] sm:$0xf]
        %2064 = vset.pattern.permute.xlu0 0
        %2065 = vperm.xlu0 %2064, %v1986
        %v2066 = vpop.permute.xlu0 %2065
        %2069 = vset.pattern.permute.xlu0 0
        %2070 = vperm.xlu0 %2069, %v1987
        %v2071 = vpop.permute.xlu0 %2070
        %v2075 = vunpack.c.l.b16 %v2061
        %v2076 = vunpack.c.l.b16 %v2062
        %v2077 = vpack.c.b16 %v2076, %v2075
        %2079 = vmatprep.subr.bf16.mxu0 %v2056
        %2080 = vmatpush1.bf16.msra.mxu0 %v2055
        %2081 = vmatprep.subr.bf16.mxu0 %v2054
        %2082 = vmatpush1.bf16.msra.mxu0 %v2053
        %2083 = vmatprep.subr.bf16.mxu0 %v2036
        %2084 = vmatpush1.bf16.msra.mxu0 %v2035
        %2085 = vmatprep.subr.bf16.mxu0 %v2034
        %2086 = vmatpush1.bf16.msra.mxu0 %v2033
        %2087 = vmatprep.subr.bf16.mxu0 %v2013
        %2088 = vmatpush1.bf16.msra.mxu0 %v2012
        %2089 = vmatprep.subr.bf16.mxu0 %v2011
        %2090 = vmatpush1.bf16.msra.mxu0 %v2010
        %2091 = vmatprep.subr.bf16.mxu0 %v1985
        %2092 = vmatpush1.bf16.msra.mxu0 %v1984
        %2093 = vmatprep.subr.bf16.mxu0 %v1983
        %2094 = vmatpush1.bf16.msra.mxu0 %v1982
        %2095 = vmatprep.subr.bf16.mxu0 0
        %2096 = vmatpush2.bf16.msra.mxu0 0
        %2097 = vmatprep.subr.bf16.mxu0 0
        %2098 = vmatpush2.bf16.msra.mxu0 0
        %2099 = vmatprep.subr.bf16.mxu0 0
        %2100 = vmatpush2.bf16.msra.mxu0 0
        %2101 = vmatprep.subr.bf16.mxu0 0
        %2102 = vmatpush2.bf16.msra.mxu0 0
        %2103 = vmatprep.subr.bf16.mxu0 0
        %2104 = vmatpush2.bf16.msra.mxu0 0
        %2105 = vmatprep.subr.bf16.mxu0 0
        %2106 = vmatpush2.bf16.msra.mxu0 0
        %2107 = vmatprep.subr.bf16.mxu0 0
        %2108 = vmatpush2.bf16.msra.mxu0 0
        %2109 = vmatprep.subr.bf16.mxu0 0
        %2110 = vmatpush2.bf16.msra.mxu0 0
        %2111 = vmatprep.mubr.bf16.mxu0 0
        %2112 = vmatmul.mubr.bf16.gmra.mxu0 %v2077
        %v2113 = vpop.f32.mrf.mxu0
        %v2114 = vadd.f32 %v2066, %v2113
        %v2115 = vpop.f32.mrf.mxu0
        %v2116 = vadd.f32 %v2066, %v2115
        %v2117 = vpop.f32.mrf.mxu0
        %v2118 = vadd.f32 %v2071, %v2117
        %v2119 = vpop.f32.mrf.mxu0
        %v2120 = vadd.f32 %v2071, %v2119
        %2121 = vdwg.mxu0
        %v2122 = vpack.c.bf16 %v2118, %v2114
        %v2123 = vpack.c.bf16 %v2120, %v2116
        %v2124 = vsel %vm613, %v1982, 0
        %v2125 = vsel %vm614, %v1983, 0
        %v2126 = vsel %vm613, %v1984, 0
        %v2127 = vsel %vm614, %v1985, 0
        %v2128 = vsel %vm593, %v1982, 0
        %v2129 = vsel %vm594, %v1983, 0
        %v2130 = vsel %vm593, %v1984, 0
        %v2131 = vsel %vm594, %v1985, 0
        %2132 = vrot.lane.b32.xlu0 %v1982, 1
        %v2133 = vpop.permute.xlu0 %2132
        %2134 = vrot.lane.b32.xlu0 %v1983, 1
        %v2135 = vpop.permute.xlu0 %2134
        %2136 = vrot.lane.b32.xlu0 %v1984, 1
        %v2137 = vpop.permute.xlu0 %2136
        %2138 = vrot.lane.b32.xlu0 %v1985, 1
        %v2139 = vpop.permute.xlu0 %2138
        %v2140 = vsel %vm611, %v2133, %v2135
        %v2141 = vsel %vm611, %v2137, %v2139
        %2146 = vrot.lane.b32.xlu0 %v2128, 16
        %v2147 = vpop.permute.xlu0 %2146
        %2148 = vrot.lane.b32.xlu0 %v2129, 16
        %v2149 = vpop.permute.xlu0 %2148
        %2150 = vrot.lane.b32.xlu0 %v2130, 16
        %v2151 = vpop.permute.xlu0 %2150
        %2152 = vrot.lane.b32.xlu0 %v2131, 16
        %v2153 = vpop.permute.xlu0 %2152
        %v2154 = vsel %vm2032, %v2023, %v2147
        %v2155 = vsel %vm2032, %v2147, %v2149
        %v2156 = vsel %vm2032, %v2023, %v2151
        %v2157 = vsel %vm2032, %v2151, %v2153
        %2158 = vrot.lane.b32.xlu0 %v1982, 17
        %v2159 = vpop.permute.xlu0 %2158
        %2160 = vrot.lane.b32.xlu0 %v1983, 17
        %v2161 = vpop.permute.xlu0 %2160
        %2162 = vrot.lane.b32.xlu0 %v1984, 17
        %v2163 = vpop.permute.xlu0 %2162
        %2164 = vrot.lane.b32.xlu0 %v1985, 17
        %v2165 = vpop.permute.xlu0 %2164
        %v2166 = vsel %vm631, %v766, %v2159
        %v2167 = vsel %vm631, %v2159, %v2161
        %v2168 = vsel %vm631, %v766, %v2163
        %v2169 = vsel %vm631, %v2163, %v2165
        %s2170 = scalar_lea.vmem [#allocation12], 8
        %v2171 = vld [vmem:[%s2170] sm:$0xf]
        %v2172 = vld [vmem:[%s2170 + $0x4] sm:$0xf]
        %v2175 = vunpack.c.l.b16 %v2171
        %v2176 = vunpack.c.l.b16 %v2172
        %v2177 = vpack.c.b16 %v2176, %v2175
        %2183 = vrot.lane.b32.xlu0 %v2124, 127
        %v2184 = vpop.permute.xlu0 %2183
        %2185 = vrot.lane.b32.xlu0 %v2125, 127
        %v2186 = vpop.permute.xlu0 %2185
        %2187 = vrot.lane.b32.xlu0 %v2126, 127
        %v2188 = vpop.permute.xlu0 %2187
        %2189 = vrot.lane.b32.xlu0 %v2127, 127
        %v2190 = vpop.permute.xlu0 %2189
        %2191 = vrot.lane.b32.xlu0 %v2133, 127
        %v2192 = vpop.permute.xlu0 %2191
        %2193 = vrot.lane.b32.xlu0 %v2140, 127
        %v2194 = vpop.permute.xlu0 %2193
        %2195 = vrot.lane.b32.xlu0 %v2135, 127
        %v2196 = vpop.permute.xlu0 %2195
        %2197 = vrot.lane.b32.xlu0 %v2137, 127
        %v2198 = vpop.permute.xlu0 %2197
        %2199 = vrot.lane.b32.xlu0 %v2141, 127
        %v2200 = vpop.permute.xlu0 %2199
        %2201 = vrot.lane.b32.xlu0 %v2139, 127
        %v2202 = vpop.permute.xlu0 %2201
        %2203 = vrot.lane.b32.xlu0 %v2154, 127
        %v2204 = vpop.permute.xlu0 %2203
        %2205 = vrot.lane.b32.xlu0 %v2155, 127
        %v2206 = vpop.permute.xlu0 %2205
        %2207 = vrot.lane.b32.xlu0 %v2149, 127
        %v2208 = vpop.permute.xlu0 %2207
        %2209 = vrot.lane.b32.xlu0 %v2156, 127
        %v2210 = vpop.permute.xlu0 %2209
        %2211 = vrot.lane.b32.xlu0 %v2157, 127
        %v2212 = vpop.permute.xlu0 %2211
        %2213 = vrot.lane.b32.xlu0 %v2153, 127
        %v2214 = vpop.permute.xlu0 %2213
        %2215 = vrot.lane.b32.xlu0 %v2166, 127
        %v2216 = vpop.permute.xlu0 %2215
        %2217 = vrot.lane.b32.xlu0 %v2167, 127
        %v2218 = vpop.permute.xlu0 %2217
        %2219 = vrot.lane.b32.xlu0 %v2161, 127
        %v2220 = vpop.permute.xlu0 %2219
        %2221 = vrot.lane.b32.xlu0 %v2168, 127
        %v2222 = vpop.permute.xlu0 %2221
        %2223 = vrot.lane.b32.xlu0 %v2169, 127
        %v2224 = vpop.permute.xlu0 %2223
        %2225 = vrot.lane.b32.xlu0 %v2165, 127
        %v2226 = vpop.permute.xlu0 %2225
        %v2227 = vsel %vm601, %v2184, %v2186
        %v2228 = vsel %vm601, %v2186, %v641
        %v2229 = vsel %vm601, %v2188, %v2190
        %v2230 = vsel %vm601, %v2190, %v641
        %v2231 = vsel %vm601, %v2192, %v2194
        %v2232 = vsel %vm601, %v2194, %v2196
        %v2233 = vsel %vm601, %v2198, %v2200
        %v2234 = vsel %vm601, %v2200, %v2202
        %v2235 = vsel %vm601, %v2204, %v2206
        %v2236 = vsel %vm601, %v2206, %v2208
        %v2237 = vsel %vm601, %v2210, %v2212
        %v2238 = vsel %vm601, %v2212, %v2214
        %v2239 = vsel %vm601, %v2216, %v2218
        %v2240 = vsel %vm601, %v2218, %v2220
        %v2241 = vsel %vm601, %v2222, %v2224
        %v2242 = vsel %vm601, %v2224, %v2226
        %2259 = vmatprep.subr.bf16.mxu0 %v2242
        %2260 = vmatpush1.bf16.msra.mxu0 %v2241
        %2261 = vmatprep.subr.bf16.mxu0 %v2240
        %2262 = vmatpush1.bf16.msra.mxu0 %v2239
        %2263 = vmatprep.subr.bf16.mxu0 %v2238
        %2264 = vmatpush1.bf16.msra.mxu0 %v2237
        %2265 = vmatprep.subr.bf16.mxu0 %v2236
        %2266 = vmatpush1.bf16.msra.mxu0 %v2235
        %2267 = vmatprep.subr.bf16.mxu0 %v2234
        %2268 = vmatpush1.bf16.msra.mxu0 %v2233
        %2269 = vmatprep.subr.bf16.mxu0 %v2232
        %2270 = vmatpush1.bf16.msra.mxu0 %v2231
        %2271 = vmatprep.subr.bf16.mxu0 %v2230
        %2272 = vmatpush1.bf16.msra.mxu0 %v2229
        %2273 = vmatprep.subr.bf16.mxu0 %v2228
        %2274 = vmatpush1.bf16.msra.mxu0 %v2227
        %2275 = vmatprep.subr.bf16.mxu0 0
        %2276 = vmatpush2.bf16.msra.mxu0 0
        %2277 = vmatprep.subr.bf16.mxu0 0
        %2278 = vmatpush2.bf16.msra.mxu0 0
        %2279 = vmatprep.subr.bf16.mxu0 0
        %2280 = vmatpush2.bf16.msra.mxu0 0
        %2281 = vmatprep.subr.bf16.mxu0 0
        %2282 = vmatpush2.bf16.msra.mxu0 0
        %2283 = vmatprep.subr.bf16.mxu0 0
        %2284 = vmatpush2.bf16.msra.mxu0 0
        %2285 = vmatprep.subr.bf16.mxu0 0
        %2286 = vmatpush2.bf16.msra.mxu0 0
        %2287 = vmatprep.subr.bf16.mxu0 0
        %2288 = vmatpush2.bf16.msra.mxu0 0
        %2289 = vmatprep.subr.bf16.mxu0 0
        %2290 = vmatpush2.bf16.msra.mxu0 0
        %2291 = vmatprep.mubr.bf16.mxu0 0
        %2292 = vmatmul.mubr.bf16.gmra.mxu0 %v2177
        %v2293 = vpop.f32.mrf.mxu0
        %v2294 = vadd.f32 %v2066, %v2293
        %v2295 = vpop.f32.mrf.mxu0
        %v2296 = vadd.f32 %v2066, %v2295
        %v2297 = vpop.f32.mrf.mxu0
        %v2298 = vadd.f32 %v2071, %v2297
        %v2299 = vpop.f32.mrf.mxu0
        %v2300 = vadd.f32 %v2071, %v2299
        %2301 = vdwg.mxu0
        %v2302 = vpack.c.bf16 %v2298, %v2294
        %v2303 = vpack.c.bf16 %v2300, %v2296
        %v2304 = vsel %vm623, %v1982, 0
        %v2305 = vsel %vm624, %v1983, 0
        %v2306 = vsel %vm623, %v1984, 0
        %v2307 = vsel %vm624, %v1985, 0
        %2312 = vrot.lane.b32.xlu0 %v2304, 1
        %v2313 = vpop.permute.xlu0 %2312
        %2314 = vrot.lane.b32.xlu0 %v2305, 1
        %v2315 = vpop.permute.xlu0 %2314
        %2316 = vrot.lane.b32.xlu0 %v2306, 1
        %v2317 = vpop.permute.xlu0 %2316
        %2318 = vrot.lane.b32.xlu0 %v2307, 1
        %v2319 = vpop.permute.xlu0 %2318
        %v2320 = vsel %vm611, %v2313, %v2315
        %v2321 = vsel %vm611, %v2315, %v2001
        %v2322 = vsel %vm611, %v2317, %v2319
        %v2323 = vsel %vm611, %v2319, %v2001
        %2324 = vrot.lane.b32.xlu0 %v1988, 17
        %v2325 = vpop.permute.xlu0 %2324
        %2326 = vrot.lane.b32.xlu0 %v1989, 17
        %v2327 = vpop.permute.xlu0 %2326
        %2328 = vrot.lane.b32.xlu0 %v1990, 17
        %v2329 = vpop.permute.xlu0 %2328
        %2330 = vrot.lane.b32.xlu0 %v1991, 17
        %v2331 = vpop.permute.xlu0 %2330
        %v2332 = vsel %vm631, %v766, %v2325
        %v2333 = vsel %vm631, %v2325, %v2327
        %v2334 = vsel %vm631, %v766, %v2329
        %v2335 = vsel %vm631, %v2329, %v2331
        %s2336 = scalar_lea.vmem [#allocation12], 16
        %v2337 = vld [vmem:[%s2336] sm:$0xf]
        %v2338 = vld [vmem:[%s2336 + $0x4] sm:$0xf]
        %v2341 = vunpack.c.l.b16 %v2337
        %v2342 = vunpack.c.l.b16 %v2338
        %v2343 = vpack.c.b16 %v2342, %v2341
        %2345 = vrot.lane.b32.xlu0 %v1982, 112
        %v2346 = vpop.permute.xlu0 %2345
        %2347 = vrot.lane.b32.xlu0 %v1983, 112
        %v2348 = vpop.permute.xlu0 %2347
        %2349 = vrot.lane.b32.xlu0 %v1984, 112
        %v2350 = vpop.permute.xlu0 %2349
        %2351 = vrot.lane.b32.xlu0 %v1985, 112
        %v2352 = vpop.permute.xlu0 %2351
        %2353 = vrot.lane.b32.xlu0 %v2313, 112
        %v2354 = vpop.permute.xlu0 %2353
        %2355 = vrot.lane.b32.xlu0 %v2320, 112
        %v2356 = vpop.permute.xlu0 %2355
        %2357 = vrot.lane.b32.xlu0 %v2321, 112
        %v2358 = vpop.permute.xlu0 %2357
        %2359 = vrot.lane.b32.xlu0 %v2317, 112
        %v2360 = vpop.permute.xlu0 %2359
        %2361 = vrot.lane.b32.xlu0 %v2322, 112
        %v2362 = vpop.permute.xlu0 %2361
        %2363 = vrot.lane.b32.xlu0 %v2323, 112
        %v2364 = vpop.permute.xlu0 %2363
        %2365 = vrot.lane.b32.xlu0 %v2025, 112
        %v2366 = vpop.permute.xlu0 %2365
        %2367 = vrot.lane.b32.xlu0 %v2034, 112
        %v2368 = vpop.permute.xlu0 %2367
        %2369 = vrot.lane.b32.xlu0 %v2027, 112
        %v2370 = vpop.permute.xlu0 %2369
        %2371 = vrot.lane.b32.xlu0 %v2029, 112
        %v2372 = vpop.permute.xlu0 %2371
        %2373 = vrot.lane.b32.xlu0 %v2036, 112
        %v2374 = vpop.permute.xlu0 %2373
        %2375 = vrot.lane.b32.xlu0 %v2031, 112
        %v2376 = vpop.permute.xlu0 %2375
        %2377 = vrot.lane.b32.xlu0 %v2332, 112
        %v2378 = vpop.permute.xlu0 %2377
        %2379 = vrot.lane.b32.xlu0 %v2333, 112
        %v2380 = vpop.permute.xlu0 %2379
        %2381 = vrot.lane.b32.xlu0 %v2327, 112
        %v2382 = vpop.permute.xlu0 %2381
        %2383 = vrot.lane.b32.xlu0 %v2334, 112
        %v2384 = vpop.permute.xlu0 %2383
        %2385 = vrot.lane.b32.xlu0 %v2335, 112
        %v2386 = vpop.permute.xlu0 %2385
        %2387 = vrot.lane.b32.xlu0 %v2331, 112
        %v2388 = vpop.permute.xlu0 %2387
        %v2389 = vsel %vm667, %v2346, %v2348
        %v2390 = vsel %vm667, %v2348, %v662
        %v2391 = vsel %vm667, %v2350, %v2352
        %v2392 = vsel %vm667, %v2352, %v662
        %v2393 = vsel %vm667, %v2354, %v2356
        %v2394 = vsel %vm667, %v2356, %v2358
        %v2395 = vsel %vm667, %v2360, %v2362
        %v2396 = vsel %vm667, %v2362, %v2364
        %v2397 = vsel %vm667, %v2366, %v2368
        %v2398 = vsel %vm667, %v2368, %v2370
        %v2399 = vsel %vm667, %v2372, %v2374
        %v2400 = vsel %vm667, %v2374, %v2376
        %v2401 = vsel %vm667, %v2378, %v2380
        %v2402 = vsel %vm667, %v2380, %v2382
        %v2403 = vsel %vm667, %v2384, %v2386
        %v2404 = vsel %vm667, %v2386, %v2388
        %2421 = vmatprep.subr.bf16.mxu0 %v2404
        %2422 = vmatpush1.bf16.msra.mxu0 %v2403
        %2423 = vmatprep.subr.bf16.mxu0 %v2402
        %2424 = vmatpush1.bf16.msra.mxu0 %v2401
        %2425 = vmatprep.subr.bf16.mxu0 %v2400
        %2426 = vmatpush1.bf16.msra.mxu0 %v2399
        %2427 = vmatprep.subr.bf16.mxu0 %v2398
        %2428 = vmatpush1.bf16.msra.mxu0 %v2397
        %2429 = vmatprep.subr.bf16.mxu0 %v2396
        %2430 = vmatpush1.bf16.msra.mxu0 %v2395
        %2431 = vmatprep.subr.bf16.mxu0 %v2394
        %2432 = vmatpush1.bf16.msra.mxu0 %v2393
        %2433 = vmatprep.subr.bf16.mxu0 %v2392
        %2434 = vmatpush1.bf16.msra.mxu0 %v2391
        %2435 = vmatprep.subr.bf16.mxu0 %v2390
        %2436 = vmatpush1.bf16.msra.mxu0 %v2389
        %2437 = vmatprep.subr.bf16.mxu0 0
        %2438 = vmatpush2.bf16.msra.mxu0 0
        %2439 = vmatprep.subr.bf16.mxu0 0
        %2440 = vmatpush2.bf16.msra.mxu0 0
        %2441 = vmatprep.subr.bf16.mxu0 0
        %2442 = vmatpush2.bf16.msra.mxu0 0
        %2443 = vmatprep.subr.bf16.mxu0 0
        %2444 = vmatpush2.bf16.msra.mxu0 0
        %2445 = vmatprep.subr.bf16.mxu0 0
        %2446 = vmatpush2.bf16.msra.mxu0 0
        %2447 = vmatprep.subr.bf16.mxu0 0
        %2448 = vmatpush2.bf16.msra.mxu0 0
        %2449 = vmatprep.subr.bf16.mxu0 0
        %2450 = vmatpush2.bf16.msra.mxu0 0
        %2451 = vmatprep.subr.bf16.mxu0 0
        %2452 = vmatpush2.bf16.msra.mxu0 0
        %2453 = vmatprep.mubr.bf16.mxu0 0
        %2454 = vmatmul.mubr.bf16.gmra.mxu0 %v2343
        %v2455 = vpop.f32.mrf.mxu0
        %v2456 = vadd.f32 %v2066, %v2455
        %v2457 = vpop.f32.mrf.mxu0
        %v2458 = vadd.f32 %v2066, %v2457
        %v2459 = vpop.f32.mrf.mxu0
        %v2460 = vadd.f32 %v2071, %v2459
        %v2461 = vpop.f32.mrf.mxu0
        %v2462 = vadd.f32 %v2071, %v2461
        %2463 = vdwg.mxu0
        %v2464 = vpack.c.bf16 %v2460, %v2456
        %v2465 = vpack.c.bf16 %v2462, %v2458
        %v2466 = vsel %vm633, %v1982, 0
        %v2467 = vsel %vm634, %v1983, 0
        %v2468 = vsel %vm633, %v1984, 0
        %v2469 = vsel %vm634, %v1985, 0
        %v2470 = vsel %vm611, %v2135, %v2001
        %v2471 = vsel %vm611, %v2139, %v2001
        %2472 = vrot.lane.b32.xlu0 %v2124, 16
        %v2473 = vpop.permute.xlu0 %2472
        %2474 = vrot.lane.b32.xlu0 %v2125, 16
        %v2475 = vpop.permute.xlu0 %2474
        %2476 = vrot.lane.b32.xlu0 %v2126, 16
        %v2477 = vpop.permute.xlu0 %2476
        %2478 = vrot.lane.b32.xlu0 %v2127, 16
        %v2479 = vpop.permute.xlu0 %2478
        %v2480 = vsel %vm2032, %v2473, %v2475
        %v2481 = vsel %vm2032, %v2475, %v2023
        %v2482 = vsel %vm2032, %v2477, %v2479
        %v2483 = vsel %vm2032, %v2479, %v2023
        %s2484 = scalar_lea.vmem [#allocation12], 24
        %v2485 = vld [vmem:[%s2484] sm:$0xf]
        %v2486 = vld [vmem:[%s2484 + $0x4] sm:$0xf]
        %v2489 = vunpack.c.l.b16 %v2485
        %v2490 = vunpack.c.l.b16 %v2486
        %v2491 = vpack.c.b16 %v2490, %v2489
        %2497 = vrot.lane.b32.xlu0 %v2466, 111
        %v2498 = vpop.permute.xlu0 %2497
        %2499 = vrot.lane.b32.xlu0 %v2467, 111
        %v2500 = vpop.permute.xlu0 %2499
        %2501 = vrot.lane.b32.xlu0 0, 111
        %v2502 = vpop.permute.xlu0 %2501
        %2503 = vrot.lane.b32.xlu0 %v2468, 111
        %v2504 = vpop.permute.xlu0 %2503
        %2505 = vrot.lane.b32.xlu0 %v2469, 111
        %v2506 = vpop.permute.xlu0 %2505
        %2507 = vrot.lane.b32.xlu0 %v2133, 111
        %v2508 = vpop.permute.xlu0 %2507
        %2509 = vrot.lane.b32.xlu0 %v2140, 111
        %v2510 = vpop.permute.xlu0 %2509
        %2511 = vrot.lane.b32.xlu0 %v2470, 111
        %v2512 = vpop.permute.xlu0 %2511
        %2513 = vrot.lane.b32.xlu0 %v2137, 111
        %v2514 = vpop.permute.xlu0 %2513
        %2515 = vrot.lane.b32.xlu0 %v2141, 111
        %v2516 = vpop.permute.xlu0 %2515
        %2517 = vrot.lane.b32.xlu0 %v2471, 111
        %v2518 = vpop.permute.xlu0 %2517
        %2519 = vrot.lane.b32.xlu0 %v2473, 111
        %v2520 = vpop.permute.xlu0 %2519
        %2521 = vrot.lane.b32.xlu0 %v2480, 111
        %v2522 = vpop.permute.xlu0 %2521
        %2523 = vrot.lane.b32.xlu0 %v2481, 111
        %v2524 = vpop.permute.xlu0 %2523
        %2525 = vrot.lane.b32.xlu0 %v2477, 111
        %v2526 = vpop.permute.xlu0 %2525
        %2527 = vrot.lane.b32.xlu0 %v2482, 111
        %v2528 = vpop.permute.xlu0 %2527
        %2529 = vrot.lane.b32.xlu0 %v2483, 111
        %v2530 = vpop.permute.xlu0 %2529
        %2531 = vrot.lane.b32.xlu0 %v2159, 111
        %v2532 = vpop.permute.xlu0 %2531
        %2533 = vrot.lane.b32.xlu0 %v2167, 111
        %v2534 = vpop.permute.xlu0 %2533
        %2535 = vrot.lane.b32.xlu0 %v2161, 111
        %v2536 = vpop.permute.xlu0 %2535
        %2537 = vrot.lane.b32.xlu0 %v2163, 111
        %v2538 = vpop.permute.xlu0 %2537
        %2539 = vrot.lane.b32.xlu0 %v2169, 111
        %v2540 = vpop.permute.xlu0 %2539
        %2541 = vrot.lane.b32.xlu0 %v2165, 111
        %v2542 = vpop.permute.xlu0 %2541
        %v2543 = vsel %vm567, %v2498, %v2500
        %v2544 = vsel %vm567, %v2500, %v2502
        %v2545 = vsel %vm567, %v2504, %v2506
        %v2546 = vsel %vm567, %v2506, %v2502
        %v2547 = vsel %vm567, %v2508, %v2510
        %v2548 = vsel %vm567, %v2510, %v2512
        %v2549 = vsel %vm567, %v2514, %v2516
        %v2550 = vsel %vm567, %v2516, %v2518
        %v2551 = vsel %vm567, %v2520, %v2522
        %v2552 = vsel %vm567, %v2522, %v2524
        %v2553 = vsel %vm567, %v2526, %v2528
        %v2554 = vsel %vm567, %v2528, %v2530
        %v2555 = vsel %vm567, %v2532, %v2534
        %v2556 = vsel %vm567, %v2534, %v2536
        %v2557 = vsel %vm567, %v2538, %v2540
        %v2558 = vsel %vm567, %v2540, %v2542
        %2575 = vmatprep.subr.bf16.mxu0 %v2558
        %2576 = vmatpush1.bf16.msra.mxu0 %v2557
        %2577 = vmatprep.subr.bf16.mxu0 %v2556
        %2578 = vmatpush1.bf16.msra.mxu0 %v2555
        %2579 = vmatprep.subr.bf16.mxu0 %v2554
        %2580 = vmatpush1.bf16.msra.mxu0 %v2553
        %2581 = vmatprep.subr.bf16.mxu0 %v2552
        %2582 = vmatpush1.bf16.msra.mxu0 %v2551
        %2583 = vmatprep.subr.bf16.mxu0 %v2550
        %2584 = vmatpush1.bf16.msra.mxu0 %v2549
        %2585 = vmatprep.subr.bf16.mxu0 %v2548
        %2586 = vmatpush1.bf16.msra.mxu0 %v2547
        %2587 = vmatprep.subr.bf16.mxu0 %v2546
        %2588 = vmatpush1.bf16.msra.mxu0 %v2545
        %2589 = vmatprep.subr.bf16.mxu0 %v2544
        %2590 = vmatpush1.bf16.msra.mxu0 %v2543
        %2591 = vmatprep.subr.bf16.mxu0 0
        %2592 = vmatpush2.bf16.msra.mxu0 0
        %2593 = vmatprep.subr.bf16.mxu0 0
        %2594 = vmatpush2.bf16.msra.mxu0 0
        %2595 = vmatprep.subr.bf16.mxu0 0
        %2596 = vmatpush2.bf16.msra.mxu0 0
        %2597 = vmatprep.subr.bf16.mxu0 0
        %2598 = vmatpush2.bf16.msra.mxu0 0
        %2599 = vmatprep.subr.bf16.mxu0 0
        %2600 = vmatpush2.bf16.msra.mxu0 0
        %2601 = vmatprep.subr.bf16.mxu0 0
        %2602 = vmatpush2.bf16.msra.mxu0 0
        %2603 = vmatprep.subr.bf16.mxu0 0
        %2604 = vmatpush2.bf16.msra.mxu0 0
        %2605 = vmatprep.subr.bf16.mxu0 0
        %2606 = vmatpush2.bf16.msra.mxu0 0
        %2607 = vmatprep.mubr.bf16.mxu0 0
        %2608 = vmatmul.mubr.bf16.gmra.mxu0 %v2491
        %v2609 = vpop.f32.mrf.mxu0
        %v2610 = vadd.f32 %v2066, %v2609
        %v2611 = vpop.f32.mrf.mxu0
        %v2612 = vadd.f32 %v2066, %v2611
        %v2613 = vpop.f32.mrf.mxu0
        %v2614 = vadd.f32 %v2071, %v2613
        %v2615 = vpop.f32.mrf.mxu0
        %v2616 = vadd.f32 %v2071, %v2615
        %2617 = vdwg.mxu0
        %v2618 = vpack.c.bf16 %v2614, %v2610
        %v2619 = vpack.c.bf16 %v2616, %v2612
        %v2620 = vld [vmem:[#allocation16] sm:$0x7]
        %v2621 = vsel %vm603, %v2302, 0
        %v2622 = vsel %vm604, %v2303, 0
        %v2623 = vsel %vm569, %v2618, 0
        %v2624 = vsel %vm570, %v2619, 0
        %2627 = vrot.lane.b32.xlu0 %v2621, 1
        %v2628 = vpop.permute.xlu0 %2627
        %2629 = vrot.lane.b32.xlu0 %v2622, 1
        %v2630 = vpop.permute.xlu0 %2629
        %v2631 = vsel %vm611, %v2001, %v2628
        %v2632 = vsel %vm611, %v2628, %v2630
        %2637 = vrot.lane.b32.xlu0 %v2464, 16
        %v2638 = vpop.permute.xlu0 %2637
        %2639 = vrot.lane.b32.xlu0 %v2465, 16
        %v2640 = vpop.permute.xlu0 %2639
        %v2641 = vsel %vm2032, %v2023, %v2638
        %v2642 = vsel %vm2032, %v2638, %v2640
        %2647 = vrot.lane.b32.xlu0 %v2623, 17
        %v2648 = vpop.permute.xlu0 %2647
        %2649 = vrot.lane.b32.xlu0 %v2624, 17
        %v2650 = vpop.permute.xlu0 %2649
        %v2651 = vsel %vm631, %v766, %v2648
        %v2652 = vsel %vm631, %v2648, %v2650
        %v2655 = vld [vmem:[#allocation15] sm:$0x3]
        %2657 = vset.pattern.permute.xlu0 0
        %2658 = vperm.xlu0 %2657, %v2620
        %v2659 = vpop.permute.xlu0 %2658
        %vm2661 = vcmask 523264
        %v2663 = vsel %vm2661, %v2655, 0
        %2665 = vmatprep.subr.bf16.mxu0 0
        %2666 = vmatpush1.bf16.msra.mxu0 0
        %2667 = vmatprep.subr.bf16.mxu0 0
        %2668 = vmatpush1.bf16.msra.mxu0 0
        %2669 = vmatprep.subr.bf16.mxu0 0
        %2670 = vmatpush1.bf16.msra.mxu0 0
        %2671 = vmatprep.subr.bf16.mxu0 0
        %2672 = vmatpush1.bf16.msra.mxu0 0
        %2673 = vmatprep.subr.bf16.mxu0 %v2652
        %2674 = vmatpush1.bf16.msra.mxu0 %v2651
        %2675 = vmatprep.subr.bf16.mxu0 %v2642
        %2676 = vmatpush1.bf16.msra.mxu0 %v2641
        %2677 = vmatprep.subr.bf16.mxu0 %v2632
        %2678 = vmatpush1.bf16.msra.mxu0 %v2631
        %2679 = vmatprep.subr.bf16.mxu0 %v2123
        %2680 = vmatpush1.bf16.msra.mxu0 %v2122
        %2681 = vmatprep.subr.bf16.mxu0 0
        %2682 = vmatpush2.bf16.msra.mxu0 0
        %2683 = vmatprep.subr.bf16.mxu0 0
        %2684 = vmatpush2.bf16.msra.mxu0 0
        %2685 = vmatprep.subr.bf16.mxu0 0
        %2686 = vmatpush2.bf16.msra.mxu0 0
        %2687 = vmatprep.subr.bf16.mxu0 0
        %2688 = vmatpush2.bf16.msra.mxu0 0
        %2689 = vmatprep.subr.bf16.mxu0 0
        %2690 = vmatpush2.bf16.msra.mxu0 0
        %2691 = vmatprep.subr.bf16.mxu0 0
        %2692 = vmatpush2.bf16.msra.mxu0 0
        %2693 = vmatprep.subr.bf16.mxu0 0
        %2694 = vmatpush2.bf16.msra.mxu0 0
        %2695 = vmatprep.subr.bf16.mxu0 0
        %2696 = vmatpush2.bf16.msra.mxu0 0
        %2697 = vmatprep.mubr.bf16.mxu0 0
        %2698 = vmatmul.mubr.bf16.gmra.mxu0 %v2663
        %v2699 = vpop.f32.mrf.mxu0
        %v2700 = vadd.f32 %v2659, %v2699
        %v2701 = vpop.f32.mrf.mxu0
        %v2702 = vadd.f32 %v2659, %v2701
        %v2703 = vpop.f32.mrf.mxu0
        %v2704 = vpop.f32.mrf.mxu0
        %2705 = vdwg.mxu0
        %v2708 = vcombine.low %v2700, %v2702
        %2710 = vst [vmem:[%s530] sm:$0x77] %v2708
        %2713 = vrot.lane.b32.xlu0 %v2618, 16
        %v2714 = vpop.permute.xlu0 %2713
        %2715 = vrot.lane.b32.xlu0 %v2619, 16
        %v2716 = vpop.permute.xlu0 %2715
        %v2717 = vsel %vm2032, %v2023, %v2714
        %v2718 = vsel %vm2032, %v2714, %v2716
        %s2721 = scalar_lea.vmem [#allocation15], 2
        %v2722 = vld [vmem:[%s2721] sm:$0x3]
        %v2724 = vsel %vm2661, %v2722, 0
        %2726 = vmatprep.subr.bf16.mxu0 0
        %2727 = vmatpush1.bf16.msra.mxu0 0
        %2728 = vmatprep.subr.bf16.mxu0 0
        %2729 = vmatpush1.bf16.msra.mxu0 0
        %2730 = vmatprep.subr.bf16.mxu0 0
        %2731 = vmatpush1.bf16.msra.mxu0 0
        %2732 = vmatprep.subr.bf16.mxu0 0
        %2733 = vmatpush1.bf16.msra.mxu0 0
        %2734 = vmatprep.subr.bf16.mxu0 %v2642
        %2735 = vmatpush1.bf16.msra.mxu0 %v2641
        %2736 = vmatprep.subr.bf16.mxu0 %v2718
        %2737 = vmatpush1.bf16.msra.mxu0 %v2717
        %2738 = vmatprep.subr.bf16.mxu0 %v2123
        %2739 = vmatpush1.bf16.msra.mxu0 %v2122
        %2740 = vmatprep.subr.bf16.mxu0 %v2303
        %2741 = vmatpush1.bf16.msra.mxu0 %v2302
        %2742 = vmatprep.subr.bf16.mxu0 0
        %2743 = vmatpush2.bf16.msra.mxu0 0
        %2744 = vmatprep.subr.bf16.mxu0 0
        %2745 = vmatpush2.bf16.msra.mxu0 0
        %2746 = vmatprep.subr.bf16.mxu0 0
        %2747 = vmatpush2.bf16.msra.mxu0 0
        %2748 = vmatprep.subr.bf16.mxu0 0
        %2749 = vmatpush2.bf16.msra.mxu0 0
        %2750 = vmatprep.subr.bf16.mxu0 0
        %2751 = vmatpush2.bf16.msra.mxu0 0
        %2752 = vmatprep.subr.bf16.mxu0 0
        %2753 = vmatpush2.bf16.msra.mxu0 0
        %2754 = vmatprep.subr.bf16.mxu0 0
        %2755 = vmatpush2.bf16.msra.mxu0 0
        %2756 = vmatprep.subr.bf16.mxu0 0
        %2757 = vmatpush2.bf16.msra.mxu0 0
        %2758 = vmatprep.mubr.bf16.mxu0 0
        %2759 = vmatmul.mubr.bf16.gmra.mxu0 %v2724
        %v2760 = vpop.f32.mrf.mxu0
        %v2761 = vadd.f32 %v2659, %v2760
        %v2762 = vpop.f32.mrf.mxu0
        %v2763 = vadd.f32 %v2659, %v2762
        %v2764 = vpop.f32.mrf.mxu0
        %v2765 = vpop.f32.mrf.mxu0
        %2766 = vdwg.mxu0
        %v2769 = vcombine.low %v2761, %v2763
        %s2771 = scalar_lea.vmem %s530, 8
        %2772 = vst [vmem:[%s2771] sm:$0x77] %v2769
        %s2773 = scalar_lea.vmem [#allocation15], 4
        %v2774 = vld [vmem:[%s2773] sm:$0x3]
        %v2776 = vsel %vm2661, %v2774, 0
        %2778 = vmatprep.subr.bf16.mxu0 0
        %2779 = vmatpush1.bf16.msra.mxu0 0
        %2780 = vmatprep.subr.bf16.mxu0 0
        %2781 = vmatpush1.bf16.msra.mxu0 0
        %2782 = vmatprep.subr.bf16.mxu0 0
        %2783 = vmatpush1.bf16.msra.mxu0 0
        %2784 = vmatprep.subr.bf16.mxu0 0
        %2785 = vmatpush1.bf16.msra.mxu0 0
        %2786 = vmatprep.subr.bf16.mxu0 %v2642
        %2787 = vmatpush1.bf16.msra.mxu0 %v2641
        %2788 = vmatprep.subr.bf16.mxu0 %v2718
        %2789 = vmatpush1.bf16.msra.mxu0 %v2717
        %2790 = vmatprep.subr.bf16.mxu0 %v2123
        %2791 = vmatpush1.bf16.msra.mxu0 %v2122
        %2792 = vmatprep.subr.bf16.mxu0 %v2303
        %2793 = vmatpush1.bf16.msra.mxu0 %v2302
        %2794 = vmatprep.subr.bf16.mxu0 0
        %2795 = vmatpush2.bf16.msra.mxu0 0
        %2796 = vmatprep.subr.bf16.mxu0 0
        %2797 = vmatpush2.bf16.msra.mxu0 0
        %2798 = vmatprep.subr.bf16.mxu0 0
        %2799 = vmatpush2.bf16.msra.mxu0 0
        %2800 = vmatprep.subr.bf16.mxu0 0
        %2801 = vmatpush2.bf16.msra.mxu0 0
        %2802 = vmatprep.subr.bf16.mxu0 0
        %2803 = vmatpush2.bf16.msra.mxu0 0
        %2804 = vmatprep.subr.bf16.mxu0 0
        %2805 = vmatpush2.bf16.msra.mxu0 0
        %2806 = vmatprep.subr.bf16.mxu0 0
        %2807 = vmatpush2.bf16.msra.mxu0 0
        %2808 = vmatprep.subr.bf16.mxu0 0
        %2809 = vmatpush2.bf16.msra.mxu0 0
        %2810 = vmatprep.mubr.bf16.mxu0 0
        %2811 = vmatmul.mubr.bf16.gmra.mxu0 %v2776
        %v2812 = vpop.f32.mrf.mxu0
        %v2813 = vadd.f32 %v2659, %v2812
        %v2814 = vpop.f32.mrf.mxu0
        %v2815 = vadd.f32 %v2659, %v2814
        %v2816 = vpop.f32.mrf.mxu0
        %v2817 = vpop.f32.mrf.mxu0
        %2818 = vdwg.mxu0
        %v2821 = vcombine.low %v2813, %v2815
        %s2823 = scalar_lea.vmem %s530, 16
        %2824 = vst [vmem:[%s2823] sm:$0x77] %v2821
        %v2825 = vsel %vm613, %v2122, 0
        %v2826 = vsel %vm614, %v2123, 0
        %v2827 = vsel %vm593, %v2464, 0
        %v2828 = vsel %vm594, %v2465, 0
        %2831 = vrot.lane.b32.xlu0 %v2302, 1
        %v2832 = vpop.permute.xlu0 %2831
        %2833 = vrot.lane.b32.xlu0 %v2303, 1
        %v2834 = vpop.permute.xlu0 %2833
        %v2835 = vsel %vm611, %v2832, %v2834
        %2838 = vrot.lane.b32.xlu0 %v2827, 16
        %v2839 = vpop.permute.xlu0 %2838
        %2840 = vrot.lane.b32.xlu0 %v2828, 16
        %v2841 = vpop.permute.xlu0 %2840
        %v2842 = vsel %vm2032, %v2023, %v2839
        %v2843 = vsel %vm2032, %v2839, %v2841
        %2844 = vrot.lane.b32.xlu0 %v2618, 17
        %v2845 = vpop.permute.xlu0 %2844
        %2846 = vrot.lane.b32.xlu0 %v2619, 17
        %v2847 = vpop.permute.xlu0 %2846
        %v2848 = vsel %vm631, %v766, %v2845
        %v2849 = vsel %vm631, %v2845, %v2847
        %s2850 = scalar_lea.vmem [#allocation15], 6
        %v2851 = vld [vmem:[%s2850] sm:$0x3]
        %2854 = vrot.lane.b32.xlu0 %v2825, 127
        %v2855 = vpop.permute.xlu0 %2854
        %2856 = vrot.lane.b32.xlu0 %v2826, 127
        %v2857 = vpop.permute.xlu0 %2856
        %2858 = vrot.lane.b32.xlu0 %v2832, 127
        %v2859 = vpop.permute.xlu0 %2858
        %2860 = vrot.lane.b32.xlu0 %v2835, 127
        %v2861 = vpop.permute.xlu0 %2860
        %2862 = vrot.lane.b32.xlu0 %v2834, 127
        %v2863 = vpop.permute.xlu0 %2862
        %2864 = vrot.lane.b32.xlu0 %v2842, 127
        %v2865 = vpop.permute.xlu0 %2864
        %2866 = vrot.lane.b32.xlu0 %v2843, 127
        %v2867 = vpop.permute.xlu0 %2866
        %2868 = vrot.lane.b32.xlu0 %v2841, 127
        %v2869 = vpop.permute.xlu0 %2868
        %2870 = vrot.lane.b32.xlu0 %v2848, 127
        %v2871 = vpop.permute.xlu0 %2870
        %2872 = vrot.lane.b32.xlu0 %v2849, 127
        %v2873 = vpop.permute.xlu0 %2872
        %2874 = vrot.lane.b32.xlu0 %v2847, 127
        %v2875 = vpop.permute.xlu0 %2874
        %v2876 = vsel %vm601, %v2855, %v2857
        %v2877 = vsel %vm601, %v2857, %v641
        %v2878 = vsel %vm601, %v2859, %v2861
        %v2879 = vsel %vm601, %v2861, %v2863
        %v2880 = vsel %vm601, %v2865, %v2867
        %v2881 = vsel %vm601, %v2867, %v2869
        %v2882 = vsel %vm601, %v2871, %v2873
        %v2883 = vsel %vm601, %v2873, %v2875
        %v2893 = vsel %vm2661, %v2851, 0
        %2895 = vmatprep.subr.bf16.mxu0 0
        %2896 = vmatpush1.bf16.msra.mxu0 0
        %2897 = vmatprep.subr.bf16.mxu0 0
        %2898 = vmatpush1.bf16.msra.mxu0 0
        %2899 = vmatprep.subr.bf16.mxu0 0
        %2900 = vmatpush1.bf16.msra.mxu0 0
        %2901 = vmatprep.subr.bf16.mxu0 0
        %2902 = vmatpush1.bf16.msra.mxu0 0
        %2903 = vmatprep.subr.bf16.mxu0 %v2883
        %2904 = vmatpush1.bf16.msra.mxu0 %v2882
        %2905 = vmatprep.subr.bf16.mxu0 %v2881
        %2906 = vmatpush1.bf16.msra.mxu0 %v2880
        %2907 = vmatprep.subr.bf16.mxu0 %v2879
        %2908 = vmatpush1.bf16.msra.mxu0 %v2878
        %2909 = vmatprep.subr.bf16.mxu0 %v2877
        %2910 = vmatpush1.bf16.msra.mxu0 %v2876
        %2911 = vmatprep.subr.bf16.mxu0 0
        %2912 = vmatpush2.bf16.msra.mxu0 0
        %2913 = vmatprep.subr.bf16.mxu0 0
        %2914 = vmatpush2.bf16.msra.mxu0 0
        %2915 = vmatprep.subr.bf16.mxu0 0
        %2916 = vmatpush2.bf16.msra.mxu0 0
        %2917 = vmatprep.subr.bf16.mxu0 0
        %2918 = vmatpush2.bf16.msra.mxu0 0
        %2919 = vmatprep.subr.bf16.mxu0 0
        %2920 = vmatpush2.bf16.msra.mxu0 0
        %2921 = vmatprep.subr.bf16.mxu0 0
        %2922 = vmatpush2.bf16.msra.mxu0 0
        %2923 = vmatprep.subr.bf16.mxu0 0
        %2924 = vmatpush2.bf16.msra.mxu0 0
        %2925 = vmatprep.subr.bf16.mxu0 0
        %2926 = vmatpush2.bf16.msra.mxu0 0
        %2927 = vmatprep.mubr.bf16.mxu0 0
        %2928 = vmatmul.mubr.bf16.gmra.mxu0 %v2893
        %v2929 = vpop.f32.mrf.mxu0
        %v2930 = vadd.f32 %v2659, %v2929
        %v2931 = vpop.f32.mrf.mxu0
        %v2932 = vadd.f32 %v2659, %v2931
        %v2933 = vpop.f32.mrf.mxu0
        %v2934 = vpop.f32.mrf.mxu0
        %2935 = vdwg.mxu0
        %v2938 = vcombine.low %v2930, %v2932
        %s2940 = scalar_lea.vmem %s530, 24
        %2941 = vst [vmem:[%s2940] sm:$0x77] %v2938
        %v2942 = vsel %vm603, %v2618, 0
        %v2943 = vsel %vm604, %v2619, 0
        %2946 = vrot.lane.b32.xlu0 %v2942, 1
        %v2947 = vpop.permute.xlu0 %2946
        %2948 = vrot.lane.b32.xlu0 %v2943, 1
        %v2949 = vpop.permute.xlu0 %2948
        %v2950 = vsel %vm611, %v2001, %v2947
        %v2951 = vsel %vm611, %v2947, %v2949
        %s2954 = scalar_lea.vmem [#allocation15], 8
        %v2955 = vld [vmem:[%s2954] sm:$0x3]
        %v2957 = vsel %vm2661, %v2955, 0
        %2959 = vmatprep.subr.bf16.mxu0 0
        %2960 = vmatpush1.bf16.msra.mxu0 0
        %2961 = vmatprep.subr.bf16.mxu0 0
        %2962 = vmatpush1.bf16.msra.mxu0 0
        %2963 = vmatprep.subr.bf16.mxu0 0
        %2964 = vmatpush1.bf16.msra.mxu0 0
        %2965 = vmatprep.subr.bf16.mxu0 0
        %2966 = vmatpush1.bf16.msra.mxu0 0
        %2967 = vmatprep.subr.bf16.mxu0 %v2632
        %2968 = vmatpush1.bf16.msra.mxu0 %v2631
        %2969 = vmatprep.subr.bf16.mxu0 %v2123
        %2970 = vmatpush1.bf16.msra.mxu0 %v2122
        %2971 = vmatprep.subr.bf16.mxu0 %v2951
        %2972 = vmatpush1.bf16.msra.mxu0 %v2950
        %2973 = vmatprep.subr.bf16.mxu0 %v2465
        %2974 = vmatpush1.bf16.msra.mxu0 %v2464
        %2975 = vmatprep.subr.bf16.mxu0 0
        %2976 = vmatpush2.bf16.msra.mxu0 0
        %2977 = vmatprep.subr.bf16.mxu0 0
        %2978 = vmatpush2.bf16.msra.mxu0 0
        %2979 = vmatprep.subr.bf16.mxu0 0
        %2980 = vmatpush2.bf16.msra.mxu0 0
        %2981 = vmatprep.subr.bf16.mxu0 0
        %2982 = vmatpush2.bf16.msra.mxu0 0
        %2983 = vmatprep.subr.bf16.mxu0 0
        %2984 = vmatpush2.bf16.msra.mxu0 0
        %2985 = vmatprep.subr.bf16.mxu0 0
        %2986 = vmatpush2.bf16.msra.mxu0 0
        %2987 = vmatprep.subr.bf16.mxu0 0
        %2988 = vmatpush2.bf16.msra.mxu0 0
        %2989 = vmatprep.subr.bf16.mxu0 0
        %2990 = vmatpush2.bf16.msra.mxu0 0
        %2991 = vmatprep.mubr.bf16.mxu0 0
        %2992 = vmatmul.mubr.bf16.gmra.mxu0 %v2957
        %v2993 = vpop.f32.mrf.mxu0
        %v2994 = vadd.f32 %v2659, %v2993
        %v2995 = vpop.f32.mrf.mxu0
        %v2996 = vadd.f32 %v2659, %v2995
        %v2997 = vpop.f32.mrf.mxu0
        %v2998 = vpop.f32.mrf.mxu0
        %2999 = vdwg.mxu0
        %v3002 = vcombine.low %v2994, %v2996
        %s3004 = scalar_lea.vmem %s530, 32
        %3005 = vst [vmem:[%s3004] sm:$0x77] %v3002
        %s3006 = scalar_lea.vmem [#allocation15], 10
        %v3007 = vld [vmem:[%s3006] sm:$0x3]
        %v3009 = vsel %vm2661, %v3007, 0
        %3011 = vmatprep.subr.bf16.mxu0 0
        %3012 = vmatpush1.bf16.msra.mxu0 0
        %3013 = vmatprep.subr.bf16.mxu0 0
        %3014 = vmatpush1.bf16.msra.mxu0 0
        %3015 = vmatprep.subr.bf16.mxu0 0
        %3016 = vmatpush1.bf16.msra.mxu0 0
        %3017 = vmatprep.subr.bf16.mxu0 0
        %3018 = vmatpush1.bf16.msra.mxu0 0
        %3019 = vmatprep.subr.bf16.mxu0 %v2123
        %3020 = vmatpush1.bf16.msra.mxu0 %v2122
        %3021 = vmatprep.subr.bf16.mxu0 %v2303
        %3022 = vmatpush1.bf16.msra.mxu0 %v2302
        %3023 = vmatprep.subr.bf16.mxu0 %v2465
        %3024 = vmatpush1.bf16.msra.mxu0 %v2464
        %3025 = vmatprep.subr.bf16.mxu0 %v2619
        %3026 = vmatpush1.bf16.msra.mxu0 %v2618
        %3027 = vmatprep.subr.bf16.mxu0 0
        %3028 = vmatpush2.bf16.msra.mxu0 0
        %3029 = vmatprep.subr.bf16.mxu0 0
        %3030 = vmatpush2.bf16.msra.mxu0 0
        %3031 = vmatprep.subr.bf16.mxu0 0
        %3032 = vmatpush2.bf16.msra.mxu0 0
        %3033 = vmatprep.subr.bf16.mxu0 0
        %3034 = vmatpush2.bf16.msra.mxu0 0
        %3035 = vmatprep.subr.bf16.mxu0 0
        %3036 = vmatpush2.bf16.msra.mxu0 0
        %3037 = vmatprep.subr.bf16.mxu0 0
        %3038 = vmatpush2.bf16.msra.mxu0 0
        %3039 = vmatprep.subr.bf16.mxu0 0
        %3040 = vmatpush2.bf16.msra.mxu0 0
        %3041 = vmatprep.subr.bf16.mxu0 0
        %3042 = vmatpush2.bf16.msra.mxu0 0
        %3043 = vmatprep.mubr.bf16.mxu0 0
        %3044 = vmatmul.mubr.bf16.gmra.mxu0 %v3009
        %v3045 = vpop.f32.mrf.mxu0
        %v3046 = vadd.f32 %v2659, %v3045
        %v3047 = vpop.f32.mrf.mxu0
        %v3048 = vadd.f32 %v2659, %v3047
        %v3049 = vpop.f32.mrf.mxu0
        %v3050 = vpop.f32.mrf.mxu0
        %3051 = vdwg.mxu0
        %v3054 = vcombine.low %v3046, %v3048
        %s3056 = scalar_lea.vmem %s530, 40
        %3057 = vst [vmem:[%s3056] sm:$0x77] %v3054
        %s3058 = scalar_lea.vmem [#allocation15], 12
        %v3059 = vld [vmem:[%s3058] sm:$0x3]
        %v3061 = vsel %vm2661, %v3059, 0
        %3063 = vmatprep.subr.bf16.mxu0 0
        %3064 = vmatpush1.bf16.msra.mxu0 0
        %3065 = vmatprep.subr.bf16.mxu0 0
        %3066 = vmatpush1.bf16.msra.mxu0 0
        %3067 = vmatprep.subr.bf16.mxu0 0
        %3068 = vmatpush1.bf16.msra.mxu0 0
        %3069 = vmatprep.subr.bf16.mxu0 0
        %3070 = vmatpush1.bf16.msra.mxu0 0
        %3071 = vmatprep.subr.bf16.mxu0 %v2123
        %3072 = vmatpush1.bf16.msra.mxu0 %v2122
        %3073 = vmatprep.subr.bf16.mxu0 %v2303
        %3074 = vmatpush1.bf16.msra.mxu0 %v2302
        %3075 = vmatprep.subr.bf16.mxu0 %v2465
        %3076 = vmatpush1.bf16.msra.mxu0 %v2464
        %3077 = vmatprep.subr.bf16.mxu0 %v2619
        %3078 = vmatpush1.bf16.msra.mxu0 %v2618
        %3079 = vmatprep.subr.bf16.mxu0 0
        %3080 = vmatpush2.bf16.msra.mxu0 0
        %3081 = vmatprep.subr.bf16.mxu0 0
        %3082 = vmatpush2.bf16.msra.mxu0 0
        %3083 = vmatprep.subr.bf16.mxu0 0
        %3084 = vmatpush2.bf16.msra.mxu0 0
        %3085 = vmatprep.subr.bf16.mxu0 0
        %3086 = vmatpush2.bf16.msra.mxu0 0
        %3087 = vmatprep.subr.bf16.mxu0 0
        %3088 = vmatpush2.bf16.msra.mxu0 0
        %3089 = vmatprep.subr.bf16.mxu0 0
        %3090 = vmatpush2.bf16.msra.mxu0 0
        %3091 = vmatprep.subr.bf16.mxu0 0
        %3092 = vmatpush2.bf16.msra.mxu0 0
        %3093 = vmatprep.subr.bf16.mxu0 0
        %3094 = vmatpush2.bf16.msra.mxu0 0
        %3095 = vmatprep.mubr.bf16.mxu0 0
        %3096 = vmatmul.mubr.bf16.gmra.mxu0 %v3061
        %v3097 = vpop.f32.mrf.mxu0
        %v3098 = vadd.f32 %v2659, %v3097
        %v3099 = vpop.f32.mrf.mxu0
        %v3100 = vadd.f32 %v2659, %v3099
        %v3101 = vpop.f32.mrf.mxu0
        %v3102 = vpop.f32.mrf.mxu0
        %3103 = vdwg.mxu0
        %v3106 = vcombine.low %v3098, %v3100
        %s3108 = scalar_lea.vmem %s530, 48
        %3109 = vst [vmem:[%s3108] sm:$0x77] %v3106
        %v3110 = vsel %vm613, %v2464, 0
        %v3111 = vsel %vm614, %v2465, 0
        %3112 = vrot.lane.b32.xlu0 %v2618, 1
        %v3113 = vpop.permute.xlu0 %3112
        %3114 = vrot.lane.b32.xlu0 %v2619, 1
        %v3115 = vpop.permute.xlu0 %3114
        %v3116 = vsel %vm611, %v3113, %v3115
        %s3117 = scalar_lea.vmem [#allocation15], 14
        %v3118 = vld [vmem:[%s3117] sm:$0x3]
        %3121 = vrot.lane.b32.xlu0 %v3110, 127
        %v3122 = vpop.permute.xlu0 %3121
        %3123 = vrot.lane.b32.xlu0 %v3111, 127
        %v3124 = vpop.permute.xlu0 %3123
        %3125 = vrot.lane.b32.xlu0 %v3113, 127
        %v3126 = vpop.permute.xlu0 %3125
        %3127 = vrot.lane.b32.xlu0 %v3116, 127
        %v3128 = vpop.permute.xlu0 %3127
        %3129 = vrot.lane.b32.xlu0 %v3115, 127
        %v3130 = vpop.permute.xlu0 %3129
        %v3131 = vsel %vm601, %v3122, %v3124
        %v3132 = vsel %vm601, %v3124, %v641
        %v3133 = vsel %vm601, %v3126, %v3128
        %v3134 = vsel %vm601, %v3128, %v3130
        %v3140 = vsel %vm2661, %v3118, 0
        %3142 = vmatprep.subr.bf16.mxu0 0
        %3143 = vmatpush1.bf16.msra.mxu0 0
        %3144 = vmatprep.subr.bf16.mxu0 0
        %3145 = vmatpush1.bf16.msra.mxu0 0
        %3146 = vmatprep.subr.bf16.mxu0 0
        %3147 = vmatpush1.bf16.msra.mxu0 0
        %3148 = vmatprep.subr.bf16.mxu0 0
        %3149 = vmatpush1.bf16.msra.mxu0 0
        %3150 = vmatprep.subr.bf16.mxu0 %v2879
        %3151 = vmatpush1.bf16.msra.mxu0 %v2878
        %3152 = vmatprep.subr.bf16.mxu0 %v2877
        %3153 = vmatpush1.bf16.msra.mxu0 %v2876
        %3154 = vmatprep.subr.bf16.mxu0 %v3134
        %3155 = vmatpush1.bf16.msra.mxu0 %v3133
        %3156 = vmatprep.subr.bf16.mxu0 %v3132
        %3157 = vmatpush1.bf16.msra.mxu0 %v3131
        %3158 = vmatprep.subr.bf16.mxu0 0
        %3159 = vmatpush2.bf16.msra.mxu0 0
        %3160 = vmatprep.subr.bf16.mxu0 0
        %3161 = vmatpush2.bf16.msra.mxu0 0
        %3162 = vmatprep.subr.bf16.mxu0 0
        %3163 = vmatpush2.bf16.msra.mxu0 0
        %3164 = vmatprep.subr.bf16.mxu0 0
        %3165 = vmatpush2.bf16.msra.mxu0 0
        %3166 = vmatprep.subr.bf16.mxu0 0
        %3167 = vmatpush2.bf16.msra.mxu0 0
        %3168 = vmatprep.subr.bf16.mxu0 0
        %3169 = vmatpush2.bf16.msra.mxu0 0
        %3170 = vmatprep.subr.bf16.mxu0 0
        %3171 = vmatpush2.bf16.msra.mxu0 0
        %3172 = vmatprep.subr.bf16.mxu0 0
        %3173 = vmatpush2.bf16.msra.mxu0 0
        %3174 = vmatprep.mubr.bf16.mxu0 0
        %3175 = vmatmul.mubr.bf16.gmra.mxu0 %v3140
        %v3176 = vpop.f32.mrf.mxu0
        %v3177 = vadd.f32 %v2659, %v3176
        %v3178 = vpop.f32.mrf.mxu0
        %v3179 = vadd.f32 %v2659, %v3178
        %v3180 = vpop.f32.mrf.mxu0
        %v3181 = vpop.f32.mrf.mxu0
        %3182 = vdwg.mxu0
        %v3185 = vcombine.low %v3177, %v3179
        %s3187 = scalar_lea.vmem %s530, 56
        %3188 = vst [vmem:[%s3187] sm:$0x77] %v3185
        %s3189 = scalar_lea.vmem [#allocation15], 16
        %v3190 = vld [vmem:[%s3189] sm:$0x3]
        %v3192 = vsel %vm2661, %v3190, 0
        %3194 = vmatprep.subr.bf16.mxu0 0
        %3195 = vmatpush1.bf16.msra.mxu0 0
        %3196 = vmatprep.subr.bf16.mxu0 0
        %3197 = vmatpush1.bf16.msra.mxu0 0
        %3198 = vmatprep.subr.bf16.mxu0 0
        %3199 = vmatpush1.bf16.msra.mxu0 0
        %3200 = vmatprep.subr.bf16.mxu0 0
        %3201 = vmatpush1.bf16.msra.mxu0 0
        %3202 = vmatprep.subr.bf16.mxu0 %v2632
        %3203 = vmatpush1.bf16.msra.mxu0 %v2631
        %3204 = vmatprep.subr.bf16.mxu0 %v2123
        %3205 = vmatpush1.bf16.msra.mxu0 %v2122
        %3206 = vmatprep.subr.bf16.mxu0 %v2951
        %3207 = vmatpush1.bf16.msra.mxu0 %v2950
        %3208 = vmatprep.subr.bf16.mxu0 %v2465
        %3209 = vmatpush1.bf16.msra.mxu0 %v2464
        %3210 = vmatprep.subr.bf16.mxu0 0
        %3211 = vmatpush2.bf16.msra.mxu0 0
        %3212 = vmatprep.subr.bf16.mxu0 0
        %3213 = vmatpush2.bf16.msra.mxu0 0
        %3214 = vmatprep.subr.bf16.mxu0 0
        %3215 = vmatpush2.bf16.msra.mxu0 0
        %3216 = vmatprep.subr.bf16.mxu0 0
        %3217 = vmatpush2.bf16.msra.mxu0 0
        %3218 = vmatprep.subr.bf16.mxu0 0
        %3219 = vmatpush2.bf16.msra.mxu0 0
        %3220 = vmatprep.subr.bf16.mxu0 0
        %3221 = vmatpush2.bf16.msra.mxu0 0
        %3222 = vmatprep.subr.bf16.mxu0 0
        %3223 = vmatpush2.bf16.msra.mxu0 0
        %3224 = vmatprep.subr.bf16.mxu0 0
        %3225 = vmatpush2.bf16.msra.mxu0 0
        %3226 = vmatprep.mubr.bf16.mxu0 0
        %3227 = vmatmul.mubr.bf16.gmra.mxu0 %v3192
        %v3228 = vpop.f32.mrf.mxu0
        %v3229 = vadd.f32 %v2659, %v3228
        %v3230 = vpop.f32.mrf.mxu0
        %v3231 = vadd.f32 %v2659, %v3230
        %v3232 = vpop.f32.mrf.mxu0
        %v3233 = vpop.f32.mrf.mxu0
        %3234 = vdwg.mxu0
        %v3237 = vcombine.low %v3229, %v3231
        %s3239 = scalar_lea.vmem %s530, 64
        %3240 = vst [vmem:[%s3239] sm:$0x77] %v3237
        %s3241 = scalar_lea.vmem [#allocation15], 18
        %v3242 = vld [vmem:[%s3241] sm:$0x3]
        %v3244 = vsel %vm2661, %v3242, 0
        %3246 = vmatprep.subr.bf16.mxu0 0
        %3247 = vmatpush1.bf16.msra.mxu0 0
        %3248 = vmatprep.subr.bf16.mxu0 0
        %3249 = vmatpush1.bf16.msra.mxu0 0
        %3250 = vmatprep.subr.bf16.mxu0 0
        %3251 = vmatpush1.bf16.msra.mxu0 0
        %3252 = vmatprep.subr.bf16.mxu0 0
        %3253 = vmatpush1.bf16.msra.mxu0 0
        %3254 = vmatprep.subr.bf16.mxu0 %v2123
        %3255 = vmatpush1.bf16.msra.mxu0 %v2122
        %3256 = vmatprep.subr.bf16.mxu0 %v2303
        %3257 = vmatpush1.bf16.msra.mxu0 %v2302
        %3258 = vmatprep.subr.bf16.mxu0 %v2465
        %3259 = vmatpush1.bf16.msra.mxu0 %v2464
        %3260 = vmatprep.subr.bf16.mxu0 %v2619
        %3261 = vmatpush1.bf16.msra.mxu0 %v2618
        %3262 = vmatprep.subr.bf16.mxu0 0
        %3263 = vmatpush2.bf16.msra.mxu0 0
        %3264 = vmatprep.subr.bf16.mxu0 0
        %3265 = vmatpush2.bf16.msra.mxu0 0
        %3266 = vmatprep.subr.bf16.mxu0 0
        %3267 = vmatpush2.bf16.msra.mxu0 0
        %3268 = vmatprep.subr.bf16.mxu0 0
        %3269 = vmatpush2.bf16.msra.mxu0 0
        %3270 = vmatprep.subr.bf16.mxu0 0
        %3271 = vmatpush2.bf16.msra.mxu0 0
        %3272 = vmatprep.subr.bf16.mxu0 0
        %3273 = vmatpush2.bf16.msra.mxu0 0
        %3274 = vmatprep.subr.bf16.mxu0 0
        %3275 = vmatpush2.bf16.msra.mxu0 0
        %3276 = vmatprep.subr.bf16.mxu0 0
        %3277 = vmatpush2.bf16.msra.mxu0 0
        %3278 = vmatprep.mubr.bf16.mxu0 0
        %3279 = vmatmul.mubr.bf16.gmra.mxu0 %v3244
        %v3280 = vpop.f32.mrf.mxu0
        %v3281 = vadd.f32 %v2659, %v3280
        %v3282 = vpop.f32.mrf.mxu0
        %v3283 = vadd.f32 %v2659, %v3282
        %v3284 = vpop.f32.mrf.mxu0
        %v3285 = vpop.f32.mrf.mxu0
        %3286 = vdwg.mxu0
        %v3289 = vcombine.low %v3281, %v3283
        %s3291 = scalar_lea.vmem %s530, 72
        %3292 = vst [vmem:[%s3291] sm:$0x77] %v3289
        %s3293 = scalar_lea.vmem [#allocation15], 20
        %v3294 = vld [vmem:[%s3293] sm:$0x3]
        %v3296 = vsel %vm2661, %v3294, 0
        %3298 = vmatprep.subr.bf16.mxu0 0
        %3299 = vmatpush1.bf16.msra.mxu0 0
        %3300 = vmatprep.subr.bf16.mxu0 0
        %3301 = vmatpush1.bf16.msra.mxu0 0
        %3302 = vmatprep.subr.bf16.mxu0 0
        %3303 = vmatpush1.bf16.msra.mxu0 0
        %3304 = vmatprep.subr.bf16.mxu0 0
        %3305 = vmatpush1.bf16.msra.mxu0 0
        %3306 = vmatprep.subr.bf16.mxu0 %v2123
        %3307 = vmatpush1.bf16.msra.mxu0 %v2122
        %3308 = vmatprep.subr.bf16.mxu0 %v2303
        %3309 = vmatpush1.bf16.msra.mxu0 %v2302
        %3310 = vmatprep.subr.bf16.mxu0 %v2465
        %3311 = vmatpush1.bf16.msra.mxu0 %v2464
        %3312 = vmatprep.subr.bf16.mxu0 %v2619
        %3313 = vmatpush1.bf16.msra.mxu0 %v2618
        %3314 = vmatprep.subr.bf16.mxu0 0
        %3315 = vmatpush2.bf16.msra.mxu0 0
        %3316 = vmatprep.subr.bf16.mxu0 0
        %3317 = vmatpush2.bf16.msra.mxu0 0
        %3318 = vmatprep.subr.bf16.mxu0 0
        %3319 = vmatpush2.bf16.msra.mxu0 0
        %3320 = vmatprep.subr.bf16.mxu0 0
        %3321 = vmatpush2.bf16.msra.mxu0 0
        %3322 = vmatprep.subr.bf16.mxu0 0
        %3323 = vmatpush2.bf16.msra.mxu0 0
        %3324 = vmatprep.subr.bf16.mxu0 0
        %3325 = vmatpush2.bf16.msra.mxu0 0
        %3326 = vmatprep.subr.bf16.mxu0 0
        %3327 = vmatpush2.bf16.msra.mxu0 0
        %3328 = vmatprep.subr.bf16.mxu0 0
        %3329 = vmatpush2.bf16.msra.mxu0 0
        %3330 = vmatprep.mubr.bf16.mxu0 0
        %3331 = vmatmul.mubr.bf16.gmra.mxu0 %v3296
        %v3332 = vpop.f32.mrf.mxu0
        %v3333 = vadd.f32 %v2659, %v3332
        %v3334 = vpop.f32.mrf.mxu0
        %v3335 = vadd.f32 %v2659, %v3334
        %v3336 = vpop.f32.mrf.mxu0
        %v3337 = vpop.f32.mrf.mxu0
        %3338 = vdwg.mxu0
        %v3341 = vcombine.low %v3333, %v3335
        %s3343 = scalar_lea.vmem %s530, 80
        %3344 = vst [vmem:[%s3343] sm:$0x77] %v3341
        %s3345 = scalar_lea.vmem [#allocation15], 22
        %v3346 = vld [vmem:[%s3345] sm:$0x3]
        %v3348 = vsel %vm2661, %v3346, 0
        %3350 = vmatprep.subr.bf16.mxu0 0
        %3351 = vmatpush1.bf16.msra.mxu0 0
        %3352 = vmatprep.subr.bf16.mxu0 0
        %3353 = vmatpush1.bf16.msra.mxu0 0
        %3354 = vmatprep.subr.bf16.mxu0 0
        %3355 = vmatpush1.bf16.msra.mxu0 0
        %3356 = vmatprep.subr.bf16.mxu0 0
        %3357 = vmatpush1.bf16.msra.mxu0 0
        %3358 = vmatprep.subr.bf16.mxu0 %v2879
        %3359 = vmatpush1.bf16.msra.mxu0 %v2878
        %3360 = vmatprep.subr.bf16.mxu0 %v2877
        %3361 = vmatpush1.bf16.msra.mxu0 %v2876
        %3362 = vmatprep.subr.bf16.mxu0 %v3134
        %3363 = vmatpush1.bf16.msra.mxu0 %v3133
        %3364 = vmatprep.subr.bf16.mxu0 %v3132
        %3365 = vmatpush1.bf16.msra.mxu0 %v3131
        %3366 = vmatprep.subr.bf16.mxu0 0
        %3367 = vmatpush2.bf16.msra.mxu0 0
        %3368 = vmatprep.subr.bf16.mxu0 0
        %3369 = vmatpush2.bf16.msra.mxu0 0
        %3370 = vmatprep.subr.bf16.mxu0 0
        %3371 = vmatpush2.bf16.msra.mxu0 0
        %3372 = vmatprep.subr.bf16.mxu0 0
        %3373 = vmatpush2.bf16.msra.mxu0 0
        %3374 = vmatprep.subr.bf16.mxu0 0
        %3375 = vmatpush2.bf16.msra.mxu0 0
        %3376 = vmatprep.subr.bf16.mxu0 0
        %3377 = vmatpush2.bf16.msra.mxu0 0
        %3378 = vmatprep.subr.bf16.mxu0 0
        %3379 = vmatpush2.bf16.msra.mxu0 0
        %3380 = vmatprep.subr.bf16.mxu0 0
        %3381 = vmatpush2.bf16.msra.mxu0 0
        %3382 = vmatprep.mubr.bf16.mxu0 0
        %3383 = vmatmul.mubr.bf16.gmra.mxu0 %v3348
        %v3384 = vpop.f32.mrf.mxu0
        %v3385 = vadd.f32 %v2659, %v3384
        %v3386 = vpop.f32.mrf.mxu0
        %v3387 = vadd.f32 %v2659, %v3386
        %v3388 = vpop.f32.mrf.mxu0
        %v3389 = vpop.f32.mrf.mxu0
        %3390 = vdwg.mxu0
        %v3393 = vcombine.low %v3385, %v3387
        %s3395 = scalar_lea.vmem %s530, 88
        %3396 = vst [vmem:[%s3395] sm:$0x77] %v3393
        %v3397 = vsel %vm623, %v2302, 0
        %v3398 = vsel %vm624, %v2303, 0
        %3401 = vrot.lane.b32.xlu0 %v3397, 1
        %v3402 = vpop.permute.xlu0 %3401
        %3403 = vrot.lane.b32.xlu0 %v3398, 1
        %v3404 = vpop.permute.xlu0 %3403
        %v3405 = vsel %vm611, %v3402, %v3404
        %v3406 = vsel %vm611, %v3404, %v2001
        %3407 = vrot.lane.b32.xlu0 %v2942, 17
        %v3408 = vpop.permute.xlu0 %3407
        %3409 = vrot.lane.b32.xlu0 %v2943, 17
        %v3410 = vpop.permute.xlu0 %3409
        %v3411 = vsel %vm631, %v766, %v3408
        %v3412 = vsel %vm631, %v3408, %v3410
        %s3413 = scalar_lea.vmem [#allocation15], 24
        %v3414 = vld [vmem:[%s3413] sm:$0x3]
        %3417 = vrot.lane.b32.xlu0 %v2122, 112
        %v3418 = vpop.permute.xlu0 %3417
        %3419 = vrot.lane.b32.xlu0 %v2123, 112
        %v3420 = vpop.permute.xlu0 %3419
        %3421 = vrot.lane.b32.xlu0 %v3402, 112
        %v3422 = vpop.permute.xlu0 %3421
        %3423 = vrot.lane.b32.xlu0 %v3405, 112
        %v3424 = vpop.permute.xlu0 %3423
        %3425 = vrot.lane.b32.xlu0 %v3406, 112
        %v3426 = vpop.permute.xlu0 %3425
        %3427 = vrot.lane.b32.xlu0 %v2638, 112
        %v3428 = vpop.permute.xlu0 %3427
        %3429 = vrot.lane.b32.xlu0 %v2642, 112
        %v3430 = vpop.permute.xlu0 %3429
        %3431 = vrot.lane.b32.xlu0 %v2640, 112
        %v3432 = vpop.permute.xlu0 %3431
        %3433 = vrot.lane.b32.xlu0 %v3411, 112
        %v3434 = vpop.permute.xlu0 %3433
        %3435 = vrot.lane.b32.xlu0 %v3412, 112
        %v3436 = vpop.permute.xlu0 %3435
        %3437 = vrot.lane.b32.xlu0 %v3410, 112
        %v3438 = vpop.permute.xlu0 %3437
        %v3439 = vsel %vm667, %v3418, %v3420
        %v3440 = vsel %vm667, %v3420, %v662
        %v3441 = vsel %vm667, %v3422, %v3424
        %v3442 = vsel %vm667, %v3424, %v3426
        %v3443 = vsel %vm667, %v3428, %v3430
        %v3444 = vsel %vm667, %v3430, %v3432
        %v3445 = vsel %vm667, %v3434, %v3436
        %v3446 = vsel %vm667, %v3436, %v3438
        %v3456 = vsel %vm2661, %v3414, 0
        %3458 = vmatprep.subr.bf16.mxu0 0
        %3459 = vmatpush1.bf16.msra.mxu0 0
        %3460 = vmatprep.subr.bf16.mxu0 0
        %3461 = vmatpush1.bf16.msra.mxu0 0
        %3462 = vmatprep.subr.bf16.mxu0 0
        %3463 = vmatpush1.bf16.msra.mxu0 0
        %3464 = vmatprep.subr.bf16.mxu0 0
        %3465 = vmatpush1.bf16.msra.mxu0 0
        %3466 = vmatprep.subr.bf16.mxu0 %v3446
        %3467 = vmatpush1.bf16.msra.mxu0 %v3445
        %3468 = vmatprep.subr.bf16.mxu0 %v3444
        %3469 = vmatpush1.bf16.msra.mxu0 %v3443
        %3470 = vmatprep.subr.bf16.mxu0 %v3442
        %3471 = vmatpush1.bf16.msra.mxu0 %v3441
        %3472 = vmatprep.subr.bf16.mxu0 %v3440
        %3473 = vmatpush1.bf16.msra.mxu0 %v3439
        %3474 = vmatprep.subr.bf16.mxu0 0
        %3475 = vmatpush2.bf16.msra.mxu0 0
        %3476 = vmatprep.subr.bf16.mxu0 0
        %3477 = vmatpush2.bf16.msra.mxu0 0
        %3478 = vmatprep.subr.bf16.mxu0 0
        %3479 = vmatpush2.bf16.msra.mxu0 0
        %3480 = vmatprep.subr.bf16.mxu0 0
        %3481 = vmatpush2.bf16.msra.mxu0 0
        %3482 = vmatprep.subr.bf16.mxu0 0
        %3483 = vmatpush2.bf16.msra.mxu0 0
        %3484 = vmatprep.subr.bf16.mxu0 0
        %3485 = vmatpush2.bf16.msra.mxu0 0
        %3486 = vmatprep.subr.bf16.mxu0 0
        %3487 = vmatpush2.bf16.msra.mxu0 0
        %3488 = vmatprep.subr.bf16.mxu0 0
        %3489 = vmatpush2.bf16.msra.mxu0 0
        %3490 = vmatprep.mubr.bf16.mxu0 0
        %3491 = vmatmul.mubr.bf16.gmra.mxu0 %v3456
        %v3492 = vpop.f32.mrf.mxu0
        %v3493 = vadd.f32 %v2659, %v3492
        %v3494 = vpop.f32.mrf.mxu0
        %v3495 = vadd.f32 %v2659, %v3494
        %v3496 = vpop.f32.mrf.mxu0
        %v3497 = vpop.f32.mrf.mxu0
        %3498 = vdwg.mxu0
        %v3501 = vcombine.low %v3493, %v3495
        %s3503 = scalar_lea.vmem %s530, 96
        %3504 = vst [vmem:[%s3503] sm:$0x77] %v3501
        %s3505 = scalar_lea.vmem [#allocation15], 26
        %v3506 = vld [vmem:[%s3505] sm:$0x3]
        %3507 = vrot.lane.b32.xlu0 %v2302, 112
        %v3508 = vpop.permute.xlu0 %3507
        %3509 = vrot.lane.b32.xlu0 %v2303, 112
        %v3510 = vpop.permute.xlu0 %3509
        %3511 = vrot.lane.b32.xlu0 %v2714, 112
        %v3512 = vpop.permute.xlu0 %3511
        %3513 = vrot.lane.b32.xlu0 %v2718, 112
        %v3514 = vpop.permute.xlu0 %3513
        %3515 = vrot.lane.b32.xlu0 %v2716, 112
        %v3516 = vpop.permute.xlu0 %3515
        %v3517 = vsel %vm667, %v3508, %v3510
        %v3518 = vsel %vm667, %v3510, %v662
        %v3519 = vsel %vm667, %v3512, %v3514
        %v3520 = vsel %vm667, %v3514, %v3516
        %v3526 = vsel %vm2661, %v3506, 0
        %3528 = vmatprep.subr.bf16.mxu0 0
        %3529 = vmatpush1.bf16.msra.mxu0 0
        %3530 = vmatprep.subr.bf16.mxu0 0
        %3531 = vmatpush1.bf16.msra.mxu0 0
        %3532 = vmatprep.subr.bf16.mxu0 0
        %3533 = vmatpush1.bf16.msra.mxu0 0
        %3534 = vmatprep.subr.bf16.mxu0 0
        %3535 = vmatpush1.bf16.msra.mxu0 0
        %3536 = vmatprep.subr.bf16.mxu0 %v3444
        %3537 = vmatpush1.bf16.msra.mxu0 %v3443
        %3538 = vmatprep.subr.bf16.mxu0 %v3520
        %3539 = vmatpush1.bf16.msra.mxu0 %v3519
        %3540 = vmatprep.subr.bf16.mxu0 %v3440
        %3541 = vmatpush1.bf16.msra.mxu0 %v3439
        %3542 = vmatprep.subr.bf16.mxu0 %v3518
        %3543 = vmatpush1.bf16.msra.mxu0 %v3517
        %3544 = vmatprep.subr.bf16.mxu0 0
        %3545 = vmatpush2.bf16.msra.mxu0 0
        %3546 = vmatprep.subr.bf16.mxu0 0
        %3547 = vmatpush2.bf16.msra.mxu0 0
        %3548 = vmatprep.subr.bf16.mxu0 0
        %3549 = vmatpush2.bf16.msra.mxu0 0
        %3550 = vmatprep.subr.bf16.mxu0 0
        %3551 = vmatpush2.bf16.msra.mxu0 0
        %3552 = vmatprep.subr.bf16.mxu0 0
        %3553 = vmatpush2.bf16.msra.mxu0 0
        %3554 = vmatprep.subr.bf16.mxu0 0
        %3555 = vmatpush2.bf16.msra.mxu0 0
        %3556 = vmatprep.subr.bf16.mxu0 0
        %3557 = vmatpush2.bf16.msra.mxu0 0
        %3558 = vmatprep.subr.bf16.mxu0 0
        %3559 = vmatpush2.bf16.msra.mxu0 0
        %3560 = vmatprep.mubr.bf16.mxu0 0
        %3561 = vmatmul.mubr.bf16.gmra.mxu0 %v3526
        %v3562 = vpop.f32.mrf.mxu0
        %v3563 = vadd.f32 %v2659, %v3562
        %v3564 = vpop.f32.mrf.mxu0
        %v3565 = vadd.f32 %v2659, %v3564
        %v3566 = vpop.f32.mrf.mxu0
        %v3567 = vpop.f32.mrf.mxu0
        %3568 = vdwg.mxu0
        %v3571 = vcombine.low %v3563, %v3565
        %s3573 = scalar_lea.vmem %s530, 104
        %3574 = vst [vmem:[%s3573] sm:$0x77] %v3571
        %s3575 = scalar_lea.vmem [#allocation15], 28
        %v3576 = vld [vmem:[%s3575] sm:$0x3]
        %v3578 = vsel %vm2661, %v3576, 0
        %3580 = vmatprep.subr.bf16.mxu0 0
        %3581 = vmatpush1.bf16.msra.mxu0 0
        %3582 = vmatprep.subr.bf16.mxu0 0
        %3583 = vmatpush1.bf16.msra.mxu0 0
        %3584 = vmatprep.subr.bf16.mxu0 0
        %3585 = vmatpush1.bf16.msra.mxu0 0
        %3586 = vmatprep.subr.bf16.mxu0 0
        %3587 = vmatpush1.bf16.msra.mxu0 0
        %3588 = vmatprep.subr.bf16.mxu0 %v3444
        %3589 = vmatpush1.bf16.msra.mxu0 %v3443
        %3590 = vmatprep.subr.bf16.mxu0 %v3520
        %3591 = vmatpush1.bf16.msra.mxu0 %v3519
        %3592 = vmatprep.subr.bf16.mxu0 %v3440
        %3593 = vmatpush1.bf16.msra.mxu0 %v3439
        %3594 = vmatprep.subr.bf16.mxu0 %v3518
        %3595 = vmatpush1.bf16.msra.mxu0 %v3517
        %3596 = vmatprep.subr.bf16.mxu0 0
        %3597 = vmatpush2.bf16.msra.mxu0 0
        %3598 = vmatprep.subr.bf16.mxu0 0
        %3599 = vmatpush2.bf16.msra.mxu0 0
        %3600 = vmatprep.subr.bf16.mxu0 0
        %3601 = vmatpush2.bf16.msra.mxu0 0
        %3602 = vmatprep.subr.bf16.mxu0 0
        %3603 = vmatpush2.bf16.msra.mxu0 0
        %3604 = vmatprep.subr.bf16.mxu0 0
        %3605 = vmatpush2.bf16.msra.mxu0 0
        %3606 = vmatprep.subr.bf16.mxu0 0
        %3607 = vmatpush2.bf16.msra.mxu0 0
        %3608 = vmatprep.subr.bf16.mxu0 0
        %3609 = vmatpush2.bf16.msra.mxu0 0
        %3610 = vmatprep.subr.bf16.mxu0 0
        %3611 = vmatpush2.bf16.msra.mxu0 0
        %3612 = vmatprep.mubr.bf16.mxu0 0
        %3613 = vmatmul.mubr.bf16.gmra.mxu0 %v3578
        %v3614 = vpop.f32.mrf.mxu0
        %v3615 = vadd.f32 %v2659, %v3614
        %v3616 = vpop.f32.mrf.mxu0
        %v3617 = vadd.f32 %v2659, %v3616
        %v3618 = vpop.f32.mrf.mxu0
        %v3619 = vpop.f32.mrf.mxu0
        %3620 = vdwg.mxu0
        %v3623 = vcombine.low %v3615, %v3617
        %s3625 = scalar_lea.vmem %s530, 112
        %3626 = vst [vmem:[%s3625] sm:$0x77] %v3623
        %v3627 = vsel %vm633, %v2122, 0
        %v3628 = vsel %vm634, %v2123, 0
        %v3629 = vsel %vm611, %v2834, %v2001
        %3630 = vrot.lane.b32.xlu0 %v3110, 16
        %v3631 = vpop.permute.xlu0 %3630
        %3632 = vrot.lane.b32.xlu0 %v3111, 16
        %v3633 = vpop.permute.xlu0 %3632
        %v3634 = vsel %vm2032, %v3631, %v3633
        %v3635 = vsel %vm2032, %v3633, %v2023
        %s3636 = scalar_lea.vmem [#allocation15], 30
        %v3637 = vld [vmem:[%s3636] sm:$0x3]
        %3640 = vrot.lane.b32.xlu0 %v3627, 111
        %v3641 = vpop.permute.xlu0 %3640
        %3642 = vrot.lane.b32.xlu0 %v3628, 111
        %v3643 = vpop.permute.xlu0 %3642
        %3644 = vrot.lane.b32.xlu0 %v2832, 111
        %v3645 = vpop.permute.xlu0 %3644
        %3646 = vrot.lane.b32.xlu0 %v2835, 111
        %v3647 = vpop.permute.xlu0 %3646
        %3648 = vrot.lane.b32.xlu0 %v3629, 111
        %v3649 = vpop.permute.xlu0 %3648
        %3650 = vrot.lane.b32.xlu0 %v3631, 111
        %v3651 = vpop.permute.xlu0 %3650
        %3652 = vrot.lane.b32.xlu0 %v3634, 111
        %v3653 = vpop.permute.xlu0 %3652
        %3654 = vrot.lane.b32.xlu0 %v3635, 111
        %v3655 = vpop.permute.xlu0 %3654
        %3656 = vrot.lane.b32.xlu0 %v2845, 111
        %v3657 = vpop.permute.xlu0 %3656
        %3658 = vrot.lane.b32.xlu0 %v2849, 111
        %v3659 = vpop.permute.xlu0 %3658
        %3660 = vrot.lane.b32.xlu0 %v2847, 111
        %v3661 = vpop.permute.xlu0 %3660
        %v3662 = vsel %vm567, %v3641, %v3643
        %v3663 = vsel %vm567, %v3643, %v2502
        %v3664 = vsel %vm567, %v3645, %v3647
        %v3665 = vsel %vm567, %v3647, %v3649
        %v3666 = vsel %vm567, %v3651, %v3653
        %v3667 = vsel %vm567, %v3653, %v3655
        %v3668 = vsel %vm567, %v3657, %v3659
        %v3669 = vsel %vm567, %v3659, %v3661
        %v3679 = vsel %vm2661, %v3637, 0
        %3681 = vmatprep.subr.bf16.mxu0 0
        %3682 = vmatpush1.bf16.msra.mxu0 0
        %3683 = vmatprep.subr.bf16.mxu0 0
        %3684 = vmatpush1.bf16.msra.mxu0 0
        %3685 = vmatprep.subr.bf16.mxu0 0
        %3686 = vmatpush1.bf16.msra.mxu0 0
        %3687 = vmatprep.subr.bf16.mxu0 0
        %3688 = vmatpush1.bf16.msra.mxu0 0
        %3689 = vmatprep.subr.bf16.mxu0 %v3669
        %3690 = vmatpush1.bf16.msra.mxu0 %v3668
        %3691 = vmatprep.subr.bf16.mxu0 %v3667
        %3692 = vmatpush1.bf16.msra.mxu0 %v3666
        %3693 = vmatprep.subr.bf16.mxu0 %v3665
        %3694 = vmatpush1.bf16.msra.mxu0 %v3664
        %3695 = vmatprep.subr.bf16.mxu0 %v3663
        %3696 = vmatpush1.bf16.msra.mxu0 %v3662
        %3697 = vmatprep.subr.bf16.mxu0 0
        %3698 = vmatpush2.bf16.msra.mxu0 0
        %3699 = vmatprep.subr.bf16.mxu0 0
        %3700 = vmatpush2.bf16.msra.mxu0 0
        %3701 = vmatprep.subr.bf16.mxu0 0
        %3702 = vmatpush2.bf16.msra.mxu0 0
        %3703 = vmatprep.subr.bf16.mxu0 0
        %3704 = vmatpush2.bf16.msra.mxu0 0
        %3705 = vmatprep.subr.bf16.mxu0 0
        %3706 = vmatpush2.bf16.msra.mxu0 0
        %3707 = vmatprep.subr.bf16.mxu0 0
        %3708 = vmatpush2.bf16.msra.mxu0 0
        %3709 = vmatprep.subr.bf16.mxu0 0
        %3710 = vmatpush2.bf16.msra.mxu0 0
        %3711 = vmatprep.subr.bf16.mxu0 0
        %3712 = vmatpush2.bf16.msra.mxu0 0
        %3713 = vmatprep.mubr.bf16.mxu0 0
        %3714 = vmatmul.mubr.bf16.gmra.mxu0 %v3679
        %v3715 = vpop.f32.mrf.mxu0
        %v3716 = vadd.f32 %v2659, %v3715
        %v3717 = vpop.f32.mrf.mxu0
        %v3718 = vadd.f32 %v2659, %v3717
        %v3719 = vpop.f32.mrf.mxu0
        %v3720 = vpop.f32.mrf.mxu0
        %3721 = vdwg.mxu0
        %v3724 = vcombine.low %v3716, %v3718
        %s3726 = scalar_lea.vmem %s530, 120
        %3727 = vst [vmem:[%s3726] sm:$0x77] %v3724
        %p3728 = scmp.lt.s32.totalorder %s28, 1
        %s3729 = scalar_select %p3728, %s28, 1
        %s3730 = smul.addr %s3729, 32
        %s3731 = smul.addr %s3730, 4
        %s3732 = scalar_lea.vmem %s11, %s3731
        // Predicated region
        $region105: #{_lambda_.1} parent=63 // pred_check
          %p3733 = pneg %p282
        $region106: #{_lambda_.1} parent=63 // pred_check_branch
          %3735 = sbr.rel (%p3733) target = $region108
        $region107: #{_lambda_.1} parent=63 // pred_region
          _
        $region108: #{_lambda_.1} parent=63 // pred_fallthru
          _
      $region64: #{_lambda_.1} parent=5 // pred_fallthru
        _
      %p3736 = scmp.le.s32.totalorder 2, %s23
      // Predicated region
      $region109: #{_lambda_.1} parent=5 // pred_check
        %p3737 = pneg %p3736
      $region110: #{_lambda_.1} parent=5 // pred_check_branch
        %3739 = sbr.rel (%p3737) target = $region112
      $region111: #{_lambda_.1} parent=5 // pred_region
        %s3740 = ssub.s32 %s23, 2
        // Predicated region
        $region113: #{_lambda_.1} parent=111 // pred_check
          %p3741 = pneg %p288
        $region114: #{_lambda_.1} parent=111 // pred_check_branch
          %3743 = sbr.rel (%p3741) target = $region116
        $region115: #{_lambda_.1} parent=111 // pred_region
          %p3744 = scmp.lt.s32.totalorder %s29, 1
          %s3745 = scalar_select %p3744, %s29, 1
          %s3746 = smul.addr %s3745, 32
          %s3747 = smul.addr %s3746, 4
          %s3748 = scalar_lea.vmem %s11, %s3747
        $region116: #{_lambda_.1} parent=111 // pred_fallthru
          _
      $region112: #{_lambda_.1} parent=5 // pred_fallthru
        _
    $region6: #{_lambda_.1} parent=1 // loop_footer
      %s27 = sadd.s32 1, %s23
    $region7: #{_lambda_.1} parent=1 // loop_footer_branch
      %22 = sbr.rel target = $region3
    $region8: #{_lambda_.1} parent=1 // loop_exit
      _
    %3749 = vsyncpa [#allocation3], 1
    %s3750 = scalar_lea.sflag [#allocation3], 1
    %3751 = vsyncpa %s3750, 1
    %3752 = vsyncpa [#allocation5], 1
    %3753 = vsyncpa [#allocation8], 1
    %3754 = vsyncpa [#allocation11], 1
    %3755 = vsyncpa [#allocation14], 1
    %3756 = vsyncpa [#allocation17], 1

</llo_original>
